<compile_context>
chip_gen: v6e
topology: v6e:2x2x1
jax: 0.10.0
libtpu: 0.0.40
codegen_flags: <defaults>
</compile_context>

<pallas_src>
import jax
import jax.numpy as jnp
import numpy as np
from jax.experimental import pallas as pl
from jax.experimental.pallas import tpu as pltpu

HIGH = jax.lax.Precision.HIGHEST  # only used by the pure-JAX reference


def _textcnn_kernel(
    # scalar prefetch (SMEM)
    ids_ref,       # [B_pad, S] int32
    # inputs
    table_ref,     # [V, E] f32, left in HBM (memory_space=pl.ANY)
    wconv_ref,     # [K, E, F] bf16, VMEM
    bconv_ref,     # [1, F]  f32, VMEM
    wfc_ref,       # [F, C]  bf16, VMEM
    bfc_ref,       # [1, C]  f32, VMEM
    # output
    out_ref,       # [BB, C] block of the [B_pad, C] output
    # scratch
    emb_buf,       # VMEM [BB*S, E] f32 — gathered embedding rows (flattened)
    row_sems,      # DMA semaphores, shape (BB, S)
):
    BB, _ = out_ref.shape
    N, E = emb_buf.shape
    S = N // BB
    V = table_ref.shape[0]
    K, _, F = wconv_ref.shape
    L = S - K + 1                         # Conv1d 'valid' output length
    b0 = pl.program_id(0) * BB            # first batch element of this tile

    # --- nn.Embedding: DMA-gather exactly the BB*S rows this tile needs from
    # the HBM-resident table (no one-hot, no vocab table in VMEM).
    copies = []
    for bb in range(BB):
        for s in range(S):
            # Clamp OOV ids so the DMA is always in-range (nn.Embedding would
            # raise on OOV; here we pin to the last row instead of faulting).
            row = jnp.clip(ids_ref[b0 + bb, s], 0, V - 1)
            copies.append(
                pltpu.make_async_copy(
                    table_ref.at[pl.ds(row, 1), :],
                    emb_buf.at[pl.ds(bb * S + s, 1), :],
                    row_sems.at[bb, s],
                )
            )
    for c in copies:
        c.start()
    for c in copies:
        c.wait()

    emb = emb_buf[...].astype(jnp.bfloat16)          # [BB*S, E], full block

    # --- nn.Conv1d(E -> F, kernel_size=K, 'valid'):
    # K matmuls over the full flattened [BB*S, E] block (bf16 in / f32 acc);
    # the time-shifted adds happen on the small f32 outputs.
    # TODO(synk): the [:, k:k+L, :] shifted adds could use pltpu.roll along
    # the time axis to stay fully sublane-aligned; negligible at these sizes.
    acc = None
    for k in range(K):
        y = jnp.dot(emb, wconv_ref[k],
                    preferred_element_type=jnp.float32)          # [BB*S, F]
        yk = y.reshape(BB, S, F)[:, k:k + L, :]                  # [BB, L, F]
        acc = yk if acc is None else acc + yk
    acc = acc + bconv_ref[...]                                   # [BB, L, F]

    # --- nn.AdaptiveMaxPool1d(1): global max over time.
    pooled = jnp.max(acc, axis=1)                                # [BB, F]

    # --- nn.Linear(F -> C): one matmul for the whole tile.
    logits = jnp.dot(pooled.astype(jnp.bfloat16), wfc_ref[...],
                     preferred_element_type=jnp.float32) + bfc_ref[...]  # [BB, C]

    out_ref[...] = logits.astype(out_ref.dtype)
    # TODO(synk): QuantStub/DeQuantStub path (quantize=True) has no Pallas
    # equivalent; with quantize=False (default) they are identity, so omitted.


def textcnn_forward(ids, table, wconv_kef, bconv_1f, wfc_fc, bfc_1c,
                    *, block_b=8):
    """ids:[B,S] int32 -> logits:[B,C] f32, whole forward in one pallas_call."""
    B, S = ids.shape
    V, E = table.shape
    K, _, F = wconv_kef.shape
    C = wfc_fc.shape[1]
    assert S >= K, "sequence must be at least kernel_size"

    # Batch tile size: whole batch if small, else 8 (sublane-aligned blocks).
    if B <= block_b:
        BB, B_pad = B, B
    else:
        BB = block_b
        B_pad = ((B + BB - 1) // BB) * BB
    if B_pad != B:
        ids = jnp.pad(ids, ((0, B_pad - B), (0, 0)))   # padded rows sliced off

    # Pre-cast weights to bf16 once on the host (MXU operands).
    wconv_bf = wconv_kef.astype(jnp.bfloat16)
    wfc_bf = wfc_fc.astype(jnp.bfloat16)

    grid_spec = pltpu.PrefetchScalarGridSpec(
        num_scalar_prefetch=1,            # ids -> SMEM, visible to index_maps
        grid=(B_pad // BB,),              # one batch TILE per grid step
        in_specs=[
            pl.BlockSpec(memory_space=pl.ANY),                   # table in HBM
            pl.BlockSpec((K, E, F), lambda b, ids: (0, 0, 0)),   # conv weight
            pl.BlockSpec((1, F), lambda b, ids: (0, 0)),         # conv bias
            pl.BlockSpec((F, C), lambda b, ids: (0, 0)),         # fc weight
            pl.BlockSpec((1, C), lambda b, ids: (0, 0)),         # fc bias
        ],
        out_specs=pl.BlockSpec((BB, C), lambda b, ids: (b, 0)),
        scratch_shapes=[
            pltpu.VMEM((BB * S, E), jnp.float32),   # gathered embedding rows
            pltpu.SemaphoreType.DMA((BB, S)),       # one sem per row DMA
        ],
    )

    out = pl.pallas_call(
        _textcnn_kernel,
        out_shape=jax.ShapeDtypeStruct((B_pad, C), jnp.float32),
        grid_spec=grid_spec,
        compiler_params=pltpu.CompilerParams(
            dimension_semantics=("parallel",)),   # megacore-split batch tiles
    )(ids, table, wconv_bf, bconv_1f, wfc_bf, bfc_1c)
    return out[:B]                                # [B, C]


def reference_forward(ids, table, w_fek, bconv_f, wfc_cf, bfc_c):
    """Pure-JAX mirror of the PyTorch forward (NCL conv), for validation."""
    emb = jnp.take(table, ids, axis=0).transpose(0, 2, 1)        # [B, E, S]
    conv = jax.lax.conv_general_dilated(
        emb, w_fek, window_strides=(1,), padding='VALID',
        dimension_numbers=('NCH', 'OIH', 'NCH'),
        precision=HIGH) + bconv_f[None, :, None]                 # [B, F, L]
    pooled = jnp.max(conv, axis=-1)                              # [B, F]
    return jnp.dot(pooled, wfc_cf.T, precision=HIGH) + bfc_c     # [B, C]


if __name__ == "__main__":
    # Small, forward-consistent shapes.
    vocab_size, num_classes = 100, 8
    embed_dim, num_filters, kernel_size = 64, 64, 5
    batch, seq = 2, 16

    key = jax.random.PRNGKey(0)
    k_ids, k_emb, k_cw, k_cb, k_fw, k_fb = jax.random.split(key, 6)

    x = jax.random.randint(k_ids, (batch, seq), 0, vocab_size, dtype=jnp.int32)

    # Deterministic synthetic parameters (PyTorch layouts).
    table = 0.1 * jax.random.normal(k_emb, (vocab_size, embed_dim), jnp.float32)
    w_conv = 0.1 * jax.random.normal(
        k_cw, (num_filters, embed_dim, kernel_size), jnp.float32)   # [F, E, K]
    b_conv = 0.1 * jax.random.normal(k_cb, (num_filters,), jnp.float32)
    w_fc = 0.1 * jax.random.normal(
        k_fw, (num_classes, num_filters), jnp.float32)              # [C, F]
    b_fc = 0.1 * jax.random.normal(k_fb, (num_classes,), jnp.float32)

    # Re-layout for the kernel.
    w_conv_kef = jnp.transpose(w_conv, (2, 1, 0))   # [K, E, F]
    b_conv_1f = b_conv[None, :]                     # [1, F]
    w_fc_fc = w_fc.T                                # [F, C]
    b_fc_1c = b_fc[None, :]                         # [1, C]

    logits = textcnn_forward(x, table, w_conv_kef, b_conv_1f, w_fc_fc, b_fc_1c)
    logits = jax.block_until_ready(logits)

    ref = jax.block_until_ready(
        reference_forward(x, table, w_conv, b_conv, w_fc, b_fc))

    assert logits.shape == (batch, num_classes), logits.shape
    np.testing.assert_allclose(np.asarray(logits), np.asarray(ref),
                               rtol=5e-2, atol=5e-2)
    print("KERNEL_OK")
</pallas_src>

<mosaic_0001>
module attributes {stable_mosaic.version = 11 : i64} {
  func.func @_textcnn_kernel(%arg0: i32, %arg1: memref<2x16xi32, #tpu.memory_space<smem>>, %arg2: memref<100x64xf32, #tpu.memory_space<any>>, %arg3: memref<5x64x64xbf16, #tpu.memory_space<vmem>>, %arg4: memref<1x64xf32, #tpu.memory_space<vmem>>, %arg5: memref<64x8xbf16, #tpu.memory_space<vmem>>, %arg6: memref<1x8xf32, #tpu.memory_space<vmem>>, %arg7: memref<2x8xf32, #tpu.memory_space<vmem>>, %arg8: memref<32x64xf32, #tpu.memory_space<vmem>>, %arg9: memref<2x16x!tpu.dma_semaphore, #tpu.memory_space<semaphore_mem>>) attributes {dimension_semantics = [#tpu.dimension_semantics<parallel>], iteration_bounds = array<i64: 1>, scalar_prefetch = 1 : i64, scratch_operands = 2 : i64, tpu.core_type = #tpu.core_type<tc>, window_params = [{}, {pipeline_mode = #tpu.pipeline_mode<synchronous>, transform_indices = @transform_1, window_bounds = array<i64: 5, 64, 64>}, {pipeline_mode = #tpu.pipeline_mode<synchronous>, transform_indices = @transform_2, window_bounds = array<i64: 1, 64>}, {pipeline_mode = #tpu.pipeline_mode<synchronous>, transform_indices = @transform_3, window_bounds = array<i64: 64, 8>}, {pipeline_mode = #tpu.pipeline_mode<synchronous>, transform_indices = @transform_4, window_bounds = array<i64: 1, 8>}, {transform_indices = @transform_5, window_bounds = array<i64: 2, 8>}]} {
    %c2_i32 = arith.constant 2 : i32
    %0 = arith.muli %arg0, %c2_i32 : i32
    %c0_i32 = arith.constant 0 : i32
    %1 = arith.addi %0, %c0_i32 : i32
    %2 = arith.index_cast %1 : i32 to index
    %c0 = arith.constant 0 : index
    %3 = memref.load %arg1[%2, %c0] : memref<2x16xi32, #tpu.memory_space<smem>>
    %c0_i32_0 = arith.constant 0 : i32
    %c99_i32 = arith.constant 99 : i32
    %4 = arith.maxsi %c0_i32_0, %3 : i32
    %5 = arith.minsi %c99_i32, %4 : i32
    %c0_i32_1 = arith.constant 0 : i32
    %6 = arith.addi %0, %c0_i32_1 : i32
    %7 = arith.index_cast %6 : i32 to index
    %c1 = arith.constant 1 : index
    %8 = memref.load %arg1[%7, %c1] : memref<2x16xi32, #tpu.memory_space<smem>>
    %c0_i32_2 = arith.constant 0 : i32
    %c99_i32_3 = arith.constant 99 : i32
    %9 = arith.maxsi %c0_i32_2, %8 : i32
    %10 = arith.minsi %c99_i32_3, %9 : i32
    %c0_i32_4 = arith.constant 0 : i32
    %11 = arith.addi %0, %c0_i32_4 : i32
    %12 = arith.index_cast %11 : i32 to index
    %c2 = arith.constant 2 : index
    %13 = memref.load %arg1[%12, %c2] : memref<2x16xi32, #tpu.memory_space<smem>>
    %c0_i32_5 = arith.constant 0 : i32
    %c99_i32_6 = arith.constant 99 : i32
    %14 = arith.maxsi %c0_i32_5, %13 : i32
    %15 = arith.minsi %c99_i32_6, %14 : i32
    %c0_i32_7 = arith.constant 0 : i32
    %16 = arith.addi %0, %c0_i32_7 : i32
    %17 = arith.index_cast %16 : i32 to index
    %c3 = arith.constant 3 : index
    %18 = memref.load %arg1[%17, %c3] : memref<2x16xi32, #tpu.memory_space<smem>>
    %c0_i32_8 = arith.constant 0 : i32
    %c99_i32_9 = arith.constant 99 : i32
    %19 = arith.maxsi %c0_i32_8, %18 : i32
    %20 = arith.minsi %c99_i32_9, %19 : i32
    %c0_i32_10 = arith.constant 0 : i32
    %21 = arith.addi %0, %c0_i32_10 : i32
    %22 = arith.index_cast %21 : i32 to index
    %c4 = arith.constant 4 : index
    %23 = memref.load %arg1[%22, %c4] : memref<2x16xi32, #tpu.memory_space<smem>>
    %c0_i32_11 = arith.constant 0 : i32
    %c99_i32_12 = arith.constant 99 : i32
    %24 = arith.maxsi %c0_i32_11, %23 : i32
    %25 = arith.minsi %c99_i32_12, %24 : i32
    %c0_i32_13 = arith.constant 0 : i32
    %26 = arith.addi %0, %c0_i32_13 : i32
    %27 = arith.index_cast %26 : i32 to index
    %c5 = arith.constant 5 : index
    %28 = memref.load %arg1[%27, %c5] : memref<2x16xi32, #tpu.memory_space<smem>>
    %c0_i32_14 = arith.constant 0 : i32
    %c99_i32_15 = arith.constant 99 : i32
    %29 = arith.maxsi %c0_i32_14, %28 : i32
    %30 = arith.minsi %c99_i32_15, %29 : i32
    %c0_i32_16 = arith.constant 0 : i32
    %31 = arith.addi %0, %c0_i32_16 : i32
    %32 = arith.index_cast %31 : i32 to index
    %c6 = arith.constant 6 : index
    %33 = memref.load %arg1[%32, %c6] : memref<2x16xi32, #tpu.memory_space<smem>>
    %c0_i32_17 = arith.constant 0 : i32
    %c99_i32_18 = arith.constant 99 : i32
    %34 = arith.maxsi %c0_i32_17, %33 : i32
    %35 = arith.minsi %c99_i32_18, %34 : i32
    %c0_i32_19 = arith.constant 0 : i32
    %36 = arith.addi %0, %c0_i32_19 : i32
    %37 = arith.index_cast %36 : i32 to index
    %c7 = arith.constant 7 : index
    %38 = memref.load %arg1[%37, %c7] : memref<2x16xi32, #tpu.memory_space<smem>>
    %c0_i32_20 = arith.constant 0 : i32
    %c99_i32_21 = arith.constant 99 : i32
    %39 = arith.maxsi %c0_i32_20, %38 : i32
    %40 = arith.minsi %c99_i32_21, %39 : i32
    %c0_i32_22 = arith.constant 0 : i32
    %41 = arith.addi %0, %c0_i32_22 : i32
    %42 = arith.index_cast %41 : i32 to index
    %c8 = arith.constant 8 : index
    %43 = memref.load %arg1[%42, %c8] : memref<2x16xi32, #tpu.memory_space<smem>>
    %c0_i32_23 = arith.constant 0 : i32
    %c99_i32_24 = arith.constant 99 : i32
    %44 = arith.maxsi %c0_i32_23, %43 : i32
    %45 = arith.minsi %c99_i32_24, %44 : i32
    %c0_i32_25 = arith.constant 0 : i32
    %46 = arith.addi %0, %c0_i32_25 : i32
    %47 = arith.index_cast %46 : i32 to index
    %c9 = arith.constant 9 : index
    %48 = memref.load %arg1[%47, %c9] : memref<2x16xi32, #tpu.memory_space<smem>>
    %c0_i32_26 = arith.constant 0 : i32
    %c99_i32_27 = arith.constant 99 : i32
    %49 = arith.maxsi %c0_i32_26, %48 : i32
    %50 = arith.minsi %c99_i32_27, %49 : i32
    %c0_i32_28 = arith.constant 0 : i32
    %51 = arith.addi %0, %c0_i32_28 : i32
    %52 = arith.index_cast %51 : i32 to index
    %c10 = arith.constant 10 : index
    %53 = memref.load %arg1[%52, %c10] : memref<2x16xi32, #tpu.memory_space<smem>>
    %c0_i32_29 = arith.constant 0 : i32
    %c99_i32_30 = arith.constant 99 : i32
    %54 = arith.maxsi %c0_i32_29, %53 : i32
    %55 = arith.minsi %c99_i32_30, %54 : i32
    %c0_i32_31 = arith.constant 0 : i32
    %56 = arith.addi %0, %c0_i32_31 : i32
    %57 = arith.index_cast %56 : i32 to index
    %c11 = arith.constant 11 : index
    %58 = memref.load %arg1[%57, %c11] : memref<2x16xi32, #tpu.memory_space<smem>>
    %c0_i32_32 = arith.constant 0 : i32
    %c99_i32_33 = arith.constant 99 : i32
    %59 = arith.maxsi %c0_i32_32, %58 : i32
    %60 = arith.minsi %c99_i32_33, %59 : i32
    %c0_i32_34 = arith.constant 0 : i32
    %61 = arith.addi %0, %c0_i32_34 : i32
    %62 = arith.index_cast %61 : i32 to index
    %c12 = arith.constant 12 : index
    %63 = memref.load %arg1[%62, %c12] : memref<2x16xi32, #tpu.memory_space<smem>>
    %c0_i32_35 = arith.constant 0 : i32
    %c99_i32_36 = arith.constant 99 : i32
    %64 = arith.maxsi %c0_i32_35, %63 : i32
    %65 = arith.minsi %c99_i32_36, %64 : i32
    %c0_i32_37 = arith.constant 0 : i32
    %66 = arith.addi %0, %c0_i32_37 : i32
    %67 = arith.index_cast %66 : i32 to index
    %c13 = arith.constant 13 : index
    %68 = memref.load %arg1[%67, %c13] : memref<2x16xi32, #tpu.memory_space<smem>>
    %c0_i32_38 = arith.constant 0 : i32
    %c99_i32_39 = arith.constant 99 : i32
    %69 = arith.maxsi %c0_i32_38, %68 : i32
    %70 = arith.minsi %c99_i32_39, %69 : i32
    %c0_i32_40 = arith.constant 0 : i32
    %71 = arith.addi %0, %c0_i32_40 : i32
    %72 = arith.index_cast %71 : i32 to index
    %c14 = arith.constant 14 : index
    %73 = memref.load %arg1[%72, %c14] : memref<2x16xi32, #tpu.memory_space<smem>>
    %c0_i32_41 = arith.constant 0 : i32
    %c99_i32_42 = arith.constant 99 : i32
    %74 = arith.maxsi %c0_i32_41, %73 : i32
    %75 = arith.minsi %c99_i32_42, %74 : i32
    %c0_i32_43 = arith.constant 0 : i32
    %76 = arith.addi %0, %c0_i32_43 : i32
    %77 = arith.index_cast %76 : i32 to index
    %c15 = arith.constant 15 : index
    %78 = memref.load %arg1[%77, %c15] : memref<2x16xi32, #tpu.memory_space<smem>>
    %c0_i32_44 = arith.constant 0 : i32
    %c99_i32_45 = arith.constant 99 : i32
    %79 = arith.maxsi %c0_i32_44, %78 : i32
    %80 = arith.minsi %c99_i32_45, %79 : i32
    %c1_i32 = arith.constant 1 : i32
    %81 = arith.addi %0, %c1_i32 : i32
    %82 = arith.index_cast %81 : i32 to index
    %c0_46 = arith.constant 0 : index
    %83 = memref.load %arg1[%82, %c0_46] : memref<2x16xi32, #tpu.memory_space<smem>>
    %c0_i32_47 = arith.constant 0 : i32
    %c99_i32_48 = arith.constant 99 : i32
    %84 = arith.maxsi %c0_i32_47, %83 : i32
    %85 = arith.minsi %c99_i32_48, %84 : i32
    %c1_i32_49 = arith.constant 1 : i32
    %86 = arith.addi %0, %c1_i32_49 : i32
    %87 = arith.index_cast %86 : i32 to index
    %c1_50 = arith.constant 1 : index
    %88 = memref.load %arg1[%87, %c1_50] : memref<2x16xi32, #tpu.memory_space<smem>>
    %c0_i32_51 = arith.constant 0 : i32
    %c99_i32_52 = arith.constant 99 : i32
    %89 = arith.maxsi %c0_i32_51, %88 : i32
    %90 = arith.minsi %c99_i32_52, %89 : i32
    %c1_i32_53 = arith.constant 1 : i32
    %91 = arith.addi %0, %c1_i32_53 : i32
    %92 = arith.index_cast %91 : i32 to index
    %c2_54 = arith.constant 2 : index
    %93 = memref.load %arg1[%92, %c2_54] : memref<2x16xi32, #tpu.memory_space<smem>>
    %c0_i32_55 = arith.constant 0 : i32
    %c99_i32_56 = arith.constant 99 : i32
    %94 = arith.maxsi %c0_i32_55, %93 : i32
    %95 = arith.minsi %c99_i32_56, %94 : i32
    %c1_i32_57 = arith.constant 1 : i32
    %96 = arith.addi %0, %c1_i32_57 : i32
    %97 = arith.index_cast %96 : i32 to index
    %c3_58 = arith.constant 3 : index
    %98 = memref.load %arg1[%97, %c3_58] : memref<2x16xi32, #tpu.memory_space<smem>>
    %c0_i32_59 = arith.constant 0 : i32
    %c99_i32_60 = arith.constant 99 : i32
    %99 = arith.maxsi %c0_i32_59, %98 : i32
    %100 = arith.minsi %c99_i32_60, %99 : i32
    %c1_i32_61 = arith.constant 1 : i32
    %101 = arith.addi %0, %c1_i32_61 : i32
    %102 = arith.index_cast %101 : i32 to index
    %c4_62 = arith.constant 4 : index
    %103 = memref.load %arg1[%102, %c4_62] : memref<2x16xi32, #tpu.memory_space<smem>>
    %c0_i32_63 = arith.constant 0 : i32
    %c99_i32_64 = arith.constant 99 : i32
    %104 = arith.maxsi %c0_i32_63, %103 : i32
    %105 = arith.minsi %c99_i32_64, %104 : i32
    %c1_i32_65 = arith.constant 1 : i32
    %106 = arith.addi %0, %c1_i32_65 : i32
    %107 = arith.index_cast %106 : i32 to index
    %c5_66 = arith.constant 5 : index
    %108 = memref.load %arg1[%107, %c5_66] : memref<2x16xi32, #tpu.memory_space<smem>>
    %c0_i32_67 = arith.constant 0 : i32
    %c99_i32_68 = arith.constant 99 : i32
    %109 = arith.maxsi %c0_i32_67, %108 : i32
    %110 = arith.minsi %c99_i32_68, %109 : i32
    %c1_i32_69 = arith.constant 1 : i32
    %111 = arith.addi %0, %c1_i32_69 : i32
    %112 = arith.index_cast %111 : i32 to index
    %c6_70 = arith.constant 6 : index
    %113 = memref.load %arg1[%112, %c6_70] : memref<2x16xi32, #tpu.memory_space<smem>>
    %c0_i32_71 = arith.constant 0 : i32
    %c99_i32_72 = arith.constant 99 : i32
    %114 = arith.maxsi %c0_i32_71, %113 : i32
    %115 = arith.minsi %c99_i32_72, %114 : i32
    %c1_i32_73 = arith.constant 1 : i32
    %116 = arith.addi %0, %c1_i32_73 : i32
    %117 = arith.index_cast %116 : i32 to index
    %c7_74 = arith.constant 7 : index
    %118 = memref.load %arg1[%117, %c7_74] : memref<2x16xi32, #tpu.memory_space<smem>>
    %c0_i32_75 = arith.constant 0 : i32
    %c99_i32_76 = arith.constant 99 : i32
    %119 = arith.maxsi %c0_i32_75, %118 : i32
    %120 = arith.minsi %c99_i32_76, %119 : i32
    %c1_i32_77 = arith.constant 1 : i32
    %121 = arith.addi %0, %c1_i32_77 : i32
    %122 = arith.index_cast %121 : i32 to index
    %c8_78 = arith.constant 8 : index
    %123 = memref.load %arg1[%122, %c8_78] : memref<2x16xi32, #tpu.memory_space<smem>>
    %c0_i32_79 = arith.constant 0 : i32
    %c99_i32_80 = arith.constant 99 : i32
    %124 = arith.maxsi %c0_i32_79, %123 : i32
    %125 = arith.minsi %c99_i32_80, %124 : i32
    %c1_i32_81 = arith.constant 1 : i32
    %126 = arith.addi %0, %c1_i32_81 : i32
    %127 = arith.index_cast %126 : i32 to index
    %c9_82 = arith.constant 9 : index
    %128 = memref.load %arg1[%127, %c9_82] : memref<2x16xi32, #tpu.memory_space<smem>>
    %c0_i32_83 = arith.constant 0 : i32
    %c99_i32_84 = arith.constant 99 : i32
    %129 = arith.maxsi %c0_i32_83, %128 : i32
    %130 = arith.minsi %c99_i32_84, %129 : i32
    %c1_i32_85 = arith.constant 1 : i32
    %131 = arith.addi %0, %c1_i32_85 : i32
    %132 = arith.index_cast %131 : i32 to index
    %c10_86 = arith.constant 10 : index
    %133 = memref.load %arg1[%132, %c10_86] : memref<2x16xi32, #tpu.memory_space<smem>>
    %c0_i32_87 = arith.constant 0 : i32
    %c99_i32_88 = arith.constant 99 : i32
    %134 = arith.maxsi %c0_i32_87, %133 : i32
    %135 = arith.minsi %c99_i32_88, %134 : i32
    %c1_i32_89 = arith.constant 1 : i32
    %136 = arith.addi %0, %c1_i32_89 : i32
    %137 = arith.index_cast %136 : i32 to index
    %c11_90 = arith.constant 11 : index
    %138 = memref.load %arg1[%137, %c11_90] : memref<2x16xi32, #tpu.memory_space<smem>>
    %c0_i32_91 = arith.constant 0 : i32
    %c99_i32_92 = arith.constant 99 : i32
    %139 = arith.maxsi %c0_i32_91, %138 : i32
    %140 = arith.minsi %c99_i32_92, %139 : i32
    %c1_i32_93 = arith.constant 1 : i32
    %141 = arith.addi %0, %c1_i32_93 : i32
    %142 = arith.index_cast %141 : i32 to index
    %c12_94 = arith.constant 12 : index
    %143 = memref.load %arg1[%142, %c12_94] : memref<2x16xi32, #tpu.memory_space<smem>>
    %c0_i32_95 = arith.constant 0 : i32
    %c99_i32_96 = arith.constant 99 : i32
    %144 = arith.maxsi %c0_i32_95, %143 : i32
    %145 = arith.minsi %c99_i32_96, %144 : i32
    %c1_i32_97 = arith.constant 1 : i32
    %146 = arith.addi %0, %c1_i32_97 : i32
    %147 = arith.index_cast %146 : i32 to index
    %c13_98 = arith.constant 13 : index
    %148 = memref.load %arg1[%147, %c13_98] : memref<2x16xi32, #tpu.memory_space<smem>>
    %c0_i32_99 = arith.constant 0 : i32
    %c99_i32_100 = arith.constant 99 : i32
    %149 = arith.maxsi %c0_i32_99, %148 : i32
    %150 = arith.minsi %c99_i32_100, %149 : i32
    %c1_i32_101 = arith.constant 1 : i32
    %151 = arith.addi %0, %c1_i32_101 : i32
    %152 = arith.index_cast %151 : i32 to index
    %c14_102 = arith.constant 14 : index
    %153 = memref.load %arg1[%152, %c14_102] : memref<2x16xi32, #tpu.memory_space<smem>>
    %c0_i32_103 = arith.constant 0 : i32
    %c99_i32_104 = arith.constant 99 : i32
    %154 = arith.maxsi %c0_i32_103, %153 : i32
    %155 = arith.minsi %c99_i32_104, %154 : i32
    %c1_i32_105 = arith.constant 1 : i32
    %156 = arith.addi %0, %c1_i32_105 : i32
    %157 = arith.index_cast %156 : i32 to index
    %c15_106 = arith.constant 15 : index
    %158 = memref.load %arg1[%157, %c15_106] : memref<2x16xi32, #tpu.memory_space<smem>>
    %c0_i32_107 = arith.constant 0 : i32
    %c99_i32_108 = arith.constant 99 : i32
    %159 = arith.maxsi %c0_i32_107, %158 : i32
    %160 = arith.minsi %c99_i32_108, %159 : i32
    %c0_i32_109 = arith.constant 0 : i32
    %c0_i32_110 = arith.constant 0 : i32
    %c0_i32_111 = arith.constant 0 : i32
    %161 = tpu.memref_slice %arg2[%5, %c0_i32_111] : memref<100x64xf32, #tpu.memory_space<any>> -> memref<1x64xf32, #tpu.memory_space<any>>
    %c0_i32_112 = arith.constant 0 : i32
    %c0_i32_113 = arith.constant 0 : i32
    %162 = tpu.memref_slice %arg8[%c0_i32_112, %c0_i32_113] : memref<32x64xf32, #tpu.memory_space<vmem>> -> memref<1x64xf32, #tpu.memory_space<vmem>>
    %163 = tpu.memref_slice %arg9[%c0_i32_109, %c0_i32_110] : memref<2x16x!tpu.dma_semaphore, #tpu.memory_space<semaphore_mem>> -> memref<1x1x!tpu.dma_semaphore, #tpu.memory_space<semaphore_mem>>
    %164 = tpu.memref_squeeze %163 : memref<1x1x!tpu.dma_semaphore, #tpu.memory_space<semaphore_mem>> -> memref<!tpu.dma_semaphore, #tpu.memory_space<semaphore_mem>>
    tpu.enqueue_dma source(%161 : memref<1x64xf32, #tpu.memory_space<any>>) target(%162 : memref<1x64xf32, #tpu.memory_space<vmem>>) target_semaphore(%164 : memref<!tpu.dma_semaphore, #tpu.memory_space<semaphore_mem>>)
    %c0_i32_114 = arith.constant 0 : i32
    %c1_i32_115 = arith.constant 1 : i32
    %c0_i32_116 = arith.constant 0 : i32
    %165 = tpu.memref_slice %arg2[%10, %c0_i32_116] : memref<100x64xf32, #tpu.memory_space<any>> -> memref<1x64xf32, #tpu.memory_space<any>>
    %c1_i32_117 = arith.constant 1 : i32
    %c0_i32_118 = arith.constant 0 : i32
    %166 = tpu.memref_slice %arg8[%c1_i32_117, %c0_i32_118] : memref<32x64xf32, #tpu.memory_space<vmem>> -> memref<1x64xf32, #tpu.memory_space<vmem>>
    %167 = tpu.memref_slice %arg9[%c0_i32_114, %c1_i32_115] : memref<2x16x!tpu.dma_semaphore, #tpu.memory_space<semaphore_mem>> -> memref<1x1x!tpu.dma_semaphore, #tpu.memory_space<semaphore_mem>>
    %168 = tpu.memref_squeeze %167 : memref<1x1x!tpu.dma_semaphore, #tpu.memory_space<semaphore_mem>> -> memref<!tpu.dma_semaphore, #tpu.memory_space<semaphore_mem>>
    tpu.enqueue_dma source(%165 : memref<1x64xf32, #tpu.memory_space<any>>) target(%166 : memref<1x64xf32, #tpu.memory_space<vmem>>) target_semaphore(%168 : memref<!tpu.dma_semaphore, #tpu.memory_space<semaphore_mem>>)
    %c0_i32_119 = arith.constant 0 : i32
    %c2_i32_120 = arith.constant 2 : i32
    %c0_i32_121 = arith.constant 0 : i32
    %169 = tpu.memref_slice %arg2[%15, %c0_i32_121] : memref<100x64xf32, #tpu.memory_space<any>> -> memref<1x64xf32, #tpu.memory_space<any>>
    %c2_i32_122 = arith.constant 2 : i32
    %c0_i32_123 = arith.constant 0 : i32
    %170 = tpu.memref_slice %arg8[%c2_i32_122, %c0_i32_123] : memref<32x64xf32, #tpu.memory_space<vmem>> -> memref<1x64xf32, #tpu.memory_space<vmem>>
    %171 = tpu.memref_slice %arg9[%c0_i32_119, %c2_i32_120] : memref<2x16x!tpu.dma_semaphore, #tpu.memory_space<semaphore_mem>> -> memref<1x1x!tpu.dma_semaphore, #tpu.memory_space<semaphore_mem>>
    %172 = tpu.memref_squeeze %171 : memref<1x1x!tpu.dma_semaphore, #tpu.memory_space<semaphore_mem>> -> memref<!tpu.dma_semaphore, #tpu.memory_space<semaphore_mem>>
    tpu.enqueue_dma source(%169 : memref<1x64xf32, #tpu.memory_space<any>>) target(%170 : memref<1x64xf32, #tpu.memory_space<vmem>>) target_semaphore(%172 : memref<!tpu.dma_semaphore, #tpu.memory_space<semaphore_mem>>)
    %c0_i32_124 = arith.constant 0 : i32
    %c3_i32 = arith.constant 3 : i32
    %c0_i32_125 = arith.constant 0 : i32
    %173 = tpu.memref_slice %arg2[%20, %c0_i32_125] : memref<100x64xf32, #tpu.memory_space<any>> -> memref<1x64xf32, #tpu.memory_space<any>>
    %c3_i32_126 = arith.constant 3 : i32
    %c0_i32_127 = arith.constant 0 : i32
    %174 = tpu.memref_slice %arg8[%c3_i32_126, %c0_i32_127] : memref<32x64xf32, #tpu.memory_space<vmem>> -> memref<1x64xf32, #tpu.memory_space<vmem>>
    %175 = tpu.memref_slice %arg9[%c0_i32_124, %c3_i32] : memref<2x16x!tpu.dma_semaphore, #tpu.memory_space<semaphore_mem>> -> memref<1x1x!tpu.dma_semaphore, #tpu.memory_space<semaphore_mem>>
    %176 = tpu.memref_squeeze %175 : memref<1x1x!tpu.dma_semaphore, #tpu.memory_space<semaphore_mem>> -> memref<!tpu.dma_semaphore, #tpu.memory_space<semaphore_mem>>
    tpu.enqueue_dma source(%173 : memref<1x64xf32, #tpu.memory_space<any>>) target(%174 : memref<1x64xf32, #tpu.memory_space<vmem>>) target_semaphore(%176 : memref<!tpu.dma_semaphore, #tpu.memory_space<semaphore_mem>>)
    %c0_i32_128 = arith.constant 0 : i32
    %c4_i32 = arith.constant 4 : i32
    %c0_i32_129 = arith.constant 0 : i32
    %177 = tpu.memref_slice %arg2[%25, %c0_i32_129] : memref<100x64xf32, #tpu.memory_space<any>> -> memref<1x64xf32, #tpu.memory_space<any>>
    %c4_i32_130 = arith.constant 4 : i32
    %c0_i32_131 = arith.constant 0 : i32
    %178 = tpu.memref_slice %arg8[%c4_i32_130, %c0_i32_131] : memref<32x64xf32, #tpu.memory_space<vmem>> -> memref<1x64xf32, #tpu.memory_space<vmem>>
    %179 = tpu.memref_slice %arg9[%c0_i32_128, %c4_i32] : memref<2x16x!tpu.dma_semaphore, #tpu.memory_space<semaphore_mem>> -> memref<1x1x!tpu.dma_semaphore, #tpu.memory_space<semaphore_mem>>
    %180 = tpu.memref_squeeze %179 : memref<1x1x!tpu.dma_semaphore, #tpu.memory_space<semaphore_mem>> -> memref<!tpu.dma_semaphore, #tpu.memory_space<semaphore_mem>>
    tpu.enqueue_dma source(%177 : memref<1x64xf32, #tpu.memory_space<any>>) target(%178 : memref<1x64xf32, #tpu.memory_space<vmem>>) target_semaphore(%180 : memref<!tpu.dma_semaphore, #tpu.memory_space<semaphore_mem>>)
    %c0_i32_132 = arith.constant 0 : i32
    %c5_i32 = arith.constant 5 : i32
    %c0_i32_133 = arith.constant 0 : i32
    %181 = tpu.memref_slice %arg2[%30, %c0_i32_133] : memref<100x64xf32, #tpu.memory_space<any>> -> memref<1x64xf32, #tpu.memory_space<any>>
    %c5_i32_134 = arith.constant 5 : i32
    %c0_i32_135 = arith.constant 0 : i32
    %182 = tpu.memref_slice %arg8[%c5_i32_134, %c0_i32_135] : memref<32x64xf32, #tpu.memory_space<vmem>> -> memref<1x64xf32, #tpu.memory_space<vmem>>
    %183 = tpu.memref_slice %arg9[%c0_i32_132, %c5_i32] : memref<2x16x!tpu.dma_semaphore, #tpu.memory_space<semaphore_mem>> -> memref<1x1x!tpu.dma_semaphore, #tpu.memory_space<semaphore_mem>>
    %184 = tpu.memref_squeeze %183 : memref<1x1x!tpu.dma_semaphore, #tpu.memory_space<semaphore_mem>> -> memref<!tpu.dma_semaphore, #tpu.memory_space<semaphore_mem>>
    tpu.enqueue_dma source(%181 : memref<1x64xf32, #tpu.memory_space<any>>) target(%182 : memref<1x64xf32, #tpu.memory_space<vmem>>) target_semaphore(%184 : memref<!tpu.dma_semaphore, #tpu.memory_space<semaphore_mem>>)
    %c0_i32_136 = arith.constant 0 : i32
    %c6_i32 = arith.constant 6 : i32
    %c0_i32_137 = arith.constant 0 : i32
    %185 = tpu.memref_slice %arg2[%35, %c0_i32_137] : memref<100x64xf32, #tpu.memory_space<any>> -> memref<1x64xf32, #tpu.memory_space<any>>
    %c6_i32_138 = arith.constant 6 : i32
    %c0_i32_139 = arith.constant 0 : i32
    %186 = tpu.memref_slice %arg8[%c6_i32_138, %c0_i32_139] : memref<32x64xf32, #tpu.memory_space<vmem>> -> memref<1x64xf32, #tpu.memory_space<vmem>>
    %187 = tpu.memref_slice %arg9[%c0_i32_136, %c6_i32] : memref<2x16x!tpu.dma_semaphore, #tpu.memory_space<semaphore_mem>> -> memref<1x1x!tpu.dma_semaphore, #tpu.memory_space<semaphore_mem>>
    %188 = tpu.memref_squeeze %187 : memref<1x1x!tpu.dma_semaphore, #tpu.memory_space<semaphore_mem>> -> memref<!tpu.dma_semaphore, #tpu.memory_space<semaphore_mem>>
    tpu.enqueue_dma source(%185 : memref<1x64xf32, #tpu.memory_space<any>>) target(%186 : memref<1x64xf32, #tpu.memory_space<vmem>>) target_semaphore(%188 : memref<!tpu.dma_semaphore, #tpu.memory_space<semaphore_mem>>)
    %c0_i32_140 = arith.constant 0 : i32
    %c7_i32 = arith.constant 7 : i32
    %c0_i32_141 = arith.constant 0 : i32
    %189 = tpu.memref_slice %arg2[%40, %c0_i32_141] : memref<100x64xf32, #tpu.memory_space<any>> -> memref<1x64xf32, #tpu.memory_space<any>>
    %c7_i32_142 = arith.constant 7 : i32
    %c0_i32_143 = arith.constant 0 : i32
    %190 = tpu.memref_slice %arg8[%c7_i32_142, %c0_i32_143] : memref<32x64xf32, #tpu.memory_space<vmem>> -> memref<1x64xf32, #tpu.memory_space<vmem>>
    %191 = tpu.memref_slice %arg9[%c0_i32_140, %c7_i32] : memref<2x16x!tpu.dma_semaphore, #tpu.memory_space<semaphore_mem>> -> memref<1x1x!tpu.dma_semaphore, #tpu.memory_space<semaphore_mem>>
    %192 = tpu.memref_squeeze %191 : memref<1x1x!tpu.dma_semaphore, #tpu.memory_space<semaphore_mem>> -> memref<!tpu.dma_semaphore, #tpu.memory_space<semaphore_mem>>
    tpu.enqueue_dma source(%189 : memref<1x64xf32, #tpu.memory_space<any>>) target(%190 : memref<1x64xf32, #tpu.memory_space<vmem>>) target_semaphore(%192 : memref<!tpu.dma_semaphore, #tpu.memory_space<semaphore_mem>>)
    %c0_i32_144 = arith.constant 0 : i32
    %c8_i32 = arith.constant 8 : i32
    %c0_i32_145 = arith.constant 0 : i32
    %193 = tpu.memref_slice %arg2[%45, %c0_i32_145] : memref<100x64xf32, #tpu.memory_space<any>> -> memref<1x64xf32, #tpu.memory_space<any>>
    %c8_i32_146 = arith.constant 8 : i32
    %c0_i32_147 = arith.constant 0 : i32
    %194 = tpu.memref_slice %arg8[%c8_i32_146, %c0_i32_147] : memref<32x64xf32, #tpu.memory_space<vmem>> -> memref<1x64xf32, #tpu.memory_space<vmem>>
    %195 = tpu.memref_slice %arg9[%c0_i32_144, %c8_i32] : memref<2x16x!tpu.dma_semaphore, #tpu.memory_space<semaphore_mem>> -> memref<1x1x!tpu.dma_semaphore, #tpu.memory_space<semaphore_mem>>
    %196 = tpu.memref_squeeze %195 : memref<1x1x!tpu.dma_semaphore, #tpu.memory_space<semaphore_mem>> -> memref<!tpu.dma_semaphore, #tpu.memory_space<semaphore_mem>>
    tpu.enqueue_dma source(%193 : memref<1x64xf32, #tpu.memory_space<any>>) target(%194 : memref<1x64xf32, #tpu.memory_space<vmem>>) target_semaphore(%196 : memref<!tpu.dma_semaphore, #tpu.memory_space<semaphore_mem>>)
    %c0_i32_148 = arith.constant 0 : i32
    %c9_i32 = arith.constant 9 : i32
    %c0_i32_149 = arith.constant 0 : i32
    %197 = tpu.memref_slice %arg2[%50, %c0_i32_149] : memref<100x64xf32, #tpu.memory_space<any>> -> memref<1x64xf32, #tpu.memory_space<any>>
    %c9_i32_150 = arith.constant 9 : i32
    %c0_i32_151 = arith.constant 0 : i32
    %198 = tpu.memref_slice %arg8[%c9_i32_150, %c0_i32_151] : memref<32x64xf32, #tpu.memory_space<vmem>> -> memref<1x64xf32, #tpu.memory_space<vmem>>
    %199 = tpu.memref_slice %arg9[%c0_i32_148, %c9_i32] : memref<2x16x!tpu.dma_semaphore, #tpu.memory_space<semaphore_mem>> -> memref<1x1x!tpu.dma_semaphore, #tpu.memory_space<semaphore_mem>>
    %200 = tpu.memref_squeeze %199 : memref<1x1x!tpu.dma_semaphore, #tpu.memory_space<semaphore_mem>> -> memref<!tpu.dma_semaphore, #tpu.memory_space<semaphore_mem>>
    tpu.enqueue_dma source(%197 : memref<1x64xf32, #tpu.memory_space<any>>) target(%198 : memref<1x64xf32, #tpu.memory_space<vmem>>) target_semaphore(%200 : memref<!tpu.dma_semaphore, #tpu.memory_space<semaphore_mem>>)
    %c0_i32_152 = arith.constant 0 : i32
    %c10_i32 = arith.constant 10 : i32
    %c0_i32_153 = arith.constant 0 : i32
    %201 = tpu.memref_slice %arg2[%55, %c0_i32_153] : memref<100x64xf32, #tpu.memory_space<any>> -> memref<1x64xf32, #tpu.memory_space<any>>
    %c10_i32_154 = arith.constant 10 : i32
    %c0_i32_155 = arith.constant 0 : i32
    %202 = tpu.memref_slice %arg8[%c10_i32_154, %c0_i32_155] : memref<32x64xf32, #tpu.memory_space<vmem>> -> memref<1x64xf32, #tpu.memory_space<vmem>>
    %203 = tpu.memref_slice %arg9[%c0_i32_152, %c10_i32] : memref<2x16x!tpu.dma_semaphore, #tpu.memory_space<semaphore_mem>> -> memref<1x1x!tpu.dma_semaphore, #tpu.memory_space<semaphore_mem>>
    %204 = tpu.memref_squeeze %203 : memref<1x1x!tpu.dma_semaphore, #tpu.memory_space<semaphore_mem>> -> memref<!tpu.dma_semaphore, #tpu.memory_space<semaphore_mem>>
    tpu.enqueue_dma source(%201 : memref<1x64xf32, #tpu.memory_space<any>>) target(%202 : memref<1x64xf32, #tpu.memory_space<vmem>>) target_semaphore(%204 : memref<!tpu.dma_semaphore, #tpu.memory_space<semaphore_mem>>)
    %c0_i32_156 = arith.constant 0 : i32
    %c11_i32 = arith.constant 11 : i32
    %c0_i32_157 = arith.constant 0 : i32
    %205 = tpu.memref_slice %arg2[%60, %c0_i32_157] : memref<100x64xf32, #tpu.memory_space<any>> -> memref<1x64xf32, #tpu.memory_space<any>>
    %c11_i32_158 = arith.constant 11 : i32
    %c0_i32_159 = arith.constant 0 : i32
    %206 = tpu.memref_slice %arg8[%c11_i32_158, %c0_i32_159] : memref<32x64xf32, #tpu.memory_space<vmem>> -> memref<1x64xf32, #tpu.memory_space<vmem>>
    %207 = tpu.memref_slice %arg9[%c0_i32_156, %c11_i32] : memref<2x16x!tpu.dma_semaphore, #tpu.memory_space<semaphore_mem>> -> memref<1x1x!tpu.dma_semaphore, #tpu.memory_space<semaphore_mem>>
    %208 = tpu.memref_squeeze %207 : memref<1x1x!tpu.dma_semaphore, #tpu.memory_space<semaphore_mem>> -> memref<!tpu.dma_semaphore, #tpu.memory_space<semaphore_mem>>
    tpu.enqueue_dma source(%205 : memref<1x64xf32, #tpu.memory_space<any>>) target(%206 : memref<1x64xf32, #tpu.memory_space<vmem>>) target_semaphore(%208 : memref<!tpu.dma_semaphore, #tpu.memory_space<semaphore_mem>>)
    %c0_i32_160 = arith.constant 0 : i32
    %c12_i32 = arith.constant 12 : i32
    %c0_i32_161 = arith.constant 0 : i32
    %209 = tpu.memref_slice %arg2[%65, %c0_i32_161] : memref<100x64xf32, #tpu.memory_space<any>> -> memref<1x64xf32, #tpu.memory_space<any>>
    %c12_i32_162 = arith.constant 12 : i32
    %c0_i32_163 = arith.constant 0 : i32
    %210 = tpu.memref_slice %arg8[%c12_i32_162, %c0_i32_163] : memref<32x64xf32, #tpu.memory_space<vmem>> -> memref<1x64xf32, #tpu.memory_space<vmem>>
    %211 = tpu.memref_slice %arg9[%c0_i32_160, %c12_i32] : memref<2x16x!tpu.dma_semaphore, #tpu.memory_space<semaphore_mem>> -> memref<1x1x!tpu.dma_semaphore, #tpu.memory_space<semaphore_mem>>
    %212 = tpu.memref_squeeze %211 : memref<1x1x!tpu.dma_semaphore, #tpu.memory_space<semaphore_mem>> -> memref<!tpu.dma_semaphore, #tpu.memory_space<semaphore_mem>>
    tpu.enqueue_dma source(%209 : memref<1x64xf32, #tpu.memory_space<any>>) target(%210 : memref<1x64xf32, #tpu.memory_space<vmem>>) target_semaphore(%212 : memref<!tpu.dma_semaphore, #tpu.memory_space<semaphore_mem>>)
    %c0_i32_164 = arith.constant 0 : i32
    %c13_i32 = arith.constant 13 : i32
    %c0_i32_165 = arith.constant 0 : i32
    %213 = tpu.memref_slice %arg2[%70, %c0_i32_165] : memref<100x64xf32, #tpu.memory_space<any>> -> memref<1x64xf32, #tpu.memory_space<any>>
    %c13_i32_166 = arith.constant 13 : i32
    %c0_i32_167 = arith.constant 0 : i32
    %214 = tpu.memref_slice %arg8[%c13_i32_166, %c0_i32_167] : memref<32x64xf32, #tpu.memory_space<vmem>> -> memref<1x64xf32, #tpu.memory_space<vmem>>
    %215 = tpu.memref_slice %arg9[%c0_i32_164, %c13_i32] : memref<2x16x!tpu.dma_semaphore, #tpu.memory_space<semaphore_mem>> -> memref<1x1x!tpu.dma_semaphore, #tpu.memory_space<semaphore_mem>>
    %216 = tpu.memref_squeeze %215 : memref<1x1x!tpu.dma_semaphore, #tpu.memory_space<semaphore_mem>> -> memref<!tpu.dma_semaphore, #tpu.memory_space<semaphore_mem>>
    tpu.enqueue_dma source(%213 : memref<1x64xf32, #tpu.memory_space<any>>) target(%214 : memref<1x64xf32, #tpu.memory_space<vmem>>) target_semaphore(%216 : memref<!tpu.dma_semaphore, #tpu.memory_space<semaphore_mem>>)
    %c0_i32_168 = arith.constant 0 : i32
    %c14_i32 = arith.constant 14 : i32
    %c0_i32_169 = arith.constant 0 : i32
    %217 = tpu.memref_slice %arg2[%75, %c0_i32_169] : memref<100x64xf32, #tpu.memory_space<any>> -> memref<1x64xf32, #tpu.memory_space<any>>
    %c14_i32_170 = arith.constant 14 : i32
    %c0_i32_171 = arith.constant 0 : i32
    %218 = tpu.memref_slice %arg8[%c14_i32_170, %c0_i32_171] : memref<32x64xf32, #tpu.memory_space<vmem>> -> memref<1x64xf32, #tpu.memory_space<vmem>>
    %219 = tpu.memref_slice %arg9[%c0_i32_168, %c14_i32] : memref<2x16x!tpu.dma_semaphore, #tpu.memory_space<semaphore_mem>> -> memref<1x1x!tpu.dma_semaphore, #tpu.memory_space<semaphore_mem>>
    %220 = tpu.memref_squeeze %219 : memref<1x1x!tpu.dma_semaphore, #tpu.memory_space<semaphore_mem>> -> memref<!tpu.dma_semaphore, #tpu.memory_space<semaphore_mem>>
    tpu.enqueue_dma source(%217 : memref<1x64xf32, #tpu.memory_space<any>>) target(%218 : memref<1x64xf32, #tpu.memory_space<vmem>>) target_semaphore(%220 : memref<!tpu.dma_semaphore, #tpu.memory_space<semaphore_mem>>)
    %c0_i32_172 = arith.constant 0 : i32
    %c15_i32 = arith.constant 15 : i32
    %c0_i32_173 = arith.constant 0 : i32
    %221 = tpu.memref_slice %arg2[%80, %c0_i32_173] : memref<100x64xf32, #tpu.memory_space<any>> -> memref<1x64xf32, #tpu.memory_space<any>>
    %c15_i32_174 = arith.constant 15 : i32
    %c0_i32_175 = arith.constant 0 : i32
    %222 = tpu.memref_slice %arg8[%c15_i32_174, %c0_i32_175] : memref<32x64xf32, #tpu.memory_space<vmem>> -> memref<1x64xf32, #tpu.memory_space<vmem>>
    %223 = tpu.memref_slice %arg9[%c0_i32_172, %c15_i32] : memref<2x16x!tpu.dma_semaphore, #tpu.memory_space<semaphore_mem>> -> memref<1x1x!tpu.dma_semaphore, #tpu.memory_space<semaphore_mem>>
    %224 = tpu.memref_squeeze %223 : memref<1x1x!tpu.dma_semaphore, #tpu.memory_space<semaphore_mem>> -> memref<!tpu.dma_semaphore, #tpu.memory_space<semaphore_mem>>
    tpu.enqueue_dma source(%221 : memref<1x64xf32, #tpu.memory_space<any>>) target(%222 : memref<1x64xf32, #tpu.memory_space<vmem>>) target_semaphore(%224 : memref<!tpu.dma_semaphore, #tpu.memory_space<semaphore_mem>>)
    %c1_i32_176 = arith.constant 1 : i32
    %c0_i32_177 = arith.constant 0 : i32
    %c0_i32_178 = arith.constant 0 : i32
    %225 = tpu.memref_slice %arg2[%85, %c0_i32_178] : memref<100x64xf32, #tpu.memory_space<any>> -> memref<1x64xf32, #tpu.memory_space<any>>
    %c16_i32 = arith.constant 16 : i32
    %c0_i32_179 = arith.constant 0 : i32
    %226 = tpu.memref_slice %arg8[%c16_i32, %c0_i32_179] : memref<32x64xf32, #tpu.memory_space<vmem>> -> memref<1x64xf32, #tpu.memory_space<vmem>>
    %227 = tpu.memref_slice %arg9[%c1_i32_176, %c0_i32_177] : memref<2x16x!tpu.dma_semaphore, #tpu.memory_space<semaphore_mem>> -> memref<1x1x!tpu.dma_semaphore, #tpu.memory_space<semaphore_mem>>
    %228 = tpu.memref_squeeze %227 : memref<1x1x!tpu.dma_semaphore, #tpu.memory_space<semaphore_mem>> -> memref<!tpu.dma_semaphore, #tpu.memory_space<semaphore_mem>>
    tpu.enqueue_dma source(%225 : memref<1x64xf32, #tpu.memory_space<any>>) target(%226 : memref<1x64xf32, #tpu.memory_space<vmem>>) target_semaphore(%228 : memref<!tpu.dma_semaphore, #tpu.memory_space<semaphore_mem>>)
    %c1_i32_180 = arith.constant 1 : i32
    %c1_i32_181 = arith.constant 1 : i32
    %c0_i32_182 = arith.constant 0 : i32
    %229 = tpu.memref_slice %arg2[%90, %c0_i32_182] : memref<100x64xf32, #tpu.memory_space<any>> -> memref<1x64xf32, #tpu.memory_space<any>>
    %c17_i32 = arith.constant 17 : i32
    %c0_i32_183 = arith.constant 0 : i32
    %230 = tpu.memref_slice %arg8[%c17_i32, %c0_i32_183] : memref<32x64xf32, #tpu.memory_space<vmem>> -> memref<1x64xf32, #tpu.memory_space<vmem>>
    %231 = tpu.memref_slice %arg9[%c1_i32_180, %c1_i32_181] : memref<2x16x!tpu.dma_semaphore, #tpu.memory_space<semaphore_mem>> -> memref<1x1x!tpu.dma_semaphore, #tpu.memory_space<semaphore_mem>>
    %232 = tpu.memref_squeeze %231 : memref<1x1x!tpu.dma_semaphore, #tpu.memory_space<semaphore_mem>> -> memref<!tpu.dma_semaphore, #tpu.memory_space<semaphore_mem>>
    tpu.enqueue_dma source(%229 : memref<1x64xf32, #tpu.memory_space<any>>) target(%230 : memref<1x64xf32, #tpu.memory_space<vmem>>) target_semaphore(%232 : memref<!tpu.dma_semaphore, #tpu.memory_space<semaphore_mem>>)
    %c1_i32_184 = arith.constant 1 : i32
    %c2_i32_185 = arith.constant 2 : i32
    %c0_i32_186 = arith.constant 0 : i32
    %233 = tpu.memref_slice %arg2[%95, %c0_i32_186] : memref<100x64xf32, #tpu.memory_space<any>> -> memref<1x64xf32, #tpu.memory_space<any>>
    %c18_i32 = arith.constant 18 : i32
    %c0_i32_187 = arith.constant 0 : i32
    %234 = tpu.memref_slice %arg8[%c18_i32, %c0_i32_187] : memref<32x64xf32, #tpu.memory_space<vmem>> -> memref<1x64xf32, #tpu.memory_space<vmem>>
    %235 = tpu.memref_slice %arg9[%c1_i32_184, %c2_i32_185] : memref<2x16x!tpu.dma_semaphore, #tpu.memory_space<semaphore_mem>> -> memref<1x1x!tpu.dma_semaphore, #tpu.memory_space<semaphore_mem>>
    %236 = tpu.memref_squeeze %235 : memref<1x1x!tpu.dma_semaphore, #tpu.memory_space<semaphore_mem>> -> memref<!tpu.dma_semaphore, #tpu.memory_space<semaphore_mem>>
    tpu.enqueue_dma source(%233 : memref<1x64xf32, #tpu.memory_space<any>>) target(%234 : memref<1x64xf32, #tpu.memory_space<vmem>>) target_semaphore(%236 : memref<!tpu.dma_semaphore, #tpu.memory_space<semaphore_mem>>)
    %c1_i32_188 = arith.constant 1 : i32
    %c3_i32_189 = arith.constant 3 : i32
    %c0_i32_190 = arith.constant 0 : i32
    %237 = tpu.memref_slice %arg2[%100, %c0_i32_190] : memref<100x64xf32, #tpu.memory_space<any>> -> memref<1x64xf32, #tpu.memory_space<any>>
    %c19_i32 = arith.constant 19 : i32
    %c0_i32_191 = arith.constant 0 : i32
    %238 = tpu.memref_slice %arg8[%c19_i32, %c0_i32_191] : memref<32x64xf32, #tpu.memory_space<vmem>> -> memref<1x64xf32, #tpu.memory_space<vmem>>
    %239 = tpu.memref_slice %arg9[%c1_i32_188, %c3_i32_189] : memref<2x16x!tpu.dma_semaphore, #tpu.memory_space<semaphore_mem>> -> memref<1x1x!tpu.dma_semaphore, #tpu.memory_space<semaphore_mem>>
    %240 = tpu.memref_squeeze %239 : memref<1x1x!tpu.dma_semaphore, #tpu.memory_space<semaphore_mem>> -> memref<!tpu.dma_semaphore, #tpu.memory_space<semaphore_mem>>
    tpu.enqueue_dma source(%237 : memref<1x64xf32, #tpu.memory_space<any>>) target(%238 : memref<1x64xf32, #tpu.memory_space<vmem>>) target_semaphore(%240 : memref<!tpu.dma_semaphore, #tpu.memory_space<semaphore_mem>>)
    %c1_i32_192 = arith.constant 1 : i32
    %c4_i32_193 = arith.constant 4 : i32
    %c0_i32_194 = arith.constant 0 : i32
    %241 = tpu.memref_slice %arg2[%105, %c0_i32_194] : memref<100x64xf32, #tpu.memory_space<any>> -> memref<1x64xf32, #tpu.memory_space<any>>
    %c20_i32 = arith.constant 20 : i32
    %c0_i32_195 = arith.constant 0 : i32
    %242 = tpu.memref_slice %arg8[%c20_i32, %c0_i32_195] : memref<32x64xf32, #tpu.memory_space<vmem>> -> memref<1x64xf32, #tpu.memory_space<vmem>>
    %243 = tpu.memref_slice %arg9[%c1_i32_192, %c4_i32_193] : memref<2x16x!tpu.dma_semaphore, #tpu.memory_space<semaphore_mem>> -> memref<1x1x!tpu.dma_semaphore, #tpu.memory_space<semaphore_mem>>
    %244 = tpu.memref_squeeze %243 : memref<1x1x!tpu.dma_semaphore, #tpu.memory_space<semaphore_mem>> -> memref<!tpu.dma_semaphore, #tpu.memory_space<semaphore_mem>>
    tpu.enqueue_dma source(%241 : memref<1x64xf32, #tpu.memory_space<any>>) target(%242 : memref<1x64xf32, #tpu.memory_space<vmem>>) target_semaphore(%244 : memref<!tpu.dma_semaphore, #tpu.memory_space<semaphore_mem>>)
    %c1_i32_196 = arith.constant 1 : i32
    %c5_i32_197 = arith.constant 5 : i32
    %c0_i32_198 = arith.constant 0 : i32
    %245 = tpu.memref_slice %arg2[%110, %c0_i32_198] : memref<100x64xf32, #tpu.memory_space<any>> -> memref<1x64xf32, #tpu.memory_space<any>>
    %c21_i32 = arith.constant 21 : i32
    %c0_i32_199 = arith.constant 0 : i32
    %246 = tpu.memref_slice %arg8[%c21_i32, %c0_i32_199] : memref<32x64xf32, #tpu.memory_space<vmem>> -> memref<1x64xf32, #tpu.memory_space<vmem>>
    %247 = tpu.memref_slice %arg9[%c1_i32_196, %c5_i32_197] : memref<2x16x!tpu.dma_semaphore, #tpu.memory_space<semaphore_mem>> -> memref<1x1x!tpu.dma_semaphore, #tpu.memory_space<semaphore_mem>>
    %248 = tpu.memref_squeeze %247 : memref<1x1x!tpu.dma_semaphore, #tpu.memory_space<semaphore_mem>> -> memref<!tpu.dma_semaphore, #tpu.memory_space<semaphore_mem>>
    tpu.enqueue_dma source(%245 : memref<1x64xf32, #tpu.memory_space<any>>) target(%246 : memref<1x64xf32, #tpu.memory_space<vmem>>) target_semaphore(%248 : memref<!tpu.dma_semaphore, #tpu.memory_space<semaphore_mem>>)
    %c1_i32_200 = arith.constant 1 : i32
    %c6_i32_201 = arith.constant 6 : i32
    %c0_i32_202 = arith.constant 0 : i32
    %249 = tpu.memref_slice %arg2[%115, %c0_i32_202] : memref<100x64xf32, #tpu.memory_space<any>> -> memref<1x64xf32, #tpu.memory_space<any>>
    %c22_i32 = arith.constant 22 : i32
    %c0_i32_203 = arith.constant 0 : i32
    %250 = tpu.memref_slice %arg8[%c22_i32, %c0_i32_203] : memref<32x64xf32, #tpu.memory_space<vmem>> -> memref<1x64xf32, #tpu.memory_space<vmem>>
    %251 = tpu.memref_slice %arg9[%c1_i32_200, %c6_i32_201] : memref<2x16x!tpu.dma_semaphore, #tpu.memory_space<semaphore_mem>> -> memref<1x1x!tpu.dma_semaphore, #tpu.memory_space<semaphore_mem>>
    %252 = tpu.memref_squeeze %251 : memref<1x1x!tpu.dma_semaphore, #tpu.memory_space<semaphore_mem>> -> memref<!tpu.dma_semaphore, #tpu.memory_space<semaphore_mem>>
    tpu.enqueue_dma source(%249 : memref<1x64xf32, #tpu.memory_space<any>>) target(%250 : memref<1x64xf32, #tpu.memory_space<vmem>>) target_semaphore(%252 : memref<!tpu.dma_semaphore, #tpu.memory_space<semaphore_mem>>)
    %c1_i32_204 = arith.constant 1 : i32
    %c7_i32_205 = arith.constant 7 : i32
    %c0_i32_206 = arith.constant 0 : i32
    %253 = tpu.memref_slice %arg2[%120, %c0_i32_206] : memref<100x64xf32, #tpu.memory_space<any>> -> memref<1x64xf32, #tpu.memory_space<any>>
    %c23_i32 = arith.constant 23 : i32
    %c0_i32_207 = arith.constant 0 : i32
    %254 = tpu.memref_slice %arg8[%c23_i32, %c0_i32_207] : memref<32x64xf32, #tpu.memory_space<vmem>> -> memref<1x64xf32, #tpu.memory_space<vmem>>
    %255 = tpu.memref_slice %arg9[%c1_i32_204, %c7_i32_205] : memref<2x16x!tpu.dma_semaphore, #tpu.memory_space<semaphore_mem>> -> memref<1x1x!tpu.dma_semaphore, #tpu.memory_space<semaphore_mem>>
    %256 = tpu.memref_squeeze %255 : memref<1x1x!tpu.dma_semaphore, #tpu.memory_space<semaphore_mem>> -> memref<!tpu.dma_semaphore, #tpu.memory_space<semaphore_mem>>
    tpu.enqueue_dma source(%253 : memref<1x64xf32, #tpu.memory_space<any>>) target(%254 : memref<1x64xf32, #tpu.memory_space<vmem>>) target_semaphore(%256 : memref<!tpu.dma_semaphore, #tpu.memory_space<semaphore_mem>>)
    %c1_i32_208 = arith.constant 1 : i32
    %c8_i32_209 = arith.constant 8 : i32
    %c0_i32_210 = arith.constant 0 : i32
    %257 = tpu.memref_slice %arg2[%125, %c0_i32_210] : memref<100x64xf32, #tpu.memory_space<any>> -> memref<1x64xf32, #tpu.memory_space<any>>
    %c24_i32 = arith.constant 24 : i32
    %c0_i32_211 = arith.constant 0 : i32
    %258 = tpu.memref_slice %arg8[%c24_i32, %c0_i32_211] : memref<32x64xf32, #tpu.memory_space<vmem>> -> memref<1x64xf32, #tpu.memory_space<vmem>>
    %259 = tpu.memref_slice %arg9[%c1_i32_208, %c8_i32_209] : memref<2x16x!tpu.dma_semaphore, #tpu.memory_space<semaphore_mem>> -> memref<1x1x!tpu.dma_semaphore, #tpu.memory_space<semaphore_mem>>
    %260 = tpu.memref_squeeze %259 : memref<1x1x!tpu.dma_semaphore, #tpu.memory_space<semaphore_mem>> -> memref<!tpu.dma_semaphore, #tpu.memory_space<semaphore_mem>>
    tpu.enqueue_dma source(%257 : memref<1x64xf32, #tpu.memory_space<any>>) target(%258 : memref<1x64xf32, #tpu.memory_space<vmem>>) target_semaphore(%260 : memref<!tpu.dma_semaphore, #tpu.memory_space<semaphore_mem>>)
    %c1_i32_212 = arith.constant 1 : i32
    %c9_i32_213 = arith.constant 9 : i32
    %c0_i32_214 = arith.constant 0 : i32
    %261 = tpu.memref_slice %arg2[%130, %c0_i32_214] : memref<100x64xf32, #tpu.memory_space<any>> -> memref<1x64xf32, #tpu.memory_space<any>>
    %c25_i32 = arith.constant 25 : i32
    %c0_i32_215 = arith.constant 0 : i32
    %262 = tpu.memref_slice %arg8[%c25_i32, %c0_i32_215] : memref<32x64xf32, #tpu.memory_space<vmem>> -> memref<1x64xf32, #tpu.memory_space<vmem>>
    %263 = tpu.memref_slice %arg9[%c1_i32_212, %c9_i32_213] : memref<2x16x!tpu.dma_semaphore, #tpu.memory_space<semaphore_mem>> -> memref<1x1x!tpu.dma_semaphore, #tpu.memory_space<semaphore_mem>>
    %264 = tpu.memref_squeeze %263 : memref<1x1x!tpu.dma_semaphore, #tpu.memory_space<semaphore_mem>> -> memref<!tpu.dma_semaphore, #tpu.memory_space<semaphore_mem>>
    tpu.enqueue_dma source(%261 : memref<1x64xf32, #tpu.memory_space<any>>) target(%262 : memref<1x64xf32, #tpu.memory_space<vmem>>) target_semaphore(%264 : memref<!tpu.dma_semaphore, #tpu.memory_space<semaphore_mem>>)
    %c1_i32_216 = arith.constant 1 : i32
    %c10_i32_217 = arith.constant 10 : i32
    %c0_i32_218 = arith.constant 0 : i32
    %265 = tpu.memref_slice %arg2[%135, %c0_i32_218] : memref<100x64xf32, #tpu.memory_space<any>> -> memref<1x64xf32, #tpu.memory_space<any>>
    %c26_i32 = arith.constant 26 : i32
    %c0_i32_219 = arith.constant 0 : i32
    %266 = tpu.memref_slice %arg8[%c26_i32, %c0_i32_219] : memref<32x64xf32, #tpu.memory_space<vmem>> -> memref<1x64xf32, #tpu.memory_space<vmem>>
    %267 = tpu.memref_slice %arg9[%c1_i32_216, %c10_i32_217] : memref<2x16x!tpu.dma_semaphore, #tpu.memory_space<semaphore_mem>> -> memref<1x1x!tpu.dma_semaphore, #tpu.memory_space<semaphore_mem>>
    %268 = tpu.memref_squeeze %267 : memref<1x1x!tpu.dma_semaphore, #tpu.memory_space<semaphore_mem>> -> memref<!tpu.dma_semaphore, #tpu.memory_space<semaphore_mem>>
    tpu.enqueue_dma source(%265 : memref<1x64xf32, #tpu.memory_space<any>>) target(%266 : memref<1x64xf32, #tpu.memory_space<vmem>>) target_semaphore(%268 : memref<!tpu.dma_semaphore, #tpu.memory_space<semaphore_mem>>)
    %c1_i32_220 = arith.constant 1 : i32
    %c11_i32_221 = arith.constant 11 : i32
    %c0_i32_222 = arith.constant 0 : i32
    %269 = tpu.memref_slice %arg2[%140, %c0_i32_222] : memref<100x64xf32, #tpu.memory_space<any>> -> memref<1x64xf32, #tpu.memory_space<any>>
    %c27_i32 = arith.constant 27 : i32
    %c0_i32_223 = arith.constant 0 : i32
    %270 = tpu.memref_slice %arg8[%c27_i32, %c0_i32_223] : memref<32x64xf32, #tpu.memory_space<vmem>> -> memref<1x64xf32, #tpu.memory_space<vmem>>
    %271 = tpu.memref_slice %arg9[%c1_i32_220, %c11_i32_221] : memref<2x16x!tpu.dma_semaphore, #tpu.memory_space<semaphore_mem>> -> memref<1x1x!tpu.dma_semaphore, #tpu.memory_space<semaphore_mem>>
    %272 = tpu.memref_squeeze %271 : memref<1x1x!tpu.dma_semaphore, #tpu.memory_space<semaphore_mem>> -> memref<!tpu.dma_semaphore, #tpu.memory_space<semaphore_mem>>
    tpu.enqueue_dma source(%269 : memref<1x64xf32, #tpu.memory_space<any>>) target(%270 : memref<1x64xf32, #tpu.memory_space<vmem>>) target_semaphore(%272 : memref<!tpu.dma_semaphore, #tpu.memory_space<semaphore_mem>>)
    %c1_i32_224 = arith.constant 1 : i32
    %c12_i32_225 = arith.constant 12 : i32
    %c0_i32_226 = arith.constant 0 : i32
    %273 = tpu.memref_slice %arg2[%145, %c0_i32_226] : memref<100x64xf32, #tpu.memory_space<any>> -> memref<1x64xf32, #tpu.memory_space<any>>
    %c28_i32 = arith.constant 28 : i32
    %c0_i32_227 = arith.constant 0 : i32
    %274 = tpu.memref_slice %arg8[%c28_i32, %c0_i32_227] : memref<32x64xf32, #tpu.memory_space<vmem>> -> memref<1x64xf32, #tpu.memory_space<vmem>>
    %275 = tpu.memref_slice %arg9[%c1_i32_224, %c12_i32_225] : memref<2x16x!tpu.dma_semaphore, #tpu.memory_space<semaphore_mem>> -> memref<1x1x!tpu.dma_semaphore, #tpu.memory_space<semaphore_mem>>
    %276 = tpu.memref_squeeze %275 : memref<1x1x!tpu.dma_semaphore, #tpu.memory_space<semaphore_mem>> -> memref<!tpu.dma_semaphore, #tpu.memory_space<semaphore_mem>>
    tpu.enqueue_dma source(%273 : memref<1x64xf32, #tpu.memory_space<any>>) target(%274 : memref<1x64xf32, #tpu.memory_space<vmem>>) target_semaphore(%276 : memref<!tpu.dma_semaphore, #tpu.memory_space<semaphore_mem>>)
    %c1_i32_228 = arith.constant 1 : i32
    %c13_i32_229 = arith.constant 13 : i32
    %c0_i32_230 = arith.constant 0 : i32
    %277 = tpu.memref_slice %arg2[%150, %c0_i32_230] : memref<100x64xf32, #tpu.memory_space<any>> -> memref<1x64xf32, #tpu.memory_space<any>>
    %c29_i32 = arith.constant 29 : i32
    %c0_i32_231 = arith.constant 0 : i32
    %278 = tpu.memref_slice %arg8[%c29_i32, %c0_i32_231] : memref<32x64xf32, #tpu.memory_space<vmem>> -> memref<1x64xf32, #tpu.memory_space<vmem>>
    %279 = tpu.memref_slice %arg9[%c1_i32_228, %c13_i32_229] : memref<2x16x!tpu.dma_semaphore, #tpu.memory_space<semaphore_mem>> -> memref<1x1x!tpu.dma_semaphore, #tpu.memory_space<semaphore_mem>>
    %280 = tpu.memref_squeeze %279 : memref<1x1x!tpu.dma_semaphore, #tpu.memory_space<semaphore_mem>> -> memref<!tpu.dma_semaphore, #tpu.memory_space<semaphore_mem>>
    tpu.enqueue_dma source(%277 : memref<1x64xf32, #tpu.memory_space<any>>) target(%278 : memref<1x64xf32, #tpu.memory_space<vmem>>) target_semaphore(%280 : memref<!tpu.dma_semaphore, #tpu.memory_space<semaphore_mem>>)
    %c1_i32_232 = arith.constant 1 : i32
    %c14_i32_233 = arith.constant 14 : i32
    %c0_i32_234 = arith.constant 0 : i32
    %281 = tpu.memref_slice %arg2[%155, %c0_i32_234] : memref<100x64xf32, #tpu.memory_space<any>> -> memref<1x64xf32, #tpu.memory_space<any>>
    %c30_i32 = arith.constant 30 : i32
    %c0_i32_235 = arith.constant 0 : i32
    %282 = tpu.memref_slice %arg8[%c30_i32, %c0_i32_235] : memref<32x64xf32, #tpu.memory_space<vmem>> -> memref<1x64xf32, #tpu.memory_space<vmem>>
    %283 = tpu.memref_slice %arg9[%c1_i32_232, %c14_i32_233] : memref<2x16x!tpu.dma_semaphore, #tpu.memory_space<semaphore_mem>> -> memref<1x1x!tpu.dma_semaphore, #tpu.memory_space<semaphore_mem>>
    %284 = tpu.memref_squeeze %283 : memref<1x1x!tpu.dma_semaphore, #tpu.memory_space<semaphore_mem>> -> memref<!tpu.dma_semaphore, #tpu.memory_space<semaphore_mem>>
    tpu.enqueue_dma source(%281 : memref<1x64xf32, #tpu.memory_space<any>>) target(%282 : memref<1x64xf32, #tpu.memory_space<vmem>>) target_semaphore(%284 : memref<!tpu.dma_semaphore, #tpu.memory_space<semaphore_mem>>)
    %c1_i32_236 = arith.constant 1 : i32
    %c15_i32_237 = arith.constant 15 : i32
    %c0_i32_238 = arith.constant 0 : i32
    %285 = tpu.memref_slice %arg2[%160, %c0_i32_238] : memref<100x64xf32, #tpu.memory_space<any>> -> memref<1x64xf32, #tpu.memory_space<any>>
    %c31_i32 = arith.constant 31 : i32
    %c0_i32_239 = arith.constant 0 : i32
    %286 = tpu.memref_slice %arg8[%c31_i32, %c0_i32_239] : memref<32x64xf32, #tpu.memory_space<vmem>> -> memref<1x64xf32, #tpu.memory_space<vmem>>
    %287 = tpu.memref_slice %arg9[%c1_i32_236, %c15_i32_237] : memref<2x16x!tpu.dma_semaphore, #tpu.memory_space<semaphore_mem>> -> memref<1x1x!tpu.dma_semaphore, #tpu.memory_space<semaphore_mem>>
    %288 = tpu.memref_squeeze %287 : memref<1x1x!tpu.dma_semaphore, #tpu.memory_space<semaphore_mem>> -> memref<!tpu.dma_semaphore, #tpu.memory_space<semaphore_mem>>
    tpu.enqueue_dma source(%285 : memref<1x64xf32, #tpu.memory_space<any>>) target(%286 : memref<1x64xf32, #tpu.memory_space<vmem>>) target_semaphore(%288 : memref<!tpu.dma_semaphore, #tpu.memory_space<semaphore_mem>>)
    %c0_i32_240 = arith.constant 0 : i32
    %c0_i32_241 = arith.constant 0 : i32
    %c0_i32_242 = arith.constant 0 : i32
    %289 = tpu.memref_slice %arg2[%5, %c0_i32_242] : memref<100x64xf32, #tpu.memory_space<any>> -> memref<1x64xf32, #tpu.memory_space<any>>
    %c0_i32_243 = arith.constant 0 : i32
    %c0_i32_244 = arith.constant 0 : i32
    %290 = tpu.memref_slice %arg8[%c0_i32_243, %c0_i32_244] : memref<32x64xf32, #tpu.memory_space<vmem>> -> memref<1x64xf32, #tpu.memory_space<vmem>>
    %291 = tpu.memref_slice %arg9[%c0_i32_240, %c0_i32_241] : memref<2x16x!tpu.dma_semaphore, #tpu.memory_space<semaphore_mem>> -> memref<1x1x!tpu.dma_semaphore, #tpu.memory_space<semaphore_mem>>
    %292 = tpu.memref_squeeze %291 : memref<1x1x!tpu.dma_semaphore, #tpu.memory_space<semaphore_mem>> -> memref<!tpu.dma_semaphore, #tpu.memory_space<semaphore_mem>>
    tpu.wait_dma2 semaphore(%292 : memref<!tpu.dma_semaphore, #tpu.memory_space<semaphore_mem>>) src(%289 : memref<1x64xf32, #tpu.memory_space<any>>) dst(%290 : memref<1x64xf32, #tpu.memory_space<vmem>>)
    %c0_i32_245 = arith.constant 0 : i32
    %c1_i32_246 = arith.constant 1 : i32
    %c0_i32_247 = arith.constant 0 : i32
    %293 = tpu.memref_slice %arg2[%10, %c0_i32_247] : memref<100x64xf32, #tpu.memory_space<any>> -> memref<1x64xf32, #tpu.memory_space<any>>
    %c1_i32_248 = arith.constant 1 : i32
    %c0_i32_249 = arith.constant 0 : i32
    %294 = tpu.memref_slice %arg8[%c1_i32_248, %c0_i32_249] : memref<32x64xf32, #tpu.memory_space<vmem>> -> memref<1x64xf32, #tpu.memory_space<vmem>>
    %295 = tpu.memref_slice %arg9[%c0_i32_245, %c1_i32_246] : memref<2x16x!tpu.dma_semaphore, #tpu.memory_space<semaphore_mem>> -> memref<1x1x!tpu.dma_semaphore, #tpu.memory_space<semaphore_mem>>
    %296 = tpu.memref_squeeze %295 : memref<1x1x!tpu.dma_semaphore, #tpu.memory_space<semaphore_mem>> -> memref<!tpu.dma_semaphore, #tpu.memory_space<semaphore_mem>>
    tpu.wait_dma2 semaphore(%296 : memref<!tpu.dma_semaphore, #tpu.memory_space<semaphore_mem>>) src(%293 : memref<1x64xf32, #tpu.memory_space<any>>) dst(%294 : memref<1x64xf32, #tpu.memory_space<vmem>>)
    %c0_i32_250 = arith.constant 0 : i32
    %c2_i32_251 = arith.constant 2 : i32
    %c0_i32_252 = arith.constant 0 : i32
    %297 = tpu.memref_slice %arg2[%15, %c0_i32_252] : memref<100x64xf32, #tpu.memory_space<any>> -> memref<1x64xf32, #tpu.memory_space<any>>
    %c2_i32_253 = arith.constant 2 : i32
    %c0_i32_254 = arith.constant 0 : i32
    %298 = tpu.memref_slice %arg8[%c2_i32_253, %c0_i32_254] : memref<32x64xf32, #tpu.memory_space<vmem>> -> memref<1x64xf32, #tpu.memory_space<vmem>>
    %299 = tpu.memref_slice %arg9[%c0_i32_250, %c2_i32_251] : memref<2x16x!tpu.dma_semaphore, #tpu.memory_space<semaphore_mem>> -> memref<1x1x!tpu.dma_semaphore, #tpu.memory_space<semaphore_mem>>
    %300 = tpu.memref_squeeze %299 : memref<1x1x!tpu.dma_semaphore, #tpu.memory_space<semaphore_mem>> -> memref<!tpu.dma_semaphore, #tpu.memory_space<semaphore_mem>>
    tpu.wait_dma2 semaphore(%300 : memref<!tpu.dma_semaphore, #tpu.memory_space<semaphore_mem>>) src(%297 : memref<1x64xf32, #tpu.memory_space<any>>) dst(%298 : memref<1x64xf32, #tpu.memory_space<vmem>>)
    %c0_i32_255 = arith.constant 0 : i32
    %c3_i32_256 = arith.constant 3 : i32
    %c0_i32_257 = arith.constant 0 : i32
    %301 = tpu.memref_slice %arg2[%20, %c0_i32_257] : memref<100x64xf32, #tpu.memory_space<any>> -> memref<1x64xf32, #tpu.memory_space<any>>
    %c3_i32_258 = arith.constant 3 : i32
    %c0_i32_259 = arith.constant 0 : i32
    %302 = tpu.memref_slice %arg8[%c3_i32_258, %c0_i32_259] : memref<32x64xf32, #tpu.memory_space<vmem>> -> memref<1x64xf32, #tpu.memory_space<vmem>>
    %303 = tpu.memref_slice %arg9[%c0_i32_255, %c3_i32_256] : memref<2x16x!tpu.dma_semaphore, #tpu.memory_space<semaphore_mem>> -> memref<1x1x!tpu.dma_semaphore, #tpu.memory_space<semaphore_mem>>
    %304 = tpu.memref_squeeze %303 : memref<1x1x!tpu.dma_semaphore, #tpu.memory_space<semaphore_mem>> -> memref<!tpu.dma_semaphore, #tpu.memory_space<semaphore_mem>>
    tpu.wait_dma2 semaphore(%304 : memref<!tpu.dma_semaphore, #tpu.memory_space<semaphore_mem>>) src(%301 : memref<1x64xf32, #tpu.memory_space<any>>) dst(%302 : memref<1x64xf32, #tpu.memory_space<vmem>>)
    %c0_i32_260 = arith.constant 0 : i32
    %c4_i32_261 = arith.constant 4 : i32
    %c0_i32_262 = arith.constant 0 : i32
    %305 = tpu.memref_slice %arg2[%25, %c0_i32_262] : memref<100x64xf32, #tpu.memory_space<any>> -> memref<1x64xf32, #tpu.memory_space<any>>
    %c4_i32_263 = arith.constant 4 : i32
    %c0_i32_264 = arith.constant 0 : i32
    %306 = tpu.memref_slice %arg8[%c4_i32_263, %c0_i32_264] : memref<32x64xf32, #tpu.memory_space<vmem>> -> memref<1x64xf32, #tpu.memory_space<vmem>>
    %307 = tpu.memref_slice %arg9[%c0_i32_260, %c4_i32_261] : memref<2x16x!tpu.dma_semaphore, #tpu.memory_space<semaphore_mem>> -> memref<1x1x!tpu.dma_semaphore, #tpu.memory_space<semaphore_mem>>
    %308 = tpu.memref_squeeze %307 : memref<1x1x!tpu.dma_semaphore, #tpu.memory_space<semaphore_mem>> -> memref<!tpu.dma_semaphore, #tpu.memory_space<semaphore_mem>>
    tpu.wait_dma2 semaphore(%308 : memref<!tpu.dma_semaphore, #tpu.memory_space<semaphore_mem>>) src(%305 : memref<1x64xf32, #tpu.memory_space<any>>) dst(%306 : memref<1x64xf32, #tpu.memory_space<vmem>>)
    %c0_i32_265 = arith.constant 0 : i32
    %c5_i32_266 = arith.constant 5 : i32
    %c0_i32_267 = arith.constant 0 : i32
    %309 = tpu.memref_slice %arg2[%30, %c0_i32_267] : memref<100x64xf32, #tpu.memory_space<any>> -> memref<1x64xf32, #tpu.memory_space<any>>
    %c5_i32_268 = arith.constant 5 : i32
    %c0_i32_269 = arith.constant 0 : i32
    %310 = tpu.memref_slice %arg8[%c5_i32_268, %c0_i32_269] : memref<32x64xf32, #tpu.memory_space<vmem>> -> memref<1x64xf32, #tpu.memory_space<vmem>>
    %311 = tpu.memref_slice %arg9[%c0_i32_265, %c5_i32_266] : memref<2x16x!tpu.dma_semaphore, #tpu.memory_space<semaphore_mem>> -> memref<1x1x!tpu.dma_semaphore, #tpu.memory_space<semaphore_mem>>
    %312 = tpu.memref_squeeze %311 : memref<1x1x!tpu.dma_semaphore, #tpu.memory_space<semaphore_mem>> -> memref<!tpu.dma_semaphore, #tpu.memory_space<semaphore_mem>>
    tpu.wait_dma2 semaphore(%312 : memref<!tpu.dma_semaphore, #tpu.memory_space<semaphore_mem>>) src(%309 : memref<1x64xf32, #tpu.memory_space<any>>) dst(%310 : memref<1x64xf32, #tpu.memory_space<vmem>>)
    %c0_i32_270 = arith.constant 0 : i32
    %c6_i32_271 = arith.constant 6 : i32
    %c0_i32_272 = arith.constant 0 : i32
    %313 = tpu.memref_slice %arg2[%35, %c0_i32_272] : memref<100x64xf32, #tpu.memory_space<any>> -> memref<1x64xf32, #tpu.memory_space<any>>
    %c6_i32_273 = arith.constant 6 : i32
    %c0_i32_274 = arith.constant 0 : i32
    %314 = tpu.memref_slice %arg8[%c6_i32_273, %c0_i32_274] : memref<32x64xf32, #tpu.memory_space<vmem>> -> memref<1x64xf32, #tpu.memory_space<vmem>>
    %315 = tpu.memref_slice %arg9[%c0_i32_270, %c6_i32_271] : memref<2x16x!tpu.dma_semaphore, #tpu.memory_space<semaphore_mem>> -> memref<1x1x!tpu.dma_semaphore, #tpu.memory_space<semaphore_mem>>
    %316 = tpu.memref_squeeze %315 : memref<1x1x!tpu.dma_semaphore, #tpu.memory_space<semaphore_mem>> -> memref<!tpu.dma_semaphore, #tpu.memory_space<semaphore_mem>>
    tpu.wait_dma2 semaphore(%316 : memref<!tpu.dma_semaphore, #tpu.memory_space<semaphore_mem>>) src(%313 : memref<1x64xf32, #tpu.memory_space<any>>) dst(%314 : memref<1x64xf32, #tpu.memory_space<vmem>>)
    %c0_i32_275 = arith.constant 0 : i32
    %c7_i32_276 = arith.constant 7 : i32
    %c0_i32_277 = arith.constant 0 : i32
    %317 = tpu.memref_slice %arg2[%40, %c0_i32_277] : memref<100x64xf32, #tpu.memory_space<any>> -> memref<1x64xf32, #tpu.memory_space<any>>
    %c7_i32_278 = arith.constant 7 : i32
    %c0_i32_279 = arith.constant 0 : i32
    %318 = tpu.memref_slice %arg8[%c7_i32_278, %c0_i32_279] : memref<32x64xf32, #tpu.memory_space<vmem>> -> memref<1x64xf32, #tpu.memory_space<vmem>>
    %319 = tpu.memref_slice %arg9[%c0_i32_275, %c7_i32_276] : memref<2x16x!tpu.dma_semaphore, #tpu.memory_space<semaphore_mem>> -> memref<1x1x!tpu.dma_semaphore, #tpu.memory_space<semaphore_mem>>
    %320 = tpu.memref_squeeze %319 : memref<1x1x!tpu.dma_semaphore, #tpu.memory_space<semaphore_mem>> -> memref<!tpu.dma_semaphore, #tpu.memory_space<semaphore_mem>>
    tpu.wait_dma2 semaphore(%320 : memref<!tpu.dma_semaphore, #tpu.memory_space<semaphore_mem>>) src(%317 : memref<1x64xf32, #tpu.memory_space<any>>) dst(%318 : memref<1x64xf32, #tpu.memory_space<vmem>>)
    %c0_i32_280 = arith.constant 0 : i32
    %c8_i32_281 = arith.constant 8 : i32
    %c0_i32_282 = arith.constant 0 : i32
    %321 = tpu.memref_slice %arg2[%45, %c0_i32_282] : memref<100x64xf32, #tpu.memory_space<any>> -> memref<1x64xf32, #tpu.memory_space<any>>
    %c8_i32_283 = arith.constant 8 : i32
    %c0_i32_284 = arith.constant 0 : i32
    %322 = tpu.memref_slice %arg8[%c8_i32_283, %c0_i32_284] : memref<32x64xf32, #tpu.memory_space<vmem>> -> memref<1x64xf32, #tpu.memory_space<vmem>>
    %323 = tpu.memref_slice %arg9[%c0_i32_280, %c8_i32_281] : memref<2x16x!tpu.dma_semaphore, #tpu.memory_space<semaphore_mem>> -> memref<1x1x!tpu.dma_semaphore, #tpu.memory_space<semaphore_mem>>
    %324 = tpu.memref_squeeze %323 : memref<1x1x!tpu.dma_semaphore, #tpu.memory_space<semaphore_mem>> -> memref<!tpu.dma_semaphore, #tpu.memory_space<semaphore_mem>>
    tpu.wait_dma2 semaphore(%324 : memref<!tpu.dma_semaphore, #tpu.memory_space<semaphore_mem>>) src(%321 : memref<1x64xf32, #tpu.memory_space<any>>) dst(%322 : memref<1x64xf32, #tpu.memory_space<vmem>>)
    %c0_i32_285 = arith.constant 0 : i32
    %c9_i32_286 = arith.constant 9 : i32
    %c0_i32_287 = arith.constant 0 : i32
    %325 = tpu.memref_slice %arg2[%50, %c0_i32_287] : memref<100x64xf32, #tpu.memory_space<any>> -> memref<1x64xf32, #tpu.memory_space<any>>
    %c9_i32_288 = arith.constant 9 : i32
    %c0_i32_289 = arith.constant 0 : i32
    %326 = tpu.memref_slice %arg8[%c9_i32_288, %c0_i32_289] : memref<32x64xf32, #tpu.memory_space<vmem>> -> memref<1x64xf32, #tpu.memory_space<vmem>>
    %327 = tpu.memref_slice %arg9[%c0_i32_285, %c9_i32_286] : memref<2x16x!tpu.dma_semaphore, #tpu.memory_space<semaphore_mem>> -> memref<1x1x!tpu.dma_semaphore, #tpu.memory_space<semaphore_mem>>
    %328 = tpu.memref_squeeze %327 : memref<1x1x!tpu.dma_semaphore, #tpu.memory_space<semaphore_mem>> -> memref<!tpu.dma_semaphore, #tpu.memory_space<semaphore_mem>>
    tpu.wait_dma2 semaphore(%328 : memref<!tpu.dma_semaphore, #tpu.memory_space<semaphore_mem>>) src(%325 : memref<1x64xf32, #tpu.memory_space<any>>) dst(%326 : memref<1x64xf32, #tpu.memory_space<vmem>>)
    %c0_i32_290 = arith.constant 0 : i32
    %c10_i32_291 = arith.constant 10 : i32
    %c0_i32_292 = arith.constant 0 : i32
    %329 = tpu.memref_slice %arg2[%55, %c0_i32_292] : memref<100x64xf32, #tpu.memory_space<any>> -> memref<1x64xf32, #tpu.memory_space<any>>
    %c10_i32_293 = arith.constant 10 : i32
    %c0_i32_294 = arith.constant 0 : i32
    %330 = tpu.memref_slice %arg8[%c10_i32_293, %c0_i32_294] : memref<32x64xf32, #tpu.memory_space<vmem>> -> memref<1x64xf32, #tpu.memory_space<vmem>>
    %331 = tpu.memref_slice %arg9[%c0_i32_290, %c10_i32_291] : memref<2x16x!tpu.dma_semaphore, #tpu.memory_space<semaphore_mem>> -> memref<1x1x!tpu.dma_semaphore, #tpu.memory_space<semaphore_mem>>
    %332 = tpu.memref_squeeze %331 : memref<1x1x!tpu.dma_semaphore, #tpu.memory_space<semaphore_mem>> -> memref<!tpu.dma_semaphore, #tpu.memory_space<semaphore_mem>>
    tpu.wait_dma2 semaphore(%332 : memref<!tpu.dma_semaphore, #tpu.memory_space<semaphore_mem>>) src(%329 : memref<1x64xf32, #tpu.memory_space<any>>) dst(%330 : memref<1x64xf32, #tpu.memory_space<vmem>>)
    %c0_i32_295 = arith.constant 0 : i32
    %c11_i32_296 = arith.constant 11 : i32
    %c0_i32_297 = arith.constant 0 : i32
    %333 = tpu.memref_slice %arg2[%60, %c0_i32_297] : memref<100x64xf32, #tpu.memory_space<any>> -> memref<1x64xf32, #tpu.memory_space<any>>
    %c11_i32_298 = arith.constant 11 : i32
    %c0_i32_299 = arith.constant 0 : i32
    %334 = tpu.memref_slice %arg8[%c11_i32_298, %c0_i32_299] : memref<32x64xf32, #tpu.memory_space<vmem>> -> memref<1x64xf32, #tpu.memory_space<vmem>>
    %335 = tpu.memref_slice %arg9[%c0_i32_295, %c11_i32_296] : memref<2x16x!tpu.dma_semaphore, #tpu.memory_space<semaphore_mem>> -> memref<1x1x!tpu.dma_semaphore, #tpu.memory_space<semaphore_mem>>
    %336 = tpu.memref_squeeze %335 : memref<1x1x!tpu.dma_semaphore, #tpu.memory_space<semaphore_mem>> -> memref<!tpu.dma_semaphore, #tpu.memory_space<semaphore_mem>>
    tpu.wait_dma2 semaphore(%336 : memref<!tpu.dma_semaphore, #tpu.memory_space<semaphore_mem>>) src(%333 : memref<1x64xf32, #tpu.memory_space<any>>) dst(%334 : memref<1x64xf32, #tpu.memory_space<vmem>>)
    %c0_i32_300 = arith.constant 0 : i32
    %c12_i32_301 = arith.constant 12 : i32
    %c0_i32_302 = arith.constant 0 : i32
    %337 = tpu.memref_slice %arg2[%65, %c0_i32_302] : memref<100x64xf32, #tpu.memory_space<any>> -> memref<1x64xf32, #tpu.memory_space<any>>
    %c12_i32_303 = arith.constant 12 : i32
    %c0_i32_304 = arith.constant 0 : i32
    %338 = tpu.memref_slice %arg8[%c12_i32_303, %c0_i32_304] : memref<32x64xf32, #tpu.memory_space<vmem>> -> memref<1x64xf32, #tpu.memory_space<vmem>>
    %339 = tpu.memref_slice %arg9[%c0_i32_300, %c12_i32_301] : memref<2x16x!tpu.dma_semaphore, #tpu.memory_space<semaphore_mem>> -> memref<1x1x!tpu.dma_semaphore, #tpu.memory_space<semaphore_mem>>
    %340 = tpu.memref_squeeze %339 : memref<1x1x!tpu.dma_semaphore, #tpu.memory_space<semaphore_mem>> -> memref<!tpu.dma_semaphore, #tpu.memory_space<semaphore_mem>>
    tpu.wait_dma2 semaphore(%340 : memref<!tpu.dma_semaphore, #tpu.memory_space<semaphore_mem>>) src(%337 : memref<1x64xf32, #tpu.memory_space<any>>) dst(%338 : memref<1x64xf32, #tpu.memory_space<vmem>>)
    %c0_i32_305 = arith.constant 0 : i32
    %c13_i32_306 = arith.constant 13 : i32
    %c0_i32_307 = arith.constant 0 : i32
    %341 = tpu.memref_slice %arg2[%70, %c0_i32_307] : memref<100x64xf32, #tpu.memory_space<any>> -> memref<1x64xf32, #tpu.memory_space<any>>
    %c13_i32_308 = arith.constant 13 : i32
    %c0_i32_309 = arith.constant 0 : i32
    %342 = tpu.memref_slice %arg8[%c13_i32_308, %c0_i32_309] : memref<32x64xf32, #tpu.memory_space<vmem>> -> memref<1x64xf32, #tpu.memory_space<vmem>>
    %343 = tpu.memref_slice %arg9[%c0_i32_305, %c13_i32_306] : memref<2x16x!tpu.dma_semaphore, #tpu.memory_space<semaphore_mem>> -> memref<1x1x!tpu.dma_semaphore, #tpu.memory_space<semaphore_mem>>
    %344 = tpu.memref_squeeze %343 : memref<1x1x!tpu.dma_semaphore, #tpu.memory_space<semaphore_mem>> -> memref<!tpu.dma_semaphore, #tpu.memory_space<semaphore_mem>>
    tpu.wait_dma2 semaphore(%344 : memref<!tpu.dma_semaphore, #tpu.memory_space<semaphore_mem>>) src(%341 : memref<1x64xf32, #tpu.memory_space<any>>) dst(%342 : memref<1x64xf32, #tpu.memory_space<vmem>>)
    %c0_i32_310 = arith.constant 0 : i32
    %c14_i32_311 = arith.constant 14 : i32
    %c0_i32_312 = arith.constant 0 : i32
    %345 = tpu.memref_slice %arg2[%75, %c0_i32_312] : memref<100x64xf32, #tpu.memory_space<any>> -> memref<1x64xf32, #tpu.memory_space<any>>
    %c14_i32_313 = arith.constant 14 : i32
    %c0_i32_314 = arith.constant 0 : i32
    %346 = tpu.memref_slice %arg8[%c14_i32_313, %c0_i32_314] : memref<32x64xf32, #tpu.memory_space<vmem>> -> memref<1x64xf32, #tpu.memory_space<vmem>>
    %347 = tpu.memref_slice %arg9[%c0_i32_310, %c14_i32_311] : memref<2x16x!tpu.dma_semaphore, #tpu.memory_space<semaphore_mem>> -> memref<1x1x!tpu.dma_semaphore, #tpu.memory_space<semaphore_mem>>
    %348 = tpu.memref_squeeze %347 : memref<1x1x!tpu.dma_semaphore, #tpu.memory_space<semaphore_mem>> -> memref<!tpu.dma_semaphore, #tpu.memory_space<semaphore_mem>>
    tpu.wait_dma2 semaphore(%348 : memref<!tpu.dma_semaphore, #tpu.memory_space<semaphore_mem>>) src(%345 : memref<1x64xf32, #tpu.memory_space<any>>) dst(%346 : memref<1x64xf32, #tpu.memory_space<vmem>>)
    %c0_i32_315 = arith.constant 0 : i32
    %c15_i32_316 = arith.constant 15 : i32
    %c0_i32_317 = arith.constant 0 : i32
    %349 = tpu.memref_slice %arg2[%80, %c0_i32_317] : memref<100x64xf32, #tpu.memory_space<any>> -> memref<1x64xf32, #tpu.memory_space<any>>
    %c15_i32_318 = arith.constant 15 : i32
    %c0_i32_319 = arith.constant 0 : i32
    %350 = tpu.memref_slice %arg8[%c15_i32_318, %c0_i32_319] : memref<32x64xf32, #tpu.memory_space<vmem>> -> memref<1x64xf32, #tpu.memory_space<vmem>>
    %351 = tpu.memref_slice %arg9[%c0_i32_315, %c15_i32_316] : memref<2x16x!tpu.dma_semaphore, #tpu.memory_space<semaphore_mem>> -> memref<1x1x!tpu.dma_semaphore, #tpu.memory_space<semaphore_mem>>
    %352 = tpu.memref_squeeze %351 : memref<1x1x!tpu.dma_semaphore, #tpu.memory_space<semaphore_mem>> -> memref<!tpu.dma_semaphore, #tpu.memory_space<semaphore_mem>>
    tpu.wait_dma2 semaphore(%352 : memref<!tpu.dma_semaphore, #tpu.memory_space<semaphore_mem>>) src(%349 : memref<1x64xf32, #tpu.memory_space<any>>) dst(%350 : memref<1x64xf32, #tpu.memory_space<vmem>>)
    %c1_i32_320 = arith.constant 1 : i32
    %c0_i32_321 = arith.constant 0 : i32
    %c0_i32_322 = arith.constant 0 : i32
    %353 = tpu.memref_slice %arg2[%85, %c0_i32_322] : memref<100x64xf32, #tpu.memory_space<any>> -> memref<1x64xf32, #tpu.memory_space<any>>
    %c16_i32_323 = arith.constant 16 : i32
    %c0_i32_324 = arith.constant 0 : i32
    %354 = tpu.memref_slice %arg8[%c16_i32_323, %c0_i32_324] : memref<32x64xf32, #tpu.memory_space<vmem>> -> memref<1x64xf32, #tpu.memory_space<vmem>>
    %355 = tpu.memref_slice %arg9[%c1_i32_320, %c0_i32_321] : memref<2x16x!tpu.dma_semaphore, #tpu.memory_space<semaphore_mem>> -> memref<1x1x!tpu.dma_semaphore, #tpu.memory_space<semaphore_mem>>
    %356 = tpu.memref_squeeze %355 : memref<1x1x!tpu.dma_semaphore, #tpu.memory_space<semaphore_mem>> -> memref<!tpu.dma_semaphore, #tpu.memory_space<semaphore_mem>>
    tpu.wait_dma2 semaphore(%356 : memref<!tpu.dma_semaphore, #tpu.memory_space<semaphore_mem>>) src(%353 : memref<1x64xf32, #tpu.memory_space<any>>) dst(%354 : memref<1x64xf32, #tpu.memory_space<vmem>>)
    %c1_i32_325 = arith.constant 1 : i32
    %c1_i32_326 = arith.constant 1 : i32
    %c0_i32_327 = arith.constant 0 : i32
    %357 = tpu.memref_slice %arg2[%90, %c0_i32_327] : memref<100x64xf32, #tpu.memory_space<any>> -> memref<1x64xf32, #tpu.memory_space<any>>
    %c17_i32_328 = arith.constant 17 : i32
    %c0_i32_329 = arith.constant 0 : i32
    %358 = tpu.memref_slice %arg8[%c17_i32_328, %c0_i32_329] : memref<32x64xf32, #tpu.memory_space<vmem>> -> memref<1x64xf32, #tpu.memory_space<vmem>>
    %359 = tpu.memref_slice %arg9[%c1_i32_325, %c1_i32_326] : memref<2x16x!tpu.dma_semaphore, #tpu.memory_space<semaphore_mem>> -> memref<1x1x!tpu.dma_semaphore, #tpu.memory_space<semaphore_mem>>
    %360 = tpu.memref_squeeze %359 : memref<1x1x!tpu.dma_semaphore, #tpu.memory_space<semaphore_mem>> -> memref<!tpu.dma_semaphore, #tpu.memory_space<semaphore_mem>>
    tpu.wait_dma2 semaphore(%360 : memref<!tpu.dma_semaphore, #tpu.memory_space<semaphore_mem>>) src(%357 : memref<1x64xf32, #tpu.memory_space<any>>) dst(%358 : memref<1x64xf32, #tpu.memory_space<vmem>>)
    %c1_i32_330 = arith.constant 1 : i32
    %c2_i32_331 = arith.constant 2 : i32
    %c0_i32_332 = arith.constant 0 : i32
    %361 = tpu.memref_slice %arg2[%95, %c0_i32_332] : memref<100x64xf32, #tpu.memory_space<any>> -> memref<1x64xf32, #tpu.memory_space<any>>
    %c18_i32_333 = arith.constant 18 : i32
    %c0_i32_334 = arith.constant 0 : i32
    %362 = tpu.memref_slice %arg8[%c18_i32_333, %c0_i32_334] : memref<32x64xf32, #tpu.memory_space<vmem>> -> memref<1x64xf32, #tpu.memory_space<vmem>>
    %363 = tpu.memref_slice %arg9[%c1_i32_330, %c2_i32_331] : memref<2x16x!tpu.dma_semaphore, #tpu.memory_space<semaphore_mem>> -> memref<1x1x!tpu.dma_semaphore, #tpu.memory_space<semaphore_mem>>
    %364 = tpu.memref_squeeze %363 : memref<1x1x!tpu.dma_semaphore, #tpu.memory_space<semaphore_mem>> -> memref<!tpu.dma_semaphore, #tpu.memory_space<semaphore_mem>>
    tpu.wait_dma2 semaphore(%364 : memref<!tpu.dma_semaphore, #tpu.memory_space<semaphore_mem>>) src(%361 : memref<1x64xf32, #tpu.memory_space<any>>) dst(%362 : memref<1x64xf32, #tpu.memory_space<vmem>>)
    %c1_i32_335 = arith.constant 1 : i32
    %c3_i32_336 = arith.constant 3 : i32
    %c0_i32_337 = arith.constant 0 : i32
    %365 = tpu.memref_slice %arg2[%100, %c0_i32_337] : memref<100x64xf32, #tpu.memory_space<any>> -> memref<1x64xf32, #tpu.memory_space<any>>
    %c19_i32_338 = arith.constant 19 : i32
    %c0_i32_339 = arith.constant 0 : i32
    %366 = tpu.memref_slice %arg8[%c19_i32_338, %c0_i32_339] : memref<32x64xf32, #tpu.memory_space<vmem>> -> memref<1x64xf32, #tpu.memory_space<vmem>>
    %367 = tpu.memref_slice %arg9[%c1_i32_335, %c3_i32_336] : memref<2x16x!tpu.dma_semaphore, #tpu.memory_space<semaphore_mem>> -> memref<1x1x!tpu.dma_semaphore, #tpu.memory_space<semaphore_mem>>
    %368 = tpu.memref_squeeze %367 : memref<1x1x!tpu.dma_semaphore, #tpu.memory_space<semaphore_mem>> -> memref<!tpu.dma_semaphore, #tpu.memory_space<semaphore_mem>>
    tpu.wait_dma2 semaphore(%368 : memref<!tpu.dma_semaphore, #tpu.memory_space<semaphore_mem>>) src(%365 : memref<1x64xf32, #tpu.memory_space<any>>) dst(%366 : memref<1x64xf32, #tpu.memory_space<vmem>>)
    %c1_i32_340 = arith.constant 1 : i32
    %c4_i32_341 = arith.constant 4 : i32
    %c0_i32_342 = arith.constant 0 : i32
    %369 = tpu.memref_slice %arg2[%105, %c0_i32_342] : memref<100x64xf32, #tpu.memory_space<any>> -> memref<1x64xf32, #tpu.memory_space<any>>
    %c20_i32_343 = arith.constant 20 : i32
    %c0_i32_344 = arith.constant 0 : i32
    %370 = tpu.memref_slice %arg8[%c20_i32_343, %c0_i32_344] : memref<32x64xf32, #tpu.memory_space<vmem>> -> memref<1x64xf32, #tpu.memory_space<vmem>>
    %371 = tpu.memref_slice %arg9[%c1_i32_340, %c4_i32_341] : memref<2x16x!tpu.dma_semaphore, #tpu.memory_space<semaphore_mem>> -> memref<1x1x!tpu.dma_semaphore, #tpu.memory_space<semaphore_mem>>
    %372 = tpu.memref_squeeze %371 : memref<1x1x!tpu.dma_semaphore, #tpu.memory_space<semaphore_mem>> -> memref<!tpu.dma_semaphore, #tpu.memory_space<semaphore_mem>>
    tpu.wait_dma2 semaphore(%372 : memref<!tpu.dma_semaphore, #tpu.memory_space<semaphore_mem>>) src(%369 : memref<1x64xf32, #tpu.memory_space<any>>) dst(%370 : memref<1x64xf32, #tpu.memory_space<vmem>>)
    %c1_i32_345 = arith.constant 1 : i32
    %c5_i32_346 = arith.constant 5 : i32
    %c0_i32_347 = arith.constant 0 : i32
    %373 = tpu.memref_slice %arg2[%110, %c0_i32_347] : memref<100x64xf32, #tpu.memory_space<any>> -> memref<1x64xf32, #tpu.memory_space<any>>
    %c21_i32_348 = arith.constant 21 : i32
    %c0_i32_349 = arith.constant 0 : i32
    %374 = tpu.memref_slice %arg8[%c21_i32_348, %c0_i32_349] : memref<32x64xf32, #tpu.memory_space<vmem>> -> memref<1x64xf32, #tpu.memory_space<vmem>>
    %375 = tpu.memref_slice %arg9[%c1_i32_345, %c5_i32_346] : memref<2x16x!tpu.dma_semaphore, #tpu.memory_space<semaphore_mem>> -> memref<1x1x!tpu.dma_semaphore, #tpu.memory_space<semaphore_mem>>
    %376 = tpu.memref_squeeze %375 : memref<1x1x!tpu.dma_semaphore, #tpu.memory_space<semaphore_mem>> -> memref<!tpu.dma_semaphore, #tpu.memory_space<semaphore_mem>>
    tpu.wait_dma2 semaphore(%376 : memref<!tpu.dma_semaphore, #tpu.memory_space<semaphore_mem>>) src(%373 : memref<1x64xf32, #tpu.memory_space<any>>) dst(%374 : memref<1x64xf32, #tpu.memory_space<vmem>>)
    %c1_i32_350 = arith.constant 1 : i32
    %c6_i32_351 = arith.constant 6 : i32
    %c0_i32_352 = arith.constant 0 : i32
    %377 = tpu.memref_slice %arg2[%115, %c0_i32_352] : memref<100x64xf32, #tpu.memory_space<any>> -> memref<1x64xf32, #tpu.memory_space<any>>
    %c22_i32_353 = arith.constant 22 : i32
    %c0_i32_354 = arith.constant 0 : i32
    %378 = tpu.memref_slice %arg8[%c22_i32_353, %c0_i32_354] : memref<32x64xf32, #tpu.memory_space<vmem>> -> memref<1x64xf32, #tpu.memory_space<vmem>>
    %379 = tpu.memref_slice %arg9[%c1_i32_350, %c6_i32_351] : memref<2x16x!tpu.dma_semaphore, #tpu.memory_space<semaphore_mem>> -> memref<1x1x!tpu.dma_semaphore, #tpu.memory_space<semaphore_mem>>
    %380 = tpu.memref_squeeze %379 : memref<1x1x!tpu.dma_semaphore, #tpu.memory_space<semaphore_mem>> -> memref<!tpu.dma_semaphore, #tpu.memory_space<semaphore_mem>>
    tpu.wait_dma2 semaphore(%380 : memref<!tpu.dma_semaphore, #tpu.memory_space<semaphore_mem>>) src(%377 : memref<1x64xf32, #tpu.memory_space<any>>) dst(%378 : memref<1x64xf32, #tpu.memory_space<vmem>>)
    %c1_i32_355 = arith.constant 1 : i32
    %c7_i32_356 = arith.constant 7 : i32
    %c0_i32_357 = arith.constant 0 : i32
    %381 = tpu.memref_slice %arg2[%120, %c0_i32_357] : memref<100x64xf32, #tpu.memory_space<any>> -> memref<1x64xf32, #tpu.memory_space<any>>
    %c23_i32_358 = arith.constant 23 : i32
    %c0_i32_359 = arith.constant 0 : i32
    %382 = tpu.memref_slice %arg8[%c23_i32_358, %c0_i32_359] : memref<32x64xf32, #tpu.memory_space<vmem>> -> memref<1x64xf32, #tpu.memory_space<vmem>>
    %383 = tpu.memref_slice %arg9[%c1_i32_355, %c7_i32_356] : memref<2x16x!tpu.dma_semaphore, #tpu.memory_space<semaphore_mem>> -> memref<1x1x!tpu.dma_semaphore, #tpu.memory_space<semaphore_mem>>
    %384 = tpu.memref_squeeze %383 : memref<1x1x!tpu.dma_semaphore, #tpu.memory_space<semaphore_mem>> -> memref<!tpu.dma_semaphore, #tpu.memory_space<semaphore_mem>>
    tpu.wait_dma2 semaphore(%384 : memref<!tpu.dma_semaphore, #tpu.memory_space<semaphore_mem>>) src(%381 : memref<1x64xf32, #tpu.memory_space<any>>) dst(%382 : memref<1x64xf32, #tpu.memory_space<vmem>>)
    %c1_i32_360 = arith.constant 1 : i32
    %c8_i32_361 = arith.constant 8 : i32
    %c0_i32_362 = arith.constant 0 : i32
    %385 = tpu.memref_slice %arg2[%125, %c0_i32_362] : memref<100x64xf32, #tpu.memory_space<any>> -> memref<1x64xf32, #tpu.memory_space<any>>
    %c24_i32_363 = arith.constant 24 : i32
    %c0_i32_364 = arith.constant 0 : i32
    %386 = tpu.memref_slice %arg8[%c24_i32_363, %c0_i32_364] : memref<32x64xf32, #tpu.memory_space<vmem>> -> memref<1x64xf32, #tpu.memory_space<vmem>>
    %387 = tpu.memref_slice %arg9[%c1_i32_360, %c8_i32_361] : memref<2x16x!tpu.dma_semaphore, #tpu.memory_space<semaphore_mem>> -> memref<1x1x!tpu.dma_semaphore, #tpu.memory_space<semaphore_mem>>
    %388 = tpu.memref_squeeze %387 : memref<1x1x!tpu.dma_semaphore, #tpu.memory_space<semaphore_mem>> -> memref<!tpu.dma_semaphore, #tpu.memory_space<semaphore_mem>>
    tpu.wait_dma2 semaphore(%388 : memref<!tpu.dma_semaphore, #tpu.memory_space<semaphore_mem>>) src(%385 : memref<1x64xf32, #tpu.memory_space<any>>) dst(%386 : memref<1x64xf32, #tpu.memory_space<vmem>>)
    %c1_i32_365 = arith.constant 1 : i32
    %c9_i32_366 = arith.constant 9 : i32
    %c0_i32_367 = arith.constant 0 : i32
    %389 = tpu.memref_slice %arg2[%130, %c0_i32_367] : memref<100x64xf32, #tpu.memory_space<any>> -> memref<1x64xf32, #tpu.memory_space<any>>
    %c25_i32_368 = arith.constant 25 : i32
    %c0_i32_369 = arith.constant 0 : i32
    %390 = tpu.memref_slice %arg8[%c25_i32_368, %c0_i32_369] : memref<32x64xf32, #tpu.memory_space<vmem>> -> memref<1x64xf32, #tpu.memory_space<vmem>>
    %391 = tpu.memref_slice %arg9[%c1_i32_365, %c9_i32_366] : memref<2x16x!tpu.dma_semaphore, #tpu.memory_space<semaphore_mem>> -> memref<1x1x!tpu.dma_semaphore, #tpu.memory_space<semaphore_mem>>
    %392 = tpu.memref_squeeze %391 : memref<1x1x!tpu.dma_semaphore, #tpu.memory_space<semaphore_mem>> -> memref<!tpu.dma_semaphore, #tpu.memory_space<semaphore_mem>>
    tpu.wait_dma2 semaphore(%392 : memref<!tpu.dma_semaphore, #tpu.memory_space<semaphore_mem>>) src(%389 : memref<1x64xf32, #tpu.memory_space<any>>) dst(%390 : memref<1x64xf32, #tpu.memory_space<vmem>>)
    %c1_i32_370 = arith.constant 1 : i32
    %c10_i32_371 = arith.constant 10 : i32
    %c0_i32_372 = arith.constant 0 : i32
    %393 = tpu.memref_slice %arg2[%135, %c0_i32_372] : memref<100x64xf32, #tpu.memory_space<any>> -> memref<1x64xf32, #tpu.memory_space<any>>
    %c26_i32_373 = arith.constant 26 : i32
    %c0_i32_374 = arith.constant 0 : i32
    %394 = tpu.memref_slice %arg8[%c26_i32_373, %c0_i32_374] : memref<32x64xf32, #tpu.memory_space<vmem>> -> memref<1x64xf32, #tpu.memory_space<vmem>>
    %395 = tpu.memref_slice %arg9[%c1_i32_370, %c10_i32_371] : memref<2x16x!tpu.dma_semaphore, #tpu.memory_space<semaphore_mem>> -> memref<1x1x!tpu.dma_semaphore, #tpu.memory_space<semaphore_mem>>
    %396 = tpu.memref_squeeze %395 : memref<1x1x!tpu.dma_semaphore, #tpu.memory_space<semaphore_mem>> -> memref<!tpu.dma_semaphore, #tpu.memory_space<semaphore_mem>>
    tpu.wait_dma2 semaphore(%396 : memref<!tpu.dma_semaphore, #tpu.memory_space<semaphore_mem>>) src(%393 : memref<1x64xf32, #tpu.memory_space<any>>) dst(%394 : memref<1x64xf32, #tpu.memory_space<vmem>>)
    %c1_i32_375 = arith.constant 1 : i32
    %c11_i32_376 = arith.constant 11 : i32
    %c0_i32_377 = arith.constant 0 : i32
    %397 = tpu.memref_slice %arg2[%140, %c0_i32_377] : memref<100x64xf32, #tpu.memory_space<any>> -> memref<1x64xf32, #tpu.memory_space<any>>
    %c27_i32_378 = arith.constant 27 : i32
    %c0_i32_379 = arith.constant 0 : i32
    %398 = tpu.memref_slice %arg8[%c27_i32_378, %c0_i32_379] : memref<32x64xf32, #tpu.memory_space<vmem>> -> memref<1x64xf32, #tpu.memory_space<vmem>>
    %399 = tpu.memref_slice %arg9[%c1_i32_375, %c11_i32_376] : memref<2x16x!tpu.dma_semaphore, #tpu.memory_space<semaphore_mem>> -> memref<1x1x!tpu.dma_semaphore, #tpu.memory_space<semaphore_mem>>
    %400 = tpu.memref_squeeze %399 : memref<1x1x!tpu.dma_semaphore, #tpu.memory_space<semaphore_mem>> -> memref<!tpu.dma_semaphore, #tpu.memory_space<semaphore_mem>>
    tpu.wait_dma2 semaphore(%400 : memref<!tpu.dma_semaphore, #tpu.memory_space<semaphore_mem>>) src(%397 : memref<1x64xf32, #tpu.memory_space<any>>) dst(%398 : memref<1x64xf32, #tpu.memory_space<vmem>>)
    %c1_i32_380 = arith.constant 1 : i32
    %c12_i32_381 = arith.constant 12 : i32
    %c0_i32_382 = arith.constant 0 : i32
    %401 = tpu.memref_slice %arg2[%145, %c0_i32_382] : memref<100x64xf32, #tpu.memory_space<any>> -> memref<1x64xf32, #tpu.memory_space<any>>
    %c28_i32_383 = arith.constant 28 : i32
    %c0_i32_384 = arith.constant 0 : i32
    %402 = tpu.memref_slice %arg8[%c28_i32_383, %c0_i32_384] : memref<32x64xf32, #tpu.memory_space<vmem>> -> memref<1x64xf32, #tpu.memory_space<vmem>>
    %403 = tpu.memref_slice %arg9[%c1_i32_380, %c12_i32_381] : memref<2x16x!tpu.dma_semaphore, #tpu.memory_space<semaphore_mem>> -> memref<1x1x!tpu.dma_semaphore, #tpu.memory_space<semaphore_mem>>
    %404 = tpu.memref_squeeze %403 : memref<1x1x!tpu.dma_semaphore, #tpu.memory_space<semaphore_mem>> -> memref<!tpu.dma_semaphore, #tpu.memory_space<semaphore_mem>>
    tpu.wait_dma2 semaphore(%404 : memref<!tpu.dma_semaphore, #tpu.memory_space<semaphore_mem>>) src(%401 : memref<1x64xf32, #tpu.memory_space<any>>) dst(%402 : memref<1x64xf32, #tpu.memory_space<vmem>>)
    %c1_i32_385 = arith.constant 1 : i32
    %c13_i32_386 = arith.constant 13 : i32
    %c0_i32_387 = arith.constant 0 : i32
    %405 = tpu.memref_slice %arg2[%150, %c0_i32_387] : memref<100x64xf32, #tpu.memory_space<any>> -> memref<1x64xf32, #tpu.memory_space<any>>
    %c29_i32_388 = arith.constant 29 : i32
    %c0_i32_389 = arith.constant 0 : i32
    %406 = tpu.memref_slice %arg8[%c29_i32_388, %c0_i32_389] : memref<32x64xf32, #tpu.memory_space<vmem>> -> memref<1x64xf32, #tpu.memory_space<vmem>>
    %407 = tpu.memref_slice %arg9[%c1_i32_385, %c13_i32_386] : memref<2x16x!tpu.dma_semaphore, #tpu.memory_space<semaphore_mem>> -> memref<1x1x!tpu.dma_semaphore, #tpu.memory_space<semaphore_mem>>
    %408 = tpu.memref_squeeze %407 : memref<1x1x!tpu.dma_semaphore, #tpu.memory_space<semaphore_mem>> -> memref<!tpu.dma_semaphore, #tpu.memory_space<semaphore_mem>>
    tpu.wait_dma2 semaphore(%408 : memref<!tpu.dma_semaphore, #tpu.memory_space<semaphore_mem>>) src(%405 : memref<1x64xf32, #tpu.memory_space<any>>) dst(%406 : memref<1x64xf32, #tpu.memory_space<vmem>>)
    %c1_i32_390 = arith.constant 1 : i32
    %c14_i32_391 = arith.constant 14 : i32
    %c0_i32_392 = arith.constant 0 : i32
    %409 = tpu.memref_slice %arg2[%155, %c0_i32_392] : memref<100x64xf32, #tpu.memory_space<any>> -> memref<1x64xf32, #tpu.memory_space<any>>
    %c30_i32_393 = arith.constant 30 : i32
    %c0_i32_394 = arith.constant 0 : i32
    %410 = tpu.memref_slice %arg8[%c30_i32_393, %c0_i32_394] : memref<32x64xf32, #tpu.memory_space<vmem>> -> memref<1x64xf32, #tpu.memory_space<vmem>>
    %411 = tpu.memref_slice %arg9[%c1_i32_390, %c14_i32_391] : memref<2x16x!tpu.dma_semaphore, #tpu.memory_space<semaphore_mem>> -> memref<1x1x!tpu.dma_semaphore, #tpu.memory_space<semaphore_mem>>
    %412 = tpu.memref_squeeze %411 : memref<1x1x!tpu.dma_semaphore, #tpu.memory_space<semaphore_mem>> -> memref<!tpu.dma_semaphore, #tpu.memory_space<semaphore_mem>>
    tpu.wait_dma2 semaphore(%412 : memref<!tpu.dma_semaphore, #tpu.memory_space<semaphore_mem>>) src(%409 : memref<1x64xf32, #tpu.memory_space<any>>) dst(%410 : memref<1x64xf32, #tpu.memory_space<vmem>>)
    %c1_i32_395 = arith.constant 1 : i32
    %c15_i32_396 = arith.constant 15 : i32
    %c0_i32_397 = arith.constant 0 : i32
    %413 = tpu.memref_slice %arg2[%160, %c0_i32_397] : memref<100x64xf32, #tpu.memory_space<any>> -> memref<1x64xf32, #tpu.memory_space<any>>
    %c31_i32_398 = arith.constant 31 : i32
    %c0_i32_399 = arith.constant 0 : i32
    %414 = tpu.memref_slice %arg8[%c31_i32_398, %c0_i32_399] : memref<32x64xf32, #tpu.memory_space<vmem>> -> memref<1x64xf32, #tpu.memory_space<vmem>>
    %415 = tpu.memref_slice %arg9[%c1_i32_395, %c15_i32_396] : memref<2x16x!tpu.dma_semaphore, #tpu.memory_space<semaphore_mem>> -> memref<1x1x!tpu.dma_semaphore, #tpu.memory_space<semaphore_mem>>
    %416 = tpu.memref_squeeze %415 : memref<1x1x!tpu.dma_semaphore, #tpu.memory_space<semaphore_mem>> -> memref<!tpu.dma_semaphore, #tpu.memory_space<semaphore_mem>>
    tpu.wait_dma2 semaphore(%416 : memref<!tpu.dma_semaphore, #tpu.memory_space<semaphore_mem>>) src(%413 : memref<1x64xf32, #tpu.memory_space<any>>) dst(%414 : memref<1x64xf32, #tpu.memory_space<vmem>>)
    %c0_400 = arith.constant 0 : index
    %c0_401 = arith.constant 0 : index
    %417 = vector.load %arg8[%c0_400, %c0_401] : memref<32x64xf32, #tpu.memory_space<vmem>>, vector<32x64xf32>
    %418 = arith.truncf %417 : vector<32x64xf32> to vector<32x64xbf16>
    %c0_402 = arith.constant 0 : index
    %c0_403 = arith.constant 0 : index
    %c0_404 = arith.constant 0 : index
    %419 = vector.load %arg3[%c0_402, %c0_403, %c0_404] : memref<5x64x64xbf16, #tpu.memory_space<vmem>>, vector<1x64x64xbf16>
    %420 = vector.shape_cast %419 : vector<1x64x64xbf16> to vector<64x64xbf16>
    %cst = arith.constant dense<0.000000e+00> : vector<32x64xf32>
    %421 = tpu.matmul %418, %420, %cst {dimension_numbers = #tpu.dot_dimension_numbers<[1], [0], [0], [1], [0, 0, 1, 1], [], []>} : vector<32x64xbf16>, vector<64x64xbf16>, vector<32x64xf32> -> vector<32x64xf32>
    %422 = vector.shape_cast %421 : vector<32x64xf32> to vector<2x16x64xf32>
    %423 = vector.extract_strided_slice %422 {offsets = [0, 0, 0], sizes = [2, 12, 64], strides = [1, 1, 1]} : vector<2x16x64xf32> to vector<2x12x64xf32>
    %c1_405 = arith.constant 1 : index
    %c0_406 = arith.constant 0 : index
    %c0_407 = arith.constant 0 : index
    %424 = vector.load %arg3[%c1_405, %c0_406, %c0_407] : memref<5x64x64xbf16, #tpu.memory_space<vmem>>, vector<1x64x64xbf16>
    %425 = vector.shape_cast %424 : vector<1x64x64xbf16> to vector<64x64xbf16>
    %cst_408 = arith.constant dense<0.000000e+00> : vector<32x64xf32>
    %426 = tpu.matmul %418, %425, %cst_408 {dimension_numbers = #tpu.dot_dimension_numbers<[1], [0], [0], [1], [0, 0, 1, 1], [], []>} : vector<32x64xbf16>, vector<64x64xbf16>, vector<32x64xf32> -> vector<32x64xf32>
    %427 = vector.shape_cast %426 : vector<32x64xf32> to vector<2x16x64xf32>
    %428 = vector.extract_strided_slice %427 {offsets = [0, 1, 0], sizes = [2, 12, 64], strides = [1, 1, 1]} : vector<2x16x64xf32> to vector<2x12x64xf32>
    %429 = arith.addf %423, %428 : vector<2x12x64xf32>
    %c2_409 = arith.constant 2 : index
    %c0_410 = arith.constant 0 : index
    %c0_411 = arith.constant 0 : index
    %430 = vector.load %arg3[%c2_409, %c0_410, %c0_411] : memref<5x64x64xbf16, #tpu.memory_space<vmem>>, vector<1x64x64xbf16>
    %431 = vector.shape_cast %430 : vector<1x64x64xbf16> to vector<64x64xbf16>
    %cst_412 = arith.constant dense<0.000000e+00> : vector<32x64xf32>
    %432 = tpu.matmul %418, %431, %cst_412 {dimension_numbers = #tpu.dot_dimension_numbers<[1], [0], [0], [1], [0, 0, 1, 1], [], []>} : vector<32x64xbf16>, vector<64x64xbf16>, vector<32x64xf32> -> vector<32x64xf32>
    %433 = vector.shape_cast %432 : vector<32x64xf32> to vector<2x16x64xf32>
    %434 = vector.extract_strided_slice %433 {offsets = [0, 2, 0], sizes = [2, 12, 64], strides = [1, 1, 1]} : vector<2x16x64xf32> to vector<2x12x64xf32>
    %435 = arith.addf %429, %434 : vector<2x12x64xf32>
    %c3_413 = arith.constant 3 : index
    %c0_414 = arith.constant 0 : index
    %c0_415 = arith.constant 0 : index
    %436 = vector.load %arg3[%c3_413, %c0_414, %c0_415] : memref<5x64x64xbf16, #tpu.memory_space<vmem>>, vector<1x64x64xbf16>
    %437 = vector.shape_cast %436 : vector<1x64x64xbf16> to vector<64x64xbf16>
    %cst_416 = arith.constant dense<0.000000e+00> : vector<32x64xf32>
    %438 = tpu.matmul %418, %437, %cst_416 {dimension_numbers = #tpu.dot_dimension_numbers<[1], [0], [0], [1], [0, 0, 1, 1], [], []>} : vector<32x64xbf16>, vector<64x64xbf16>, vector<32x64xf32> -> vector<32x64xf32>
    %439 = vector.shape_cast %438 : vector<32x64xf32> to vector<2x16x64xf32>
    %440 = vector.extract_strided_slice %439 {offsets = [0, 3, 0], sizes = [2, 12, 64], strides = [1, 1, 1]} : vector<2x16x64xf32> to vector<2x12x64xf32>
    %441 = arith.addf %435, %440 : vector<2x12x64xf32>
    %c4_417 = arith.constant 4 : index
    %c0_418 = arith.constant 0 : index
    %c0_419 = arith.constant 0 : index
    %442 = vector.load %arg3[%c4_417, %c0_418, %c0_419] : memref<5x64x64xbf16, #tpu.memory_space<vmem>>, vector<1x64x64xbf16>
    %443 = vector.shape_cast %442 : vector<1x64x64xbf16> to vector<64x64xbf16>
    %cst_420 = arith.constant dense<0.000000e+00> : vector<32x64xf32>
    %444 = tpu.matmul %418, %443, %cst_420 {dimension_numbers = #tpu.dot_dimension_numbers<[1], [0], [0], [1], [0, 0, 1, 1], [], []>} : vector<32x64xbf16>, vector<64x64xbf16>, vector<32x64xf32> -> vector<32x64xf32>
    %445 = vector.shape_cast %444 : vector<32x64xf32> to vector<2x16x64xf32>
    %446 = vector.extract_strided_slice %445 {offsets = [0, 4, 0], sizes = [2, 12, 64], strides = [1, 1, 1]} : vector<2x16x64xf32> to vector<2x12x64xf32>
    %447 = arith.addf %441, %446 : vector<2x12x64xf32>
    %c0_421 = arith.constant 0 : index
    %c0_422 = arith.constant 0 : index
    %448 = vector.load %arg4[%c0_421, %c0_422] : memref<1x64xf32, #tpu.memory_space<vmem>>, vector<1x64xf32>
    %449 = vector.shape_cast %448 : vector<1x64xf32> to vector<1x1x64xf32>
    %450 = vector.broadcast %449 : vector<1x1x64xf32> to vector<2x12x64xf32>
    %451 = arith.addf %447, %450 : vector<2x12x64xf32>
    %cst_423 = arith.constant dense<0xFF800000> : vector<2x64xf32>
    %452 = vector.multi_reduction <maximumf>, %451, %cst_423 [1] : vector<2x12x64xf32> to vector<2x64xf32>
    %453 = arith.truncf %452 : vector<2x64xf32> to vector<2x64xbf16>
    %c0_424 = arith.constant 0 : index
    %c0_425 = arith.constant 0 : index
    %454 = vector.load %arg5[%c0_424, %c0_425] : memref<64x8xbf16, #tpu.memory_space<vmem>>, vector<64x8xbf16>
    %cst_426 = arith.constant dense<0.000000e+00> : vector<2x8xf32>
    %455 = tpu.matmul %453, %454, %cst_426 {dimension_numbers = #tpu.dot_dimension_numbers<[1], [0], [0], [1], [0, 0, 1, 1], [], []>} : vector<2x64xbf16>, vector<64x8xbf16>, vector<2x8xf32> -> vector<2x8xf32>
    %c0_427 = arith.constant 0 : index
    %c0_428 = arith.constant 0 : index
    %456 = vector.load %arg6[%c0_427, %c0_428] : memref<1x8xf32, #tpu.memory_space<vmem>>, vector<1x8xf32>
    %457 = vector.broadcast %456 : vector<1x8xf32> to vector<2x8xf32>
    %458 = arith.addf %455, %457 : vector<2x8xf32>
    %c0_429 = arith.constant 0 : index
    %c0_430 = arith.constant 0 : index
    %459 = vector.load %arg7[%c0_429, %c0_430] : memref<2x8xf32, #tpu.memory_space<vmem>>, vector<2x8xf32>
    tpu.vector_store %arg7[%c0_429, %c0_430], %458 {strides = array<i32>} : memref<2x8xf32, #tpu.memory_space<vmem>>, vector<2x8xf32>,
    return
  }
  func.func @transform_1(%arg0: i32, %arg1: memref<2x16xi32, #tpu.memory_space<smem>>) -> (i32, i32, i32) {
    %c0_i32 = arith.constant 0 : i32
    %c0_i32_0 = arith.constant 0 : i32
    %c0_i32_1 = arith.constant 0 : i32
    %c0_i32_2 = arith.constant 0 : i32
    return %c0_i32, %c0_i32_0, %c0_i32_1 : i32, i32, i32
  }
  func.func @transform_2(%arg0: i32, %arg1: memref<2x16xi32, #tpu.memory_space<smem>>) -> (i32, i32) {
    %c0_i32 = arith.constant 0 : i32
    %c0_i32_0 = arith.constant 0 : i32
    %c0_i32_1 = arith.constant 0 : i32
    return %c0_i32, %c0_i32_0 : i32, i32
  }
  func.func @transform_3(%arg0: i32, %arg1: memref<2x16xi32, #tpu.memory_space<smem>>) -> (i32, i32) {
    %c0_i32 = arith.constant 0 : i32
    %c0_i32_0 = arith.constant 0 : i32
    %c0_i32_1 = arith.constant 0 : i32
    return %c0_i32, %c0_i32_0 : i32, i32
  }
  func.func @transform_4(%arg0: i32, %arg1: memref<2x16xi32, #tpu.memory_space<smem>>) -> (i32, i32) {
    %c0_i32 = arith.constant 0 : i32
    %c0_i32_0 = arith.constant 0 : i32
    %c0_i32_1 = arith.constant 0 : i32
    return %c0_i32, %c0_i32_0 : i32, i32
  }
  func.func @transform_5(%arg0: i32, %arg1: memref<2x16xi32, #tpu.memory_space<smem>>) -> (i32, i32) {
    %c0_i32 = arith.constant 0 : i32
    %c0_i32_0 = arith.constant 0 : i32
    return %arg0, %c0_i32 : i32, i32
  }
}

</mosaic_0001>

<llo_original>
// kernel: tpu_custom_call.1
$region0: #{tpu_custom_call.1}
  #allocation0 [shape = 'u32[]', space=smem, size = 0x4, offset = 0x4, fixed_abs, tag = 'smem constant byte address 0x4 - core index']
  #allocation1 [shape = 'u32[144,128]{1,0:T(1,128)}', space=vmem, size = 0x12000, scoped, tag = 'internal scratch']
  #allocation2 [shape = 'f32[32,64]{1,0:T(8,128)}', space=vmem, size = 0x4000, scoped, tag = 'scratch operand']
  #allocation3 [shape = 's32[32]{0}', space=sflag, size = 0x80, scoped, tag = 'scratch operand']
  #allocation4 [shape = 's32[1]{0}', space=sflag, size = 0x4, scoped, tag = 'scoped memory for tpu_custom_call.1']
  #allocation5 [shape = 'u8[1024]{0}', space=smem, size = 0x400, scoped, tag = 'prefetched SMEM operand 0']
  #allocation8 [shape = 's32[]', space=sflag, size = 0x4, offset = 0, fixed_abs, tag = 'sflag constant byte address 0x0 - dummy sync flag']
  #allocation9 [shape = 's32[]', space=sflag, size = 0x4, offset = 0, fixed_abs, tag = 'sflag constant byte address 0x0 - dummy sync flag']
  #allocation10 [shape = 's32[]', space=sflag, size = 0x4, offset = 0, fixed_abs, tag = 'sflag constant byte address 0x0 - dummy sync flag']
  #allocation11 [shape = 's32[]', space=sflag, size = 0x4, offset = 0, fixed_abs, tag = 'sflag constant byte address 0x0 - dummy sync flag']
  #allocation12 [shape = 's32[]', space=sflag, size = 0x4, offset = 0, fixed_abs, tag = 'sflag constant byte address 0x0 - dummy sync flag']
  #allocation13 [shape = 's32[]', space=sflag, size = 0x4, offset = 0, fixed_abs, tag = 'sflag constant byte address 0x0 - dummy sync flag']
  #allocation14 [shape = 's32[]', space=sflag, size = 0x4, offset = 0, fixed_abs, tag = 'sflag constant byte address 0x0 - dummy sync flag']
  #allocation15 [shape = 's32[]', space=sflag, size = 0x4, offset = 0, fixed_abs, tag = 'sflag constant byte address 0x0 - dummy sync flag']
  #allocation16 [shape = 's32[]', space=sflag, size = 0x4, offset = 0, fixed_abs, tag = 'sflag constant byte address 0x0 - dummy sync flag']
  #allocation17 [shape = 's32[]', space=sflag, size = 0x4, offset = 0, fixed_abs, tag = 'sflag constant byte address 0x0 - dummy sync flag']
  #allocation18 [shape = 's32[]', space=sflag, size = 0x4, offset = 0, fixed_abs, tag = 'sflag constant byte address 0x0 - dummy sync flag']
  #allocation19 [shape = 's32[]', space=sflag, size = 0x4, offset = 0, fixed_abs, tag = 'sflag constant byte address 0x0 - dummy sync flag']
  #allocation20 [shape = 's32[]', space=sflag, size = 0x4, offset = 0, fixed_abs, tag = 'sflag constant byte address 0x0 - dummy sync flag']
  #allocation21 [shape = 's32[]', space=sflag, size = 0x4, offset = 0, fixed_abs, tag = 'sflag constant byte address 0x0 - dummy sync flag']
  #allocation22 [shape = 's32[]', space=sflag, size = 0x4, offset = 0, fixed_abs, tag = 'sflag constant byte address 0x0 - dummy sync flag']
  #allocation23 [shape = 's32[]', space=sflag, size = 0x4, offset = 0, fixed_abs, tag = 'sflag constant byte address 0x0 - dummy sync flag']
  #allocation24 [shape = 's32[]', space=sflag, size = 0x4, offset = 0, fixed_abs, tag = 'sflag constant byte address 0x0 - dummy sync flag']
  #allocation25 [shape = 's32[]', space=sflag, size = 0x4, offset = 0, fixed_abs, tag = 'sflag constant byte address 0x0 - dummy sync flag']
  #allocation26 [shape = 's32[]', space=sflag, size = 0x4, offset = 0, fixed_abs, tag = 'sflag constant byte address 0x0 - dummy sync flag']
  #allocation27 [shape = 's32[]', space=sflag, size = 0x4, offset = 0, fixed_abs, tag = 'sflag constant byte address 0x0 - dummy sync flag']
  #allocation28 [shape = 's32[]', space=sflag, size = 0x4, offset = 0, fixed_abs, tag = 'sflag constant byte address 0x0 - dummy sync flag']
  #allocation29 [shape = 's32[]', space=sflag, size = 0x4, offset = 0, fixed_abs, tag = 'sflag constant byte address 0x0 - dummy sync flag']
  #allocation30 [shape = 's32[]', space=sflag, size = 0x4, offset = 0, fixed_abs, tag = 'sflag constant byte address 0x0 - dummy sync flag']
  #allocation31 [shape = 's32[]', space=sflag, size = 0x4, offset = 0, fixed_abs, tag = 'sflag constant byte address 0x0 - dummy sync flag']
  #allocation32 [shape = 's32[]', space=sflag, size = 0x4, offset = 0, fixed_abs, tag = 'sflag constant byte address 0x0 - dummy sync flag']
  #allocation33 [shape = 's32[]', space=sflag, size = 0x4, offset = 0, fixed_abs, tag = 'sflag constant byte address 0x0 - dummy sync flag']
  #allocation34 [shape = 's32[]', space=sflag, size = 0x4, offset = 0, fixed_abs, tag = 'sflag constant byte address 0x0 - dummy sync flag']
  #allocation35 [shape = 's32[]', space=sflag, size = 0x4, offset = 0, fixed_abs, tag = 'sflag constant byte address 0x0 - dummy sync flag']
  #allocation36 [shape = 's32[]', space=sflag, size = 0x4, offset = 0, fixed_abs, tag = 'sflag constant byte address 0x0 - dummy sync flag']
  #allocation37 [shape = 's32[]', space=sflag, size = 0x4, offset = 0, fixed_abs, tag = 'sflag constant byte address 0x0 - dummy sync flag']
  #allocation38 [shape = 's32[]', space=sflag, size = 0x4, offset = 0, fixed_abs, tag = 'sflag constant byte address 0x0 - dummy sync flag']
  #allocation39 [shape = 's32[]', space=sflag, size = 0x4, offset = 0, fixed_abs, tag = 'sflag constant byte address 0x0 - dummy sync flag']
  %s0 = inlined_call_operand.vmem [shape: s32[2,16], index: 0, kind: input, shape index: {}]
  %s1 = inlined_call_operand.vmem [shape: f32[100,64], index: 1, kind: input, shape index: {}]
  %s2 = inlined_call_operand.vmem [shape: bf16[5,64,64], index: 2, kind: input, shape index: {}]
  %s3 = inlined_call_operand.vmem [shape: f32[1,64], index: 3, kind: input, shape index: {}]
  %s4 = inlined_call_operand.vmem [shape: bf16[64,8], index: 4, kind: input, shape index: {}]
  %s5 = inlined_call_operand.vmem [shape: f32[1,8], index: 5, kind: input, shape index: {}]
  %s6 = inlined_call_operand.hbm [shape: f32[2,8], index: 6, kind: output, shape index: {}]
  %s7 = sld [smem:[#allocation0]]
  $region986: #{tpu_custom_call.1} parent=0
    _
  %s9 = ssub.s32 1, %s7
  %s10 = scalar_select 0, %s9, %s7
  %s11 = sshll.u32 %s0, 4
  %s12 = int_to_ptr.vmem [resolvable:$true] %s11
  %14 = dma.vmem_to_smem %s12, 32, [#allocation5], [#allocation4]
  %15 = dma.done [#allocation4], 32
  %16 = sfence
  $region1: #{tpu_custom_call.1} parent=0
    #allocation6 [shape = 'u8[1024]{0}', space=vmem, size = 0x400, scoped, tag = 'output window, operand 0, single buffered']
    #allocation7 [shape = 's32[1]{0}', space=sflag, size = 0x4, scoped, tag = 'scoped memory for tpu_custom_call.1']
    %17 = vsyncpa [#allocation7], 0
    // Predicated region
    $region2: #{tpu_custom_call.1} parent=1 // pred_check
      _
    $region3: #{tpu_custom_call.1} parent=1 // pred_check_branch
      %19 = sbr.rel (0) target = $region5
    $region4: #{tpu_custom_call.1} parent=1 // pred_region
      _
    $region5: #{tpu_custom_call.1} parent=1 // pred_fallthru
      _
    // Predicated region
    $region6: #{tpu_custom_call.1} parent=1 // pred_check
      _
    $region7: #{tpu_custom_call.1} parent=1 // pred_check_branch
      %21 = sbr.rel (0) target = $region9
    $region8: #{tpu_custom_call.1} parent=1 // pred_region
      _
    $region9: #{tpu_custom_call.1} parent=1 // pred_fallthru
      _
    // Predicated region
    $region10: #{tpu_custom_call.1} parent=1 // pred_check
      _
    $region11: #{tpu_custom_call.1} parent=1 // pred_check_branch
      %23 = sbr.rel (0) target = $region13
    $region12: #{tpu_custom_call.1} parent=1 // pred_region
      _
    $region13: #{tpu_custom_call.1} parent=1 // pred_fallthru
      _
    // Predicated region
    $region14: #{tpu_custom_call.1} parent=1 // pred_check
      _
    $region15: #{tpu_custom_call.1} parent=1 // pred_check_branch
      %25 = sbr.rel (0) target = $region17
    $region16: #{tpu_custom_call.1} parent=1 // pred_region
      _
    $region17: #{tpu_custom_call.1} parent=1 // pred_fallthru
      _
    %s27 = smul.u32 0, 2
    %s28 = smul.u32 %s27, 128
    %s29 = sld [smem:[#allocation5 + %s28]]
    %p30 = scmp.gt.s32.totalorder %s29, 0
    %s31 = scalar_select %p30, %s29, 0
    %p32 = scmp.lt.s32.totalorder %s31, 99
    %s33 = scalar_select %p32, %s31, 99
    %s34 = sadd.s32 %s28, 1
    %s35 = sld [smem:[#allocation5 + %s34]]
    %p36 = scmp.gt.s32.totalorder %s35, 0
    %s37 = scalar_select %p36, %s35, 0
    %p38 = scmp.lt.s32.totalorder %s37, 99
    %s39 = scalar_select %p38, %s37, 99
    %s40 = sadd.s32 %s28, 2
    %s41 = sld [smem:[#allocation5 + %s40]]
    %p42 = scmp.gt.s32.totalorder %s41, 0
    %s43 = scalar_select %p42, %s41, 0
    %p44 = scmp.lt.s32.totalorder %s43, 99
    %s45 = scalar_select %p44, %s43, 99
    %s46 = sadd.s32 %s28, 3
    %s47 = sld [smem:[#allocation5 + %s46]]
    %p48 = scmp.gt.s32.totalorder %s47, 0
    %s49 = scalar_select %p48, %s47, 0
    %p50 = scmp.lt.s32.totalorder %s49, 99
    %s51 = scalar_select %p50, %s49, 99
    %s52 = sadd.s32 %s28, 4
    %s53 = sld [smem:[#allocation5 + %s52]]
    %p54 = scmp.gt.s32.totalorder %s53, 0
    %s55 = scalar_select %p54, %s53, 0
    %p56 = scmp.lt.s32.totalorder %s55, 99
    %s57 = scalar_select %p56, %s55, 99
    %s58 = sadd.s32 %s28, 5
    %s59 = sld [smem:[#allocation5 + %s58]]
    %p60 = scmp.gt.s32.totalorder %s59, 0
    %s61 = scalar_select %p60, %s59, 0
    %p62 = scmp.lt.s32.totalorder %s61, 99
    %s63 = scalar_select %p62, %s61, 99
    %s64 = sadd.s32 %s28, 6
    %s65 = sld [smem:[#allocation5 + %s64]]
    %p66 = scmp.gt.s32.totalorder %s65, 0
    %s67 = scalar_select %p66, %s65, 0
    %p68 = scmp.lt.s32.totalorder %s67, 99
    %s69 = scalar_select %p68, %s67, 99
    %s70 = sadd.s32 %s28, 7
    %s71 = sld [smem:[#allocation5 + %s70]]
    %p72 = scmp.gt.s32.totalorder %s71, 0
    %s73 = scalar_select %p72, %s71, 0
    %p74 = scmp.lt.s32.totalorder %s73, 99
    %s75 = scalar_select %p74, %s73, 99
    %s76 = sadd.s32 %s28, 8
    %s77 = sld [smem:[#allocation5 + %s76]]
    %p78 = scmp.gt.s32.totalorder %s77, 0
    %s79 = scalar_select %p78, %s77, 0
    %p80 = scmp.lt.s32.totalorder %s79, 99
    %s81 = scalar_select %p80, %s79, 99
    %s82 = sadd.s32 %s28, 9
    %s83 = sld [smem:[#allocation5 + %s82]]
    %p84 = scmp.gt.s32.totalorder %s83, 0
    %s85 = scalar_select %p84, %s83, 0
    %p86 = scmp.lt.s32.totalorder %s85, 99
    %s87 = scalar_select %p86, %s85, 99
    %s88 = sadd.s32 %s28, 10
    %s89 = sld [smem:[#allocation5 + %s88]]
    %p90 = scmp.gt.s32.totalorder %s89, 0
    %s91 = scalar_select %p90, %s89, 0
    %p92 = scmp.lt.s32.totalorder %s91, 99
    %s93 = scalar_select %p92, %s91, 99
    %s94 = sadd.s32 %s28, 11
    %s95 = sld [smem:[#allocation5 + %s94]]
    %p96 = scmp.gt.s32.totalorder %s95, 0
    %s97 = scalar_select %p96, %s95, 0
    %p98 = scmp.lt.s32.totalorder %s97, 99
    %s99 = scalar_select %p98, %s97, 99
    %s100 = sadd.s32 %s28, 12
    %s101 = sld [smem:[#allocation5 + %s100]]
    %p102 = scmp.gt.s32.totalorder %s101, 0
    %s103 = scalar_select %p102, %s101, 0
    %p104 = scmp.lt.s32.totalorder %s103, 99
    %s105 = scalar_select %p104, %s103, 99
    %s106 = sadd.s32 %s28, 13
    %s107 = sld [smem:[#allocation5 + %s106]]
    %p108 = scmp.gt.s32.totalorder %s107, 0
    %s109 = scalar_select %p108, %s107, 0
    %p110 = scmp.lt.s32.totalorder %s109, 99
    %s111 = scalar_select %p110, %s109, 99
    %s112 = sadd.s32 %s28, 14
    %s113 = sld [smem:[#allocation5 + %s112]]
    %p114 = scmp.gt.s32.totalorder %s113, 0
    %s115 = scalar_select %p114, %s113, 0
    %p116 = scmp.lt.s32.totalorder %s115, 99
    %s117 = scalar_select %p116, %s115, 99
    %s118 = sadd.s32 %s28, 15
    %s119 = sld [smem:[#allocation5 + %s118]]
    %p120 = scmp.gt.s32.totalorder %s119, 0
    %s121 = scalar_select %p120, %s119, 0
    %p122 = scmp.lt.s32.totalorder %s121, 99
    %s123 = scalar_select %p122, %s121, 99
    %s124 = sadd.s32 %s27, 1
    %s125 = smul.u32 %s124, 128
    %s126 = sld [smem:[#allocation5 + %s125]]
    %p127 = scmp.gt.s32.totalorder %s126, 0
    %s128 = scalar_select %p127, %s126, 0
    %p129 = scmp.lt.s32.totalorder %s128, 99
    %s130 = scalar_select %p129, %s128, 99
    %s131 = sadd.s32 %s125, 1
    %s132 = sld [smem:[#allocation5 + %s131]]
    %p133 = scmp.gt.s32.totalorder %s132, 0
    %s134 = scalar_select %p133, %s132, 0
    %p135 = scmp.lt.s32.totalorder %s134, 99
    %s136 = scalar_select %p135, %s134, 99
    %s137 = sadd.s32 %s125, 2
    %s138 = sld [smem:[#allocation5 + %s137]]
    %p139 = scmp.gt.s32.totalorder %s138, 0
    %s140 = scalar_select %p139, %s138, 0
    %p141 = scmp.lt.s32.totalorder %s140, 99
    %s142 = scalar_select %p141, %s140, 99
    %s143 = sadd.s32 %s125, 3
    %s144 = sld [smem:[#allocation5 + %s143]]
    %p145 = scmp.gt.s32.totalorder %s144, 0
    %s146 = scalar_select %p145, %s144, 0
    %p147 = scmp.lt.s32.totalorder %s146, 99
    %s148 = scalar_select %p147, %s146, 99
    %s149 = sadd.s32 %s125, 4
    %s150 = sld [smem:[#allocation5 + %s149]]
    %p151 = scmp.gt.s32.totalorder %s150, 0
    %s152 = scalar_select %p151, %s150, 0
    %p153 = scmp.lt.s32.totalorder %s152, 99
    %s154 = scalar_select %p153, %s152, 99
    %s155 = sadd.s32 %s125, 5
    %s156 = sld [smem:[#allocation5 + %s155]]
    %p157 = scmp.gt.s32.totalorder %s156, 0
    %s158 = scalar_select %p157, %s156, 0
    %p159 = scmp.lt.s32.totalorder %s158, 99
    %s160 = scalar_select %p159, %s158, 99
    %s161 = sadd.s32 %s125, 6
    %s162 = sld [smem:[#allocation5 + %s161]]
    %p163 = scmp.gt.s32.totalorder %s162, 0
    %s164 = scalar_select %p163, %s162, 0
    %p165 = scmp.lt.s32.totalorder %s164, 99
    %s166 = scalar_select %p165, %s164, 99
    %s167 = sadd.s32 %s125, 7
    %s168 = sld [smem:[#allocation5 + %s167]]
    %p169 = scmp.gt.s32.totalorder %s168, 0
    %s170 = scalar_select %p169, %s168, 0
    %p171 = scmp.lt.s32.totalorder %s170, 99
    %s172 = scalar_select %p171, %s170, 99
    %s173 = sadd.s32 %s125, 8
    %s174 = sld [smem:[#allocation5 + %s173]]
    %p175 = scmp.gt.s32.totalorder %s174, 0
    %s176 = scalar_select %p175, %s174, 0
    %p177 = scmp.lt.s32.totalorder %s176, 99
    %s178 = scalar_select %p177, %s176, 99
    %s179 = sadd.s32 %s125, 9
    %s180 = sld [smem:[#allocation5 + %s179]]
    %p181 = scmp.gt.s32.totalorder %s180, 0
    %s182 = scalar_select %p181, %s180, 0
    %p183 = scmp.lt.s32.totalorder %s182, 99
    %s184 = scalar_select %p183, %s182, 99
    %s185 = sadd.s32 %s125, 10
    %s186 = sld [smem:[#allocation5 + %s185]]
    %p187 = scmp.gt.s32.totalorder %s186, 0
    %s188 = scalar_select %p187, %s186, 0
    %p189 = scmp.lt.s32.totalorder %s188, 99
    %s190 = scalar_select %p189, %s188, 99
    %s191 = sadd.s32 %s125, 11
    %s192 = sld [smem:[#allocation5 + %s191]]
    %p193 = scmp.gt.s32.totalorder %s192, 0
    %s194 = scalar_select %p193, %s192, 0
    %p195 = scmp.lt.s32.totalorder %s194, 99
    %s196 = scalar_select %p195, %s194, 99
    %s197 = sadd.s32 %s125, 12
    %s198 = sld [smem:[#allocation5 + %s197]]
    %p199 = scmp.gt.s32.totalorder %s198, 0
    %s200 = scalar_select %p199, %s198, 0
    %p201 = scmp.lt.s32.totalorder %s200, 99
    %s202 = scalar_select %p201, %s200, 99
    %s203 = sadd.s32 %s125, 13
    %s204 = sld [smem:[#allocation5 + %s203]]
    %p205 = scmp.gt.s32.totalorder %s204, 0
    %s206 = scalar_select %p205, %s204, 0
    %p207 = scmp.lt.s32.totalorder %s206, 99
    %s208 = scalar_select %p207, %s206, 99
    %s209 = sadd.s32 %s125, 14
    %s210 = sld [smem:[#allocation5 + %s209]]
    %p211 = scmp.gt.s32.totalorder %s210, 0
    %s212 = scalar_select %p211, %s210, 0
    %p213 = scmp.lt.s32.totalorder %s212, 99
    %s214 = scalar_select %p213, %s212, 99
    %s215 = sadd.s32 %s125, 15
    %s216 = sld [smem:[#allocation5 + %s215]]
    %p217 = scmp.gt.s32.totalorder %s216, 0
    %s218 = scalar_select %p217, %s216, 0
    %p219 = scmp.lt.s32.totalorder %s218, 99
    %s220 = scalar_select %p219, %s218, 99
    %s221 = scalar_lea.vmem %s1, %s33
    %p223 = scmp.lt.u32.totalorder 1, 8
    %p224 = pneg %p223
    // Predicated region
    $region18: #{tpu_custom_call.1} parent=1 // pred_check
      _
    $region19: #{tpu_custom_call.1} parent=1 // pred_check_branch
      %226 = sbr.rel (%p223) target = $region21
    $region20: #{tpu_custom_call.1} parent=1 // pred_region
      %s242 = sand.u32 1, 7
      %p243 = scmp.eq.s32.totalorder %s242, 0
      %p244 = pneg %p243
      // Predicated region
      $region33: #{tpu_custom_call.1} parent=20 // pred_check
        _
      $region34: #{tpu_custom_call.1} parent=20 // pred_check_branch
        %246 = sbr.rel (%p243) target = $region36
      $region35: #{tpu_custom_call.1} parent=20 // pred_region
        %s247 = sand.u32 1, 7
        %s248 = ssub.s32 1, %s247
        %s249 = scalar_lea.vmem %s221, %s248
        %s250 = ssub.s32 1, %s247
        %s251 = scalar_lea.vmem [#allocation2], %s250
        %s252 = sshll.u32 1, %s247
        %s253 = ssub.s32 %s252, 1
        loop: start=0, step=1, limit=1
        $region37: #{tpu_custom_call.1} parent=35 // loop_pre_header
          _
        $region38: #{tpu_custom_call.1} parent=35 // loop_header
          %s255 = sphi 0, %s259
          %p256 = scmp.ge.s32.totalorder %s255, 1
          %s260 = sphi %s249, %s249
          %s261 = sphi %s251, %s251
        $region39: #{tpu_custom_call.1} parent=35 // loop_header_branch
          %258 = sbr.rel (%p256) target = $region43
        $region40: #{tpu_custom_call.1} parent=35 // loop_body
          %v262 = vld [vmem:[%s260] sm:%s253]
          %263 = vst [vmem:[%s261] sm:%s253] %v262
        $region41: #{tpu_custom_call.1} parent=35 // loop_footer
          %s259 = sadd.s32 1, %s255
        $region42: #{tpu_custom_call.1} parent=35 // loop_footer_branch
          %254 = sbr.rel target = $region38
        $region43: #{tpu_custom_call.1} parent=35 // loop_exit
          _
      $region36: #{tpu_custom_call.1} parent=20 // pred_fallthru
        _
    $region21: #{tpu_custom_call.1} parent=1 // pred_fallthru
      _
    // Predicated region
    $region22: #{tpu_custom_call.1} parent=1 // pred_check
      %p227 = pneg %p223
    $region23: #{tpu_custom_call.1} parent=1 // pred_check_branch
      %229 = sbr.rel (%p227) target = $region25
    $region24: #{tpu_custom_call.1} parent=1 // pred_region
      %s230 = sshll.u32 1, 1
      %s231 = ssub.s32 %s230, 1
      loop: start=0, step=1, limit=1
      $region26: #{tpu_custom_call.1} parent=24 // loop_pre_header
        _
      $region27: #{tpu_custom_call.1} parent=24 // loop_header
        %s233 = sphi 0, %s237
        %p234 = scmp.ge.s32.totalorder %s233, 1
        %s238 = sphi %s221, %s221
        %s239 = sphi [#allocation2], [#allocation2]
      $region28: #{tpu_custom_call.1} parent=24 // loop_header_branch
        %236 = sbr.rel (%p234) target = $region32
      $region29: #{tpu_custom_call.1} parent=24 // loop_body
        %v240 = vld [vmem:[%s238] sm:%s231]
        %241 = vst [vmem:[%s239] sm:%s231] %v240
      $region30: #{tpu_custom_call.1} parent=24 // loop_footer
        %s237 = sadd.s32 1, %s233
      $region31: #{tpu_custom_call.1} parent=24 // loop_footer_branch
        %232 = sbr.rel target = $region27
      $region32: #{tpu_custom_call.1} parent=24 // loop_exit
        _
    $region25: #{tpu_custom_call.1} parent=1 // pred_fallthru
      _
    // Predicated region
    $region44: #{tpu_custom_call.1} parent=1 // pred_check
      _
    $region45: #{tpu_custom_call.1} parent=1 // pred_check_branch
      %266 = sbr.rel (0) target = $region47
    $region46: #{tpu_custom_call.1} parent=1 // pred_region
      %267 = vsyncadd [#allocation3], 16
    $region47: #{tpu_custom_call.1} parent=1 // pred_fallthru
      _
    %s268 = scalar_lea.vmem %s1, %s39
    %s269 = scalar_lea.vmem [#allocation2], 1
    %s270 = scalar_lea.sflag [#allocation3], 1
    %p272 = scmp.lt.u32.totalorder 1, 8
    %p273 = pneg %p272
    // Predicated region
    $region48: #{tpu_custom_call.1} parent=1 // pred_check
      _
    $region49: #{tpu_custom_call.1} parent=1 // pred_check_branch
      %275 = sbr.rel (%p272) target = $region51
    $region50: #{tpu_custom_call.1} parent=1 // pred_region
      %s291 = sand.u32 1, 7
      %p292 = scmp.eq.s32.totalorder %s291, 0
      %p293 = pneg %p292
      // Predicated region
      $region63: #{tpu_custom_call.1} parent=50 // pred_check
        _
      $region64: #{tpu_custom_call.1} parent=50 // pred_check_branch
        %295 = sbr.rel (%p292) target = $region66
      $region65: #{tpu_custom_call.1} parent=50 // pred_region
        %s296 = sand.u32 1, 7
        %s297 = ssub.s32 1, %s296
        %s298 = scalar_lea.vmem %s268, %s297
        %s299 = ssub.s32 1, %s296
        %s300 = scalar_lea.vmem %s269, %s299 [#allocation2]
        %s301 = sshll.u32 1, %s296
        %s302 = ssub.s32 %s301, 1
        loop: start=0, step=1, limit=1
        $region67: #{tpu_custom_call.1} parent=65 // loop_pre_header
          _
        $region68: #{tpu_custom_call.1} parent=65 // loop_header
          %s304 = sphi 0, %s308
          %p305 = scmp.ge.s32.totalorder %s304, 1
          %s309 = sphi %s298, %s298
          %s310 = sphi %s300, %s300
        $region69: #{tpu_custom_call.1} parent=65 // loop_header_branch
          %307 = sbr.rel (%p305) target = $region73
        $region70: #{tpu_custom_call.1} parent=65 // loop_body
          %v311 = vld [vmem:[%s309] sm:%s302]
          %312 = vst [vmem:[%s310] sm:%s302] %v311
        $region71: #{tpu_custom_call.1} parent=65 // loop_footer
          %s308 = sadd.s32 1, %s304
        $region72: #{tpu_custom_call.1} parent=65 // loop_footer_branch
          %303 = sbr.rel target = $region68
        $region73: #{tpu_custom_call.1} parent=65 // loop_exit
          _
      $region66: #{tpu_custom_call.1} parent=50 // pred_fallthru
        _
    $region51: #{tpu_custom_call.1} parent=1 // pred_fallthru
      _
    // Predicated region
    $region52: #{tpu_custom_call.1} parent=1 // pred_check
      %p276 = pneg %p272
    $region53: #{tpu_custom_call.1} parent=1 // pred_check_branch
      %278 = sbr.rel (%p276) target = $region55
    $region54: #{tpu_custom_call.1} parent=1 // pred_region
      %s279 = sshll.u32 1, 1
      %s280 = ssub.s32 %s279, 1
      loop: start=0, step=1, limit=1
      $region56: #{tpu_custom_call.1} parent=54 // loop_pre_header
        _
      $region57: #{tpu_custom_call.1} parent=54 // loop_header
        %s282 = sphi 0, %s286
        %p283 = scmp.ge.s32.totalorder %s282, 1
        %s287 = sphi %s268, %s268
        %s288 = sphi %s269, %s269
      $region58: #{tpu_custom_call.1} parent=54 // loop_header_branch
        %285 = sbr.rel (%p283) target = $region62
      $region59: #{tpu_custom_call.1} parent=54 // loop_body
        %v289 = vld [vmem:[%s287] sm:%s280]
        %290 = vst [vmem:[%s288] sm:%s280] %v289
      $region60: #{tpu_custom_call.1} parent=54 // loop_footer
        %s286 = sadd.s32 1, %s282
      $region61: #{tpu_custom_call.1} parent=54 // loop_footer_branch
        %281 = sbr.rel target = $region57
      $region62: #{tpu_custom_call.1} parent=54 // loop_exit
        _
    $region55: #{tpu_custom_call.1} parent=1 // pred_fallthru
      _
    // Predicated region
    $region74: #{tpu_custom_call.1} parent=1 // pred_check
      _
    $region75: #{tpu_custom_call.1} parent=1 // pred_check_branch
      %315 = sbr.rel (0) target = $region77
    $region76: #{tpu_custom_call.1} parent=1 // pred_region
      %316 = vsyncadd %s270, 16
    $region77: #{tpu_custom_call.1} parent=1 // pred_fallthru
      _
    %s317 = scalar_lea.vmem %s1, %s45
    %s318 = scalar_lea.vmem [#allocation2], 2
    %s319 = scalar_lea.sflag [#allocation3], 2
    %p321 = scmp.lt.u32.totalorder 1, 8
    %p322 = pneg %p321
    // Predicated region
    $region78: #{tpu_custom_call.1} parent=1 // pred_check
      _
    $region79: #{tpu_custom_call.1} parent=1 // pred_check_branch
      %324 = sbr.rel (%p321) target = $region81
    $region80: #{tpu_custom_call.1} parent=1 // pred_region
      %s340 = sand.u32 1, 7
      %p341 = scmp.eq.s32.totalorder %s340, 0
      %p342 = pneg %p341
      // Predicated region
      $region93: #{tpu_custom_call.1} parent=80 // pred_check
        _
      $region94: #{tpu_custom_call.1} parent=80 // pred_check_branch
        %344 = sbr.rel (%p341) target = $region96
      $region95: #{tpu_custom_call.1} parent=80 // pred_region
        %s345 = sand.u32 1, 7
        %s346 = ssub.s32 1, %s345
        %s347 = scalar_lea.vmem %s317, %s346
        %s348 = ssub.s32 1, %s345
        %s349 = scalar_lea.vmem %s318, %s348 [#allocation2]
        %s350 = sshll.u32 1, %s345
        %s351 = ssub.s32 %s350, 1
        loop: start=0, step=1, limit=1
        $region97: #{tpu_custom_call.1} parent=95 // loop_pre_header
          _
        $region98: #{tpu_custom_call.1} parent=95 // loop_header
          %s353 = sphi 0, %s357
          %p354 = scmp.ge.s32.totalorder %s353, 1
          %s358 = sphi %s347, %s347
          %s359 = sphi %s349, %s349
        $region99: #{tpu_custom_call.1} parent=95 // loop_header_branch
          %356 = sbr.rel (%p354) target = $region103
        $region100: #{tpu_custom_call.1} parent=95 // loop_body
          %v360 = vld [vmem:[%s358] sm:%s351]
          %361 = vst [vmem:[%s359] sm:%s351] %v360
        $region101: #{tpu_custom_call.1} parent=95 // loop_footer
          %s357 = sadd.s32 1, %s353
        $region102: #{tpu_custom_call.1} parent=95 // loop_footer_branch
          %352 = sbr.rel target = $region98
        $region103: #{tpu_custom_call.1} parent=95 // loop_exit
          _
      $region96: #{tpu_custom_call.1} parent=80 // pred_fallthru
        _
    $region81: #{tpu_custom_call.1} parent=1 // pred_fallthru
      _
    // Predicated region
    $region82: #{tpu_custom_call.1} parent=1 // pred_check
      %p325 = pneg %p321
    $region83: #{tpu_custom_call.1} parent=1 // pred_check_branch
      %327 = sbr.rel (%p325) target = $region85
    $region84: #{tpu_custom_call.1} parent=1 // pred_region
      %s328 = sshll.u32 1, 1
      %s329 = ssub.s32 %s328, 1
      loop: start=0, step=1, limit=1
      $region86: #{tpu_custom_call.1} parent=84 // loop_pre_header
        _
      $region87: #{tpu_custom_call.1} parent=84 // loop_header
        %s331 = sphi 0, %s335
        %p332 = scmp.ge.s32.totalorder %s331, 1
        %s336 = sphi %s317, %s317
        %s337 = sphi %s318, %s318
      $region88: #{tpu_custom_call.1} parent=84 // loop_header_branch
        %334 = sbr.rel (%p332) target = $region92
      $region89: #{tpu_custom_call.1} parent=84 // loop_body
        %v338 = vld [vmem:[%s336] sm:%s329]
        %339 = vst [vmem:[%s337] sm:%s329] %v338
      $region90: #{tpu_custom_call.1} parent=84 // loop_footer
        %s335 = sadd.s32 1, %s331
      $region91: #{tpu_custom_call.1} parent=84 // loop_footer_branch
        %330 = sbr.rel target = $region87
      $region92: #{tpu_custom_call.1} parent=84 // loop_exit
        _
    $region85: #{tpu_custom_call.1} parent=1 // pred_fallthru
      _
    // Predicated region
    $region104: #{tpu_custom_call.1} parent=1 // pred_check
      _
    $region105: #{tpu_custom_call.1} parent=1 // pred_check_branch
      %364 = sbr.rel (0) target = $region107
    $region106: #{tpu_custom_call.1} parent=1 // pred_region
      %365 = vsyncadd %s319, 16
    $region107: #{tpu_custom_call.1} parent=1 // pred_fallthru
      _
    %s366 = scalar_lea.vmem %s1, %s51
    %s367 = scalar_lea.vmem [#allocation2], 3
    %s368 = scalar_lea.sflag [#allocation3], 3
    %p370 = scmp.lt.u32.totalorder 1, 8
    %p371 = pneg %p370
    // Predicated region
    $region108: #{tpu_custom_call.1} parent=1 // pred_check
      _
    $region109: #{tpu_custom_call.1} parent=1 // pred_check_branch
      %373 = sbr.rel (%p370) target = $region111
    $region110: #{tpu_custom_call.1} parent=1 // pred_region
      %s389 = sand.u32 1, 7
      %p390 = scmp.eq.s32.totalorder %s389, 0
      %p391 = pneg %p390
      // Predicated region
      $region123: #{tpu_custom_call.1} parent=110 // pred_check
        _
      $region124: #{tpu_custom_call.1} parent=110 // pred_check_branch
        %393 = sbr.rel (%p390) target = $region126
      $region125: #{tpu_custom_call.1} parent=110 // pred_region
        %s394 = sand.u32 1, 7
        %s395 = ssub.s32 1, %s394
        %s396 = scalar_lea.vmem %s366, %s395
        %s397 = ssub.s32 1, %s394
        %s398 = scalar_lea.vmem %s367, %s397 [#allocation2]
        %s399 = sshll.u32 1, %s394
        %s400 = ssub.s32 %s399, 1
        loop: start=0, step=1, limit=1
        $region127: #{tpu_custom_call.1} parent=125 // loop_pre_header
          _
        $region128: #{tpu_custom_call.1} parent=125 // loop_header
          %s402 = sphi 0, %s406
          %p403 = scmp.ge.s32.totalorder %s402, 1
          %s407 = sphi %s396, %s396
          %s408 = sphi %s398, %s398
        $region129: #{tpu_custom_call.1} parent=125 // loop_header_branch
          %405 = sbr.rel (%p403) target = $region133
        $region130: #{tpu_custom_call.1} parent=125 // loop_body
          %v409 = vld [vmem:[%s407] sm:%s400]
          %410 = vst [vmem:[%s408] sm:%s400] %v409
        $region131: #{tpu_custom_call.1} parent=125 // loop_footer
          %s406 = sadd.s32 1, %s402
        $region132: #{tpu_custom_call.1} parent=125 // loop_footer_branch
          %401 = sbr.rel target = $region128
        $region133: #{tpu_custom_call.1} parent=125 // loop_exit
          _
      $region126: #{tpu_custom_call.1} parent=110 // pred_fallthru
        _
    $region111: #{tpu_custom_call.1} parent=1 // pred_fallthru
      _
    // Predicated region
    $region112: #{tpu_custom_call.1} parent=1 // pred_check
      %p374 = pneg %p370
    $region113: #{tpu_custom_call.1} parent=1 // pred_check_branch
      %376 = sbr.rel (%p374) target = $region115
    $region114: #{tpu_custom_call.1} parent=1 // pred_region
      %s377 = sshll.u32 1, 1
      %s378 = ssub.s32 %s377, 1
      loop: start=0, step=1, limit=1
      $region116: #{tpu_custom_call.1} parent=114 // loop_pre_header
        _
      $region117: #{tpu_custom_call.1} parent=114 // loop_header
        %s380 = sphi 0, %s384
        %p381 = scmp.ge.s32.totalorder %s380, 1
        %s385 = sphi %s366, %s366
        %s386 = sphi %s367, %s367
      $region118: #{tpu_custom_call.1} parent=114 // loop_header_branch
        %383 = sbr.rel (%p381) target = $region122
      $region119: #{tpu_custom_call.1} parent=114 // loop_body
        %v387 = vld [vmem:[%s385] sm:%s378]
        %388 = vst [vmem:[%s386] sm:%s378] %v387
      $region120: #{tpu_custom_call.1} parent=114 // loop_footer
        %s384 = sadd.s32 1, %s380
      $region121: #{tpu_custom_call.1} parent=114 // loop_footer_branch
        %379 = sbr.rel target = $region117
      $region122: #{tpu_custom_call.1} parent=114 // loop_exit
        _
    $region115: #{tpu_custom_call.1} parent=1 // pred_fallthru
      _
    // Predicated region
    $region134: #{tpu_custom_call.1} parent=1 // pred_check
      _
    $region135: #{tpu_custom_call.1} parent=1 // pred_check_branch
      %413 = sbr.rel (0) target = $region137
    $region136: #{tpu_custom_call.1} parent=1 // pred_region
      %414 = vsyncadd %s368, 16
    $region137: #{tpu_custom_call.1} parent=1 // pred_fallthru
      _
    %s415 = scalar_lea.vmem %s1, %s57
    %s416 = scalar_lea.vmem [#allocation2], 4
    %s417 = scalar_lea.sflag [#allocation3], 4
    %p419 = scmp.lt.u32.totalorder 1, 8
    %p420 = pneg %p419
    // Predicated region
    $region138: #{tpu_custom_call.1} parent=1 // pred_check
      _
    $region139: #{tpu_custom_call.1} parent=1 // pred_check_branch
      %422 = sbr.rel (%p419) target = $region141
    $region140: #{tpu_custom_call.1} parent=1 // pred_region
      %s438 = sand.u32 1, 7
      %p439 = scmp.eq.s32.totalorder %s438, 0
      %p440 = pneg %p439
      // Predicated region
      $region153: #{tpu_custom_call.1} parent=140 // pred_check
        _
      $region154: #{tpu_custom_call.1} parent=140 // pred_check_branch
        %442 = sbr.rel (%p439) target = $region156
      $region155: #{tpu_custom_call.1} parent=140 // pred_region
        %s443 = sand.u32 1, 7
        %s444 = ssub.s32 1, %s443
        %s445 = scalar_lea.vmem %s415, %s444
        %s446 = ssub.s32 1, %s443
        %s447 = scalar_lea.vmem %s416, %s446 [#allocation2]
        %s448 = sshll.u32 1, %s443
        %s449 = ssub.s32 %s448, 1
        loop: start=0, step=1, limit=1
        $region157: #{tpu_custom_call.1} parent=155 // loop_pre_header
          _
        $region158: #{tpu_custom_call.1} parent=155 // loop_header
          %s451 = sphi 0, %s455
          %p452 = scmp.ge.s32.totalorder %s451, 1
          %s456 = sphi %s445, %s445
          %s457 = sphi %s447, %s447
        $region159: #{tpu_custom_call.1} parent=155 // loop_header_branch
          %454 = sbr.rel (%p452) target = $region163
        $region160: #{tpu_custom_call.1} parent=155 // loop_body
          %v458 = vld [vmem:[%s456] sm:%s449]
          %459 = vst [vmem:[%s457] sm:%s449] %v458
        $region161: #{tpu_custom_call.1} parent=155 // loop_footer
          %s455 = sadd.s32 1, %s451
        $region162: #{tpu_custom_call.1} parent=155 // loop_footer_branch
          %450 = sbr.rel target = $region158
        $region163: #{tpu_custom_call.1} parent=155 // loop_exit
          _
      $region156: #{tpu_custom_call.1} parent=140 // pred_fallthru
        _
    $region141: #{tpu_custom_call.1} parent=1 // pred_fallthru
      _
    // Predicated region
    $region142: #{tpu_custom_call.1} parent=1 // pred_check
      %p423 = pneg %p419
    $region143: #{tpu_custom_call.1} parent=1 // pred_check_branch
      %425 = sbr.rel (%p423) target = $region145
    $region144: #{tpu_custom_call.1} parent=1 // pred_region
      %s426 = sshll.u32 1, 1
      %s427 = ssub.s32 %s426, 1
      loop: start=0, step=1, limit=1
      $region146: #{tpu_custom_call.1} parent=144 // loop_pre_header
        _
      $region147: #{tpu_custom_call.1} parent=144 // loop_header
        %s429 = sphi 0, %s433
        %p430 = scmp.ge.s32.totalorder %s429, 1
        %s434 = sphi %s415, %s415
        %s435 = sphi %s416, %s416
      $region148: #{tpu_custom_call.1} parent=144 // loop_header_branch
        %432 = sbr.rel (%p430) target = $region152
      $region149: #{tpu_custom_call.1} parent=144 // loop_body
        %v436 = vld [vmem:[%s434] sm:%s427]
        %437 = vst [vmem:[%s435] sm:%s427] %v436
      $region150: #{tpu_custom_call.1} parent=144 // loop_footer
        %s433 = sadd.s32 1, %s429
      $region151: #{tpu_custom_call.1} parent=144 // loop_footer_branch
        %428 = sbr.rel target = $region147
      $region152: #{tpu_custom_call.1} parent=144 // loop_exit
        _
    $region145: #{tpu_custom_call.1} parent=1 // pred_fallthru
      _
    // Predicated region
    $region164: #{tpu_custom_call.1} parent=1 // pred_check
      _
    $region165: #{tpu_custom_call.1} parent=1 // pred_check_branch
      %462 = sbr.rel (0) target = $region167
    $region166: #{tpu_custom_call.1} parent=1 // pred_region
      %463 = vsyncadd %s417, 16
    $region167: #{tpu_custom_call.1} parent=1 // pred_fallthru
      _
    %s464 = scalar_lea.vmem %s1, %s63
    %s465 = scalar_lea.vmem [#allocation2], 5
    %s466 = scalar_lea.sflag [#allocation3], 5
    %p468 = scmp.lt.u32.totalorder 1, 8
    %p469 = pneg %p468
    // Predicated region
    $region168: #{tpu_custom_call.1} parent=1 // pred_check
      _
    $region169: #{tpu_custom_call.1} parent=1 // pred_check_branch
      %471 = sbr.rel (%p468) target = $region171
    $region170: #{tpu_custom_call.1} parent=1 // pred_region
      %s487 = sand.u32 1, 7
      %p488 = scmp.eq.s32.totalorder %s487, 0
      %p489 = pneg %p488
      // Predicated region
      $region183: #{tpu_custom_call.1} parent=170 // pred_check
        _
      $region184: #{tpu_custom_call.1} parent=170 // pred_check_branch
        %491 = sbr.rel (%p488) target = $region186
      $region185: #{tpu_custom_call.1} parent=170 // pred_region
        %s492 = sand.u32 1, 7
        %s493 = ssub.s32 1, %s492
        %s494 = scalar_lea.vmem %s464, %s493
        %s495 = ssub.s32 1, %s492
        %s496 = scalar_lea.vmem %s465, %s495 [#allocation2]
        %s497 = sshll.u32 1, %s492
        %s498 = ssub.s32 %s497, 1
        loop: start=0, step=1, limit=1
        $region187: #{tpu_custom_call.1} parent=185 // loop_pre_header
          _
        $region188: #{tpu_custom_call.1} parent=185 // loop_header
          %s500 = sphi 0, %s504
          %p501 = scmp.ge.s32.totalorder %s500, 1
          %s505 = sphi %s494, %s494
          %s506 = sphi %s496, %s496
        $region189: #{tpu_custom_call.1} parent=185 // loop_header_branch
          %503 = sbr.rel (%p501) target = $region193
        $region190: #{tpu_custom_call.1} parent=185 // loop_body
          %v507 = vld [vmem:[%s505] sm:%s498]
          %508 = vst [vmem:[%s506] sm:%s498] %v507
        $region191: #{tpu_custom_call.1} parent=185 // loop_footer
          %s504 = sadd.s32 1, %s500
        $region192: #{tpu_custom_call.1} parent=185 // loop_footer_branch
          %499 = sbr.rel target = $region188
        $region193: #{tpu_custom_call.1} parent=185 // loop_exit
          _
      $region186: #{tpu_custom_call.1} parent=170 // pred_fallthru
        _
    $region171: #{tpu_custom_call.1} parent=1 // pred_fallthru
      _
    // Predicated region
    $region172: #{tpu_custom_call.1} parent=1 // pred_check
      %p472 = pneg %p468
    $region173: #{tpu_custom_call.1} parent=1 // pred_check_branch
      %474 = sbr.rel (%p472) target = $region175
    $region174: #{tpu_custom_call.1} parent=1 // pred_region
      %s475 = sshll.u32 1, 1
      %s476 = ssub.s32 %s475, 1
      loop: start=0, step=1, limit=1
      $region176: #{tpu_custom_call.1} parent=174 // loop_pre_header
        _
      $region177: #{tpu_custom_call.1} parent=174 // loop_header
        %s478 = sphi 0, %s482
        %p479 = scmp.ge.s32.totalorder %s478, 1
        %s483 = sphi %s464, %s464
        %s484 = sphi %s465, %s465
      $region178: #{tpu_custom_call.1} parent=174 // loop_header_branch
        %481 = sbr.rel (%p479) target = $region182
      $region179: #{tpu_custom_call.1} parent=174 // loop_body
        %v485 = vld [vmem:[%s483] sm:%s476]
        %486 = vst [vmem:[%s484] sm:%s476] %v485
      $region180: #{tpu_custom_call.1} parent=174 // loop_footer
        %s482 = sadd.s32 1, %s478
      $region181: #{tpu_custom_call.1} parent=174 // loop_footer_branch
        %477 = sbr.rel target = $region177
      $region182: #{tpu_custom_call.1} parent=174 // loop_exit
        _
    $region175: #{tpu_custom_call.1} parent=1 // pred_fallthru
      _
    // Predicated region
    $region194: #{tpu_custom_call.1} parent=1 // pred_check
      _
    $region195: #{tpu_custom_call.1} parent=1 // pred_check_branch
      %511 = sbr.rel (0) target = $region197
    $region196: #{tpu_custom_call.1} parent=1 // pred_region
      %512 = vsyncadd %s466, 16
    $region197: #{tpu_custom_call.1} parent=1 // pred_fallthru
      _
    %s513 = scalar_lea.vmem %s1, %s69
    %s514 = scalar_lea.vmem [#allocation2], 6
    %s515 = scalar_lea.sflag [#allocation3], 6
    %p517 = scmp.lt.u32.totalorder 1, 8
    %p518 = pneg %p517
    // Predicated region
    $region198: #{tpu_custom_call.1} parent=1 // pred_check
      _
    $region199: #{tpu_custom_call.1} parent=1 // pred_check_branch
      %520 = sbr.rel (%p517) target = $region201
    $region200: #{tpu_custom_call.1} parent=1 // pred_region
      %s536 = sand.u32 1, 7
      %p537 = scmp.eq.s32.totalorder %s536, 0
      %p538 = pneg %p537
      // Predicated region
      $region213: #{tpu_custom_call.1} parent=200 // pred_check
        _
      $region214: #{tpu_custom_call.1} parent=200 // pred_check_branch
        %540 = sbr.rel (%p537) target = $region216
      $region215: #{tpu_custom_call.1} parent=200 // pred_region
        %s541 = sand.u32 1, 7
        %s542 = ssub.s32 1, %s541
        %s543 = scalar_lea.vmem %s513, %s542
        %s544 = ssub.s32 1, %s541
        %s545 = scalar_lea.vmem %s514, %s544 [#allocation2]
        %s546 = sshll.u32 1, %s541
        %s547 = ssub.s32 %s546, 1
        loop: start=0, step=1, limit=1
        $region217: #{tpu_custom_call.1} parent=215 // loop_pre_header
          _
        $region218: #{tpu_custom_call.1} parent=215 // loop_header
          %s549 = sphi 0, %s553
          %p550 = scmp.ge.s32.totalorder %s549, 1
          %s554 = sphi %s543, %s543
          %s555 = sphi %s545, %s545
        $region219: #{tpu_custom_call.1} parent=215 // loop_header_branch
          %552 = sbr.rel (%p550) target = $region223
        $region220: #{tpu_custom_call.1} parent=215 // loop_body
          %v556 = vld [vmem:[%s554] sm:%s547]
          %557 = vst [vmem:[%s555] sm:%s547] %v556
        $region221: #{tpu_custom_call.1} parent=215 // loop_footer
          %s553 = sadd.s32 1, %s549
        $region222: #{tpu_custom_call.1} parent=215 // loop_footer_branch
          %548 = sbr.rel target = $region218
        $region223: #{tpu_custom_call.1} parent=215 // loop_exit
          _
      $region216: #{tpu_custom_call.1} parent=200 // pred_fallthru
        _
    $region201: #{tpu_custom_call.1} parent=1 // pred_fallthru
      _
    // Predicated region
    $region202: #{tpu_custom_call.1} parent=1 // pred_check
      %p521 = pneg %p517
    $region203: #{tpu_custom_call.1} parent=1 // pred_check_branch
      %523 = sbr.rel (%p521) target = $region205
    $region204: #{tpu_custom_call.1} parent=1 // pred_region
      %s524 = sshll.u32 1, 1
      %s525 = ssub.s32 %s524, 1
      loop: start=0, step=1, limit=1
      $region206: #{tpu_custom_call.1} parent=204 // loop_pre_header
        _
      $region207: #{tpu_custom_call.1} parent=204 // loop_header
        %s527 = sphi 0, %s531
        %p528 = scmp.ge.s32.totalorder %s527, 1
        %s532 = sphi %s513, %s513
        %s533 = sphi %s514, %s514
      $region208: #{tpu_custom_call.1} parent=204 // loop_header_branch
        %530 = sbr.rel (%p528) target = $region212
      $region209: #{tpu_custom_call.1} parent=204 // loop_body
        %v534 = vld [vmem:[%s532] sm:%s525]
        %535 = vst [vmem:[%s533] sm:%s525] %v534
      $region210: #{tpu_custom_call.1} parent=204 // loop_footer
        %s531 = sadd.s32 1, %s527
      $region211: #{tpu_custom_call.1} parent=204 // loop_footer_branch
        %526 = sbr.rel target = $region207
      $region212: #{tpu_custom_call.1} parent=204 // loop_exit
        _
    $region205: #{tpu_custom_call.1} parent=1 // pred_fallthru
      _
    // Predicated region
    $region224: #{tpu_custom_call.1} parent=1 // pred_check
      _
    $region225: #{tpu_custom_call.1} parent=1 // pred_check_branch
      %560 = sbr.rel (0) target = $region227
    $region226: #{tpu_custom_call.1} parent=1 // pred_region
      %561 = vsyncadd %s515, 16
    $region227: #{tpu_custom_call.1} parent=1 // pred_fallthru
      _
    %s562 = scalar_lea.vmem %s1, %s75
    %s563 = scalar_lea.vmem [#allocation2], 7
    %s564 = scalar_lea.sflag [#allocation3], 7
    %p566 = scmp.lt.u32.totalorder 1, 8
    %p567 = pneg %p566
    // Predicated region
    $region228: #{tpu_custom_call.1} parent=1 // pred_check
      _
    $region229: #{tpu_custom_call.1} parent=1 // pred_check_branch
      %569 = sbr.rel (%p566) target = $region231
    $region230: #{tpu_custom_call.1} parent=1 // pred_region
      %s585 = sand.u32 1, 7
      %p586 = scmp.eq.s32.totalorder %s585, 0
      %p587 = pneg %p586
      // Predicated region
      $region243: #{tpu_custom_call.1} parent=230 // pred_check
        _
      $region244: #{tpu_custom_call.1} parent=230 // pred_check_branch
        %589 = sbr.rel (%p586) target = $region246
      $region245: #{tpu_custom_call.1} parent=230 // pred_region
        %s590 = sand.u32 1, 7
        %s591 = ssub.s32 1, %s590
        %s592 = scalar_lea.vmem %s562, %s591
        %s593 = ssub.s32 1, %s590
        %s594 = scalar_lea.vmem %s563, %s593 [#allocation2]
        %s595 = sshll.u32 1, %s590
        %s596 = ssub.s32 %s595, 1
        loop: start=0, step=1, limit=1
        $region247: #{tpu_custom_call.1} parent=245 // loop_pre_header
          _
        $region248: #{tpu_custom_call.1} parent=245 // loop_header
          %s598 = sphi 0, %s602
          %p599 = scmp.ge.s32.totalorder %s598, 1
          %s603 = sphi %s592, %s592
          %s604 = sphi %s594, %s594
        $region249: #{tpu_custom_call.1} parent=245 // loop_header_branch
          %601 = sbr.rel (%p599) target = $region253
        $region250: #{tpu_custom_call.1} parent=245 // loop_body
          %v605 = vld [vmem:[%s603] sm:%s596]
          %606 = vst [vmem:[%s604] sm:%s596] %v605
        $region251: #{tpu_custom_call.1} parent=245 // loop_footer
          %s602 = sadd.s32 1, %s598
        $region252: #{tpu_custom_call.1} parent=245 // loop_footer_branch
          %597 = sbr.rel target = $region248
        $region253: #{tpu_custom_call.1} parent=245 // loop_exit
          _
      $region246: #{tpu_custom_call.1} parent=230 // pred_fallthru
        _
    $region231: #{tpu_custom_call.1} parent=1 // pred_fallthru
      _
    // Predicated region
    $region232: #{tpu_custom_call.1} parent=1 // pred_check
      %p570 = pneg %p566
    $region233: #{tpu_custom_call.1} parent=1 // pred_check_branch
      %572 = sbr.rel (%p570) target = $region235
    $region234: #{tpu_custom_call.1} parent=1 // pred_region
      %s573 = sshll.u32 1, 1
      %s574 = ssub.s32 %s573, 1
      loop: start=0, step=1, limit=1
      $region236: #{tpu_custom_call.1} parent=234 // loop_pre_header
        _
      $region237: #{tpu_custom_call.1} parent=234 // loop_header
        %s576 = sphi 0, %s580
        %p577 = scmp.ge.s32.totalorder %s576, 1
        %s581 = sphi %s562, %s562
        %s582 = sphi %s563, %s563
      $region238: #{tpu_custom_call.1} parent=234 // loop_header_branch
        %579 = sbr.rel (%p577) target = $region242
      $region239: #{tpu_custom_call.1} parent=234 // loop_body
        %v583 = vld [vmem:[%s581] sm:%s574]
        %584 = vst [vmem:[%s582] sm:%s574] %v583
      $region240: #{tpu_custom_call.1} parent=234 // loop_footer
        %s580 = sadd.s32 1, %s576
      $region241: #{tpu_custom_call.1} parent=234 // loop_footer_branch
        %575 = sbr.rel target = $region237
      $region242: #{tpu_custom_call.1} parent=234 // loop_exit
        _
    $region235: #{tpu_custom_call.1} parent=1 // pred_fallthru
      _
    // Predicated region
    $region254: #{tpu_custom_call.1} parent=1 // pred_check
      _
    $region255: #{tpu_custom_call.1} parent=1 // pred_check_branch
      %609 = sbr.rel (0) target = $region257
    $region256: #{tpu_custom_call.1} parent=1 // pred_region
      %610 = vsyncadd %s564, 16
    $region257: #{tpu_custom_call.1} parent=1 // pred_fallthru
      _
    %s611 = scalar_lea.vmem %s1, %s81
    %s612 = scalar_lea.vmem [#allocation2], 8
    %s613 = scalar_lea.sflag [#allocation3], 8
    %p615 = scmp.lt.u32.totalorder 1, 8
    %p616 = pneg %p615
    // Predicated region
    $region258: #{tpu_custom_call.1} parent=1 // pred_check
      _
    $region259: #{tpu_custom_call.1} parent=1 // pred_check_branch
      %618 = sbr.rel (%p615) target = $region261
    $region260: #{tpu_custom_call.1} parent=1 // pred_region
      %s634 = sand.u32 1, 7
      %p635 = scmp.eq.s32.totalorder %s634, 0
      %p636 = pneg %p635
      // Predicated region
      $region273: #{tpu_custom_call.1} parent=260 // pred_check
        _
      $region274: #{tpu_custom_call.1} parent=260 // pred_check_branch
        %638 = sbr.rel (%p635) target = $region276
      $region275: #{tpu_custom_call.1} parent=260 // pred_region
        %s639 = sand.u32 1, 7
        %s640 = ssub.s32 1, %s639
        %s641 = scalar_lea.vmem %s611, %s640
        %s642 = ssub.s32 1, %s639
        %s643 = scalar_lea.vmem %s612, %s642 [#allocation2]
        %s644 = sshll.u32 1, %s639
        %s645 = ssub.s32 %s644, 1
        loop: start=0, step=1, limit=1
        $region277: #{tpu_custom_call.1} parent=275 // loop_pre_header
          _
        $region278: #{tpu_custom_call.1} parent=275 // loop_header
          %s647 = sphi 0, %s651
          %p648 = scmp.ge.s32.totalorder %s647, 1
          %s652 = sphi %s641, %s641
          %s653 = sphi %s643, %s643
        $region279: #{tpu_custom_call.1} parent=275 // loop_header_branch
          %650 = sbr.rel (%p648) target = $region283
        $region280: #{tpu_custom_call.1} parent=275 // loop_body
          %v654 = vld [vmem:[%s652] sm:%s645]
          %655 = vst [vmem:[%s653] sm:%s645] %v654
        $region281: #{tpu_custom_call.1} parent=275 // loop_footer
          %s651 = sadd.s32 1, %s647
        $region282: #{tpu_custom_call.1} parent=275 // loop_footer_branch
          %646 = sbr.rel target = $region278
        $region283: #{tpu_custom_call.1} parent=275 // loop_exit
          _
      $region276: #{tpu_custom_call.1} parent=260 // pred_fallthru
        _
    $region261: #{tpu_custom_call.1} parent=1 // pred_fallthru
      _
    // Predicated region
    $region262: #{tpu_custom_call.1} parent=1 // pred_check
      %p619 = pneg %p615
    $region263: #{tpu_custom_call.1} parent=1 // pred_check_branch
      %621 = sbr.rel (%p619) target = $region265
    $region264: #{tpu_custom_call.1} parent=1 // pred_region
      %s622 = sshll.u32 1, 1
      %s623 = ssub.s32 %s622, 1
      loop: start=0, step=1, limit=1
      $region266: #{tpu_custom_call.1} parent=264 // loop_pre_header
        _
      $region267: #{tpu_custom_call.1} parent=264 // loop_header
        %s625 = sphi 0, %s629
        %p626 = scmp.ge.s32.totalorder %s625, 1
        %s630 = sphi %s611, %s611
        %s631 = sphi %s612, %s612
      $region268: #{tpu_custom_call.1} parent=264 // loop_header_branch
        %628 = sbr.rel (%p626) target = $region272
      $region269: #{tpu_custom_call.1} parent=264 // loop_body
        %v632 = vld [vmem:[%s630] sm:%s623]
        %633 = vst [vmem:[%s631] sm:%s623] %v632
      $region270: #{tpu_custom_call.1} parent=264 // loop_footer
        %s629 = sadd.s32 1, %s625
      $region271: #{tpu_custom_call.1} parent=264 // loop_footer_branch
        %624 = sbr.rel target = $region267
      $region272: #{tpu_custom_call.1} parent=264 // loop_exit
        _
    $region265: #{tpu_custom_call.1} parent=1 // pred_fallthru
      _
    // Predicated region
    $region284: #{tpu_custom_call.1} parent=1 // pred_check
      _
    $region285: #{tpu_custom_call.1} parent=1 // pred_check_branch
      %658 = sbr.rel (0) target = $region287
    $region286: #{tpu_custom_call.1} parent=1 // pred_region
      %659 = vsyncadd %s613, 16
    $region287: #{tpu_custom_call.1} parent=1 // pred_fallthru
      _
    %s660 = scalar_lea.vmem %s1, %s87
    %s661 = scalar_lea.vmem [#allocation2], 9
    %s662 = scalar_lea.sflag [#allocation3], 9
    %p664 = scmp.lt.u32.totalorder 1, 8
    %p665 = pneg %p664
    // Predicated region
    $region288: #{tpu_custom_call.1} parent=1 // pred_check
      _
    $region289: #{tpu_custom_call.1} parent=1 // pred_check_branch
      %667 = sbr.rel (%p664) target = $region291
    $region290: #{tpu_custom_call.1} parent=1 // pred_region
      %s683 = sand.u32 1, 7
      %p684 = scmp.eq.s32.totalorder %s683, 0
      %p685 = pneg %p684
      // Predicated region
      $region303: #{tpu_custom_call.1} parent=290 // pred_check
        _
      $region304: #{tpu_custom_call.1} parent=290 // pred_check_branch
        %687 = sbr.rel (%p684) target = $region306
      $region305: #{tpu_custom_call.1} parent=290 // pred_region
        %s688 = sand.u32 1, 7
        %s689 = ssub.s32 1, %s688
        %s690 = scalar_lea.vmem %s660, %s689
        %s691 = ssub.s32 1, %s688
        %s692 = scalar_lea.vmem %s661, %s691 [#allocation2]
        %s693 = sshll.u32 1, %s688
        %s694 = ssub.s32 %s693, 1
        loop: start=0, step=1, limit=1
        $region307: #{tpu_custom_call.1} parent=305 // loop_pre_header
          _
        $region308: #{tpu_custom_call.1} parent=305 // loop_header
          %s696 = sphi 0, %s700
          %p697 = scmp.ge.s32.totalorder %s696, 1
          %s701 = sphi %s690, %s690
          %s702 = sphi %s692, %s692
        $region309: #{tpu_custom_call.1} parent=305 // loop_header_branch
          %699 = sbr.rel (%p697) target = $region313
        $region310: #{tpu_custom_call.1} parent=305 // loop_body
          %v703 = vld [vmem:[%s701] sm:%s694]
          %704 = vst [vmem:[%s702] sm:%s694] %v703
        $region311: #{tpu_custom_call.1} parent=305 // loop_footer
          %s700 = sadd.s32 1, %s696
        $region312: #{tpu_custom_call.1} parent=305 // loop_footer_branch
          %695 = sbr.rel target = $region308
        $region313: #{tpu_custom_call.1} parent=305 // loop_exit
          _
      $region306: #{tpu_custom_call.1} parent=290 // pred_fallthru
        _
    $region291: #{tpu_custom_call.1} parent=1 // pred_fallthru
      _
    // Predicated region
    $region292: #{tpu_custom_call.1} parent=1 // pred_check
      %p668 = pneg %p664
    $region293: #{tpu_custom_call.1} parent=1 // pred_check_branch
      %670 = sbr.rel (%p668) target = $region295
    $region294: #{tpu_custom_call.1} parent=1 // pred_region
      %s671 = sshll.u32 1, 1
      %s672 = ssub.s32 %s671, 1
      loop: start=0, step=1, limit=1
      $region296: #{tpu_custom_call.1} parent=294 // loop_pre_header
        _
      $region297: #{tpu_custom_call.1} parent=294 // loop_header
        %s674 = sphi 0, %s678
        %p675 = scmp.ge.s32.totalorder %s674, 1
        %s679 = sphi %s660, %s660
        %s680 = sphi %s661, %s661
      $region298: #{tpu_custom_call.1} parent=294 // loop_header_branch
        %677 = sbr.rel (%p675) target = $region302
      $region299: #{tpu_custom_call.1} parent=294 // loop_body
        %v681 = vld [vmem:[%s679] sm:%s672]
        %682 = vst [vmem:[%s680] sm:%s672] %v681
      $region300: #{tpu_custom_call.1} parent=294 // loop_footer
        %s678 = sadd.s32 1, %s674
      $region301: #{tpu_custom_call.1} parent=294 // loop_footer_branch
        %673 = sbr.rel target = $region297
      $region302: #{tpu_custom_call.1} parent=294 // loop_exit
        _
    $region295: #{tpu_custom_call.1} parent=1 // pred_fallthru
      _
    // Predicated region
    $region314: #{tpu_custom_call.1} parent=1 // pred_check
      _
    $region315: #{tpu_custom_call.1} parent=1 // pred_check_branch
      %707 = sbr.rel (0) target = $region317
    $region316: #{tpu_custom_call.1} parent=1 // pred_region
      %708 = vsyncadd %s662, 16
    $region317: #{tpu_custom_call.1} parent=1 // pred_fallthru
      _
    %s709 = scalar_lea.vmem %s1, %s93
    %s710 = scalar_lea.vmem [#allocation2], 10
    %s711 = scalar_lea.sflag [#allocation3], 10
    %p713 = scmp.lt.u32.totalorder 1, 8
    %p714 = pneg %p713
    // Predicated region
    $region318: #{tpu_custom_call.1} parent=1 // pred_check
      _
    $region319: #{tpu_custom_call.1} parent=1 // pred_check_branch
      %716 = sbr.rel (%p713) target = $region321
    $region320: #{tpu_custom_call.1} parent=1 // pred_region
      %s732 = sand.u32 1, 7
      %p733 = scmp.eq.s32.totalorder %s732, 0
      %p734 = pneg %p733
      // Predicated region
      $region333: #{tpu_custom_call.1} parent=320 // pred_check
        _
      $region334: #{tpu_custom_call.1} parent=320 // pred_check_branch
        %736 = sbr.rel (%p733) target = $region336
      $region335: #{tpu_custom_call.1} parent=320 // pred_region
        %s737 = sand.u32 1, 7
        %s738 = ssub.s32 1, %s737
        %s739 = scalar_lea.vmem %s709, %s738
        %s740 = ssub.s32 1, %s737
        %s741 = scalar_lea.vmem %s710, %s740 [#allocation2]
        %s742 = sshll.u32 1, %s737
        %s743 = ssub.s32 %s742, 1
        loop: start=0, step=1, limit=1
        $region337: #{tpu_custom_call.1} parent=335 // loop_pre_header
          _
        $region338: #{tpu_custom_call.1} parent=335 // loop_header
          %s745 = sphi 0, %s749
          %p746 = scmp.ge.s32.totalorder %s745, 1
          %s750 = sphi %s739, %s739
          %s751 = sphi %s741, %s741
        $region339: #{tpu_custom_call.1} parent=335 // loop_header_branch
          %748 = sbr.rel (%p746) target = $region343
        $region340: #{tpu_custom_call.1} parent=335 // loop_body
          %v752 = vld [vmem:[%s750] sm:%s743]
          %753 = vst [vmem:[%s751] sm:%s743] %v752
        $region341: #{tpu_custom_call.1} parent=335 // loop_footer
          %s749 = sadd.s32 1, %s745
        $region342: #{tpu_custom_call.1} parent=335 // loop_footer_branch
          %744 = sbr.rel target = $region338
        $region343: #{tpu_custom_call.1} parent=335 // loop_exit
          _
      $region336: #{tpu_custom_call.1} parent=320 // pred_fallthru
        _
    $region321: #{tpu_custom_call.1} parent=1 // pred_fallthru
      _
    // Predicated region
    $region322: #{tpu_custom_call.1} parent=1 // pred_check
      %p717 = pneg %p713
    $region323: #{tpu_custom_call.1} parent=1 // pred_check_branch
      %719 = sbr.rel (%p717) target = $region325
    $region324: #{tpu_custom_call.1} parent=1 // pred_region
      %s720 = sshll.u32 1, 1
      %s721 = ssub.s32 %s720, 1
      loop: start=0, step=1, limit=1
      $region326: #{tpu_custom_call.1} parent=324 // loop_pre_header
        _
      $region327: #{tpu_custom_call.1} parent=324 // loop_header
        %s723 = sphi 0, %s727
        %p724 = scmp.ge.s32.totalorder %s723, 1
        %s728 = sphi %s709, %s709
        %s729 = sphi %s710, %s710
      $region328: #{tpu_custom_call.1} parent=324 // loop_header_branch
        %726 = sbr.rel (%p724) target = $region332
      $region329: #{tpu_custom_call.1} parent=324 // loop_body
        %v730 = vld [vmem:[%s728] sm:%s721]
        %731 = vst [vmem:[%s729] sm:%s721] %v730
      $region330: #{tpu_custom_call.1} parent=324 // loop_footer
        %s727 = sadd.s32 1, %s723
      $region331: #{tpu_custom_call.1} parent=324 // loop_footer_branch
        %722 = sbr.rel target = $region327
      $region332: #{tpu_custom_call.1} parent=324 // loop_exit
        _
    $region325: #{tpu_custom_call.1} parent=1 // pred_fallthru
      _
    // Predicated region
    $region344: #{tpu_custom_call.1} parent=1 // pred_check
      _
    $region345: #{tpu_custom_call.1} parent=1 // pred_check_branch
      %756 = sbr.rel (0) target = $region347
    $region346: #{tpu_custom_call.1} parent=1 // pred_region
      %757 = vsyncadd %s711, 16
    $region347: #{tpu_custom_call.1} parent=1 // pred_fallthru
      _
    %s758 = scalar_lea.vmem %s1, %s99
    %s759 = scalar_lea.vmem [#allocation2], 11
    %s760 = scalar_lea.sflag [#allocation3], 11
    %p762 = scmp.lt.u32.totalorder 1, 8
    %p763 = pneg %p762
    // Predicated region
    $region348: #{tpu_custom_call.1} parent=1 // pred_check
      _
    $region349: #{tpu_custom_call.1} parent=1 // pred_check_branch
      %765 = sbr.rel (%p762) target = $region351
    $region350: #{tpu_custom_call.1} parent=1 // pred_region
      %s781 = sand.u32 1, 7
      %p782 = scmp.eq.s32.totalorder %s781, 0
      %p783 = pneg %p782
      // Predicated region
      $region363: #{tpu_custom_call.1} parent=350 // pred_check
        _
      $region364: #{tpu_custom_call.1} parent=350 // pred_check_branch
        %785 = sbr.rel (%p782) target = $region366
      $region365: #{tpu_custom_call.1} parent=350 // pred_region
        %s786 = sand.u32 1, 7
        %s787 = ssub.s32 1, %s786
        %s788 = scalar_lea.vmem %s758, %s787
        %s789 = ssub.s32 1, %s786
        %s790 = scalar_lea.vmem %s759, %s789 [#allocation2]
        %s791 = sshll.u32 1, %s786
        %s792 = ssub.s32 %s791, 1
        loop: start=0, step=1, limit=1
        $region367: #{tpu_custom_call.1} parent=365 // loop_pre_header
          _
        $region368: #{tpu_custom_call.1} parent=365 // loop_header
          %s794 = sphi 0, %s798
          %p795 = scmp.ge.s32.totalorder %s794, 1
          %s799 = sphi %s788, %s788
          %s800 = sphi %s790, %s790
        $region369: #{tpu_custom_call.1} parent=365 // loop_header_branch
          %797 = sbr.rel (%p795) target = $region373
        $region370: #{tpu_custom_call.1} parent=365 // loop_body
          %v801 = vld [vmem:[%s799] sm:%s792]
          %802 = vst [vmem:[%s800] sm:%s792] %v801
        $region371: #{tpu_custom_call.1} parent=365 // loop_footer
          %s798 = sadd.s32 1, %s794
        $region372: #{tpu_custom_call.1} parent=365 // loop_footer_branch
          %793 = sbr.rel target = $region368
        $region373: #{tpu_custom_call.1} parent=365 // loop_exit
          _
      $region366: #{tpu_custom_call.1} parent=350 // pred_fallthru
        _
    $region351: #{tpu_custom_call.1} parent=1 // pred_fallthru
      _
    // Predicated region
    $region352: #{tpu_custom_call.1} parent=1 // pred_check
      %p766 = pneg %p762
    $region353: #{tpu_custom_call.1} parent=1 // pred_check_branch
      %768 = sbr.rel (%p766) target = $region355
    $region354: #{tpu_custom_call.1} parent=1 // pred_region
      %s769 = sshll.u32 1, 1
      %s770 = ssub.s32 %s769, 1
      loop: start=0, step=1, limit=1
      $region356: #{tpu_custom_call.1} parent=354 // loop_pre_header
        _
      $region357: #{tpu_custom_call.1} parent=354 // loop_header
        %s772 = sphi 0, %s776
        %p773 = scmp.ge.s32.totalorder %s772, 1
        %s777 = sphi %s758, %s758
        %s778 = sphi %s759, %s759
      $region358: #{tpu_custom_call.1} parent=354 // loop_header_branch
        %775 = sbr.rel (%p773) target = $region362
      $region359: #{tpu_custom_call.1} parent=354 // loop_body
        %v779 = vld [vmem:[%s777] sm:%s770]
        %780 = vst [vmem:[%s778] sm:%s770] %v779
      $region360: #{tpu_custom_call.1} parent=354 // loop_footer
        %s776 = sadd.s32 1, %s772
      $region361: #{tpu_custom_call.1} parent=354 // loop_footer_branch
        %771 = sbr.rel target = $region357
      $region362: #{tpu_custom_call.1} parent=354 // loop_exit
        _
    $region355: #{tpu_custom_call.1} parent=1 // pred_fallthru
      _
    // Predicated region
    $region374: #{tpu_custom_call.1} parent=1 // pred_check
      _
    $region375: #{tpu_custom_call.1} parent=1 // pred_check_branch
      %805 = sbr.rel (0) target = $region377
    $region376: #{tpu_custom_call.1} parent=1 // pred_region
      %806 = vsyncadd %s760, 16
    $region377: #{tpu_custom_call.1} parent=1 // pred_fallthru
      _
    %s807 = scalar_lea.vmem %s1, %s105
    %s808 = scalar_lea.vmem [#allocation2], 12
    %s809 = scalar_lea.sflag [#allocation3], 12
    %p811 = scmp.lt.u32.totalorder 1, 8
    %p812 = pneg %p811
    // Predicated region
    $region378: #{tpu_custom_call.1} parent=1 // pred_check
      _
    $region379: #{tpu_custom_call.1} parent=1 // pred_check_branch
      %814 = sbr.rel (%p811) target = $region381
    $region380: #{tpu_custom_call.1} parent=1 // pred_region
      %s830 = sand.u32 1, 7
      %p831 = scmp.eq.s32.totalorder %s830, 0
      %p832 = pneg %p831
      // Predicated region
      $region393: #{tpu_custom_call.1} parent=380 // pred_check
        _
      $region394: #{tpu_custom_call.1} parent=380 // pred_check_branch
        %834 = sbr.rel (%p831) target = $region396
      $region395: #{tpu_custom_call.1} parent=380 // pred_region
        %s835 = sand.u32 1, 7
        %s836 = ssub.s32 1, %s835
        %s837 = scalar_lea.vmem %s807, %s836
        %s838 = ssub.s32 1, %s835
        %s839 = scalar_lea.vmem %s808, %s838 [#allocation2]
        %s840 = sshll.u32 1, %s835
        %s841 = ssub.s32 %s840, 1
        loop: start=0, step=1, limit=1
        $region397: #{tpu_custom_call.1} parent=395 // loop_pre_header
          _
        $region398: #{tpu_custom_call.1} parent=395 // loop_header
          %s843 = sphi 0, %s847
          %p844 = scmp.ge.s32.totalorder %s843, 1
          %s848 = sphi %s837, %s837
          %s849 = sphi %s839, %s839
        $region399: #{tpu_custom_call.1} parent=395 // loop_header_branch
          %846 = sbr.rel (%p844) target = $region403
        $region400: #{tpu_custom_call.1} parent=395 // loop_body
          %v850 = vld [vmem:[%s848] sm:%s841]
          %851 = vst [vmem:[%s849] sm:%s841] %v850
        $region401: #{tpu_custom_call.1} parent=395 // loop_footer
          %s847 = sadd.s32 1, %s843
        $region402: #{tpu_custom_call.1} parent=395 // loop_footer_branch
          %842 = sbr.rel target = $region398
        $region403: #{tpu_custom_call.1} parent=395 // loop_exit
          _
      $region396: #{tpu_custom_call.1} parent=380 // pred_fallthru
        _
    $region381: #{tpu_custom_call.1} parent=1 // pred_fallthru
      _
    // Predicated region
    $region382: #{tpu_custom_call.1} parent=1 // pred_check
      %p815 = pneg %p811
    $region383: #{tpu_custom_call.1} parent=1 // pred_check_branch
      %817 = sbr.rel (%p815) target = $region385
    $region384: #{tpu_custom_call.1} parent=1 // pred_region
      %s818 = sshll.u32 1, 1
      %s819 = ssub.s32 %s818, 1
      loop: start=0, step=1, limit=1
      $region386: #{tpu_custom_call.1} parent=384 // loop_pre_header
        _
      $region387: #{tpu_custom_call.1} parent=384 // loop_header
        %s821 = sphi 0, %s825
        %p822 = scmp.ge.s32.totalorder %s821, 1
        %s826 = sphi %s807, %s807
        %s827 = sphi %s808, %s808
      $region388: #{tpu_custom_call.1} parent=384 // loop_header_branch
        %824 = sbr.rel (%p822) target = $region392
      $region389: #{tpu_custom_call.1} parent=384 // loop_body
        %v828 = vld [vmem:[%s826] sm:%s819]
        %829 = vst [vmem:[%s827] sm:%s819] %v828
      $region390: #{tpu_custom_call.1} parent=384 // loop_footer
        %s825 = sadd.s32 1, %s821
      $region391: #{tpu_custom_call.1} parent=384 // loop_footer_branch
        %820 = sbr.rel target = $region387
      $region392: #{tpu_custom_call.1} parent=384 // loop_exit
        _
    $region385: #{tpu_custom_call.1} parent=1 // pred_fallthru
      _
    // Predicated region
    $region404: #{tpu_custom_call.1} parent=1 // pred_check
      _
    $region405: #{tpu_custom_call.1} parent=1 // pred_check_branch
      %854 = sbr.rel (0) target = $region407
    $region406: #{tpu_custom_call.1} parent=1 // pred_region
      %855 = vsyncadd %s809, 16
    $region407: #{tpu_custom_call.1} parent=1 // pred_fallthru
      _
    %s856 = scalar_lea.vmem %s1, %s111
    %s857 = scalar_lea.vmem [#allocation2], 13
    %s858 = scalar_lea.sflag [#allocation3], 13
    %p860 = scmp.lt.u32.totalorder 1, 8
    %p861 = pneg %p860
    // Predicated region
    $region408: #{tpu_custom_call.1} parent=1 // pred_check
      _
    $region409: #{tpu_custom_call.1} parent=1 // pred_check_branch
      %863 = sbr.rel (%p860) target = $region411
    $region410: #{tpu_custom_call.1} parent=1 // pred_region
      %s879 = sand.u32 1, 7
      %p880 = scmp.eq.s32.totalorder %s879, 0
      %p881 = pneg %p880
      // Predicated region
      $region423: #{tpu_custom_call.1} parent=410 // pred_check
        _
      $region424: #{tpu_custom_call.1} parent=410 // pred_check_branch
        %883 = sbr.rel (%p880) target = $region426
      $region425: #{tpu_custom_call.1} parent=410 // pred_region
        %s884 = sand.u32 1, 7
        %s885 = ssub.s32 1, %s884
        %s886 = scalar_lea.vmem %s856, %s885
        %s887 = ssub.s32 1, %s884
        %s888 = scalar_lea.vmem %s857, %s887 [#allocation2]
        %s889 = sshll.u32 1, %s884
        %s890 = ssub.s32 %s889, 1
        loop: start=0, step=1, limit=1
        $region427: #{tpu_custom_call.1} parent=425 // loop_pre_header
          _
        $region428: #{tpu_custom_call.1} parent=425 // loop_header
          %s892 = sphi 0, %s896
          %p893 = scmp.ge.s32.totalorder %s892, 1
          %s897 = sphi %s886, %s886
          %s898 = sphi %s888, %s888
        $region429: #{tpu_custom_call.1} parent=425 // loop_header_branch
          %895 = sbr.rel (%p893) target = $region433
        $region430: #{tpu_custom_call.1} parent=425 // loop_body
          %v899 = vld [vmem:[%s897] sm:%s890]
          %900 = vst [vmem:[%s898] sm:%s890] %v899
        $region431: #{tpu_custom_call.1} parent=425 // loop_footer
          %s896 = sadd.s32 1, %s892
        $region432: #{tpu_custom_call.1} parent=425 // loop_footer_branch
          %891 = sbr.rel target = $region428
        $region433: #{tpu_custom_call.1} parent=425 // loop_exit
          _
      $region426: #{tpu_custom_call.1} parent=410 // pred_fallthru
        _
    $region411: #{tpu_custom_call.1} parent=1 // pred_fallthru
      _
    // Predicated region
    $region412: #{tpu_custom_call.1} parent=1 // pred_check
      %p864 = pneg %p860
    $region413: #{tpu_custom_call.1} parent=1 // pred_check_branch
      %866 = sbr.rel (%p864) target = $region415
    $region414: #{tpu_custom_call.1} parent=1 // pred_region
      %s867 = sshll.u32 1, 1
      %s868 = ssub.s32 %s867, 1
      loop: start=0, step=1, limit=1
      $region416: #{tpu_custom_call.1} parent=414 // loop_pre_header
        _
      $region417: #{tpu_custom_call.1} parent=414 // loop_header
        %s870 = sphi 0, %s874
        %p871 = scmp.ge.s32.totalorder %s870, 1
        %s875 = sphi %s856, %s856
        %s876 = sphi %s857, %s857
      $region418: #{tpu_custom_call.1} parent=414 // loop_header_branch
        %873 = sbr.rel (%p871) target = $region422
      $region419: #{tpu_custom_call.1} parent=414 // loop_body
        %v877 = vld [vmem:[%s875] sm:%s868]
        %878 = vst [vmem:[%s876] sm:%s868] %v877
      $region420: #{tpu_custom_call.1} parent=414 // loop_footer
        %s874 = sadd.s32 1, %s870
      $region421: #{tpu_custom_call.1} parent=414 // loop_footer_branch
        %869 = sbr.rel target = $region417
      $region422: #{tpu_custom_call.1} parent=414 // loop_exit
        _
    $region415: #{tpu_custom_call.1} parent=1 // pred_fallthru
      _
    // Predicated region
    $region434: #{tpu_custom_call.1} parent=1 // pred_check
      _
    $region435: #{tpu_custom_call.1} parent=1 // pred_check_branch
      %903 = sbr.rel (0) target = $region437
    $region436: #{tpu_custom_call.1} parent=1 // pred_region
      %904 = vsyncadd %s858, 16
    $region437: #{tpu_custom_call.1} parent=1 // pred_fallthru
      _
    %s905 = scalar_lea.vmem %s1, %s117
    %s906 = scalar_lea.vmem [#allocation2], 14
    %s907 = scalar_lea.sflag [#allocation3], 14
    %p909 = scmp.lt.u32.totalorder 1, 8
    %p910 = pneg %p909
    // Predicated region
    $region438: #{tpu_custom_call.1} parent=1 // pred_check
      _
    $region439: #{tpu_custom_call.1} parent=1 // pred_check_branch
      %912 = sbr.rel (%p909) target = $region441
    $region440: #{tpu_custom_call.1} parent=1 // pred_region
      %s928 = sand.u32 1, 7
      %p929 = scmp.eq.s32.totalorder %s928, 0
      %p930 = pneg %p929
      // Predicated region
      $region453: #{tpu_custom_call.1} parent=440 // pred_check
        _
      $region454: #{tpu_custom_call.1} parent=440 // pred_check_branch
        %932 = sbr.rel (%p929) target = $region456
      $region455: #{tpu_custom_call.1} parent=440 // pred_region
        %s933 = sand.u32 1, 7
        %s934 = ssub.s32 1, %s933
        %s935 = scalar_lea.vmem %s905, %s934
        %s936 = ssub.s32 1, %s933
        %s937 = scalar_lea.vmem %s906, %s936 [#allocation2]
        %s938 = sshll.u32 1, %s933
        %s939 = ssub.s32 %s938, 1
        loop: start=0, step=1, limit=1
        $region457: #{tpu_custom_call.1} parent=455 // loop_pre_header
          _
        $region458: #{tpu_custom_call.1} parent=455 // loop_header
          %s941 = sphi 0, %s945
          %p942 = scmp.ge.s32.totalorder %s941, 1
          %s946 = sphi %s935, %s935
          %s947 = sphi %s937, %s937
        $region459: #{tpu_custom_call.1} parent=455 // loop_header_branch
          %944 = sbr.rel (%p942) target = $region463
        $region460: #{tpu_custom_call.1} parent=455 // loop_body
          %v948 = vld [vmem:[%s946] sm:%s939]
          %949 = vst [vmem:[%s947] sm:%s939] %v948
        $region461: #{tpu_custom_call.1} parent=455 // loop_footer
          %s945 = sadd.s32 1, %s941
        $region462: #{tpu_custom_call.1} parent=455 // loop_footer_branch
          %940 = sbr.rel target = $region458
        $region463: #{tpu_custom_call.1} parent=455 // loop_exit
          _
      $region456: #{tpu_custom_call.1} parent=440 // pred_fallthru
        _
    $region441: #{tpu_custom_call.1} parent=1 // pred_fallthru
      _
    // Predicated region
    $region442: #{tpu_custom_call.1} parent=1 // pred_check
      %p913 = pneg %p909
    $region443: #{tpu_custom_call.1} parent=1 // pred_check_branch
      %915 = sbr.rel (%p913) target = $region445
    $region444: #{tpu_custom_call.1} parent=1 // pred_region
      %s916 = sshll.u32 1, 1
      %s917 = ssub.s32 %s916, 1
      loop: start=0, step=1, limit=1
      $region446: #{tpu_custom_call.1} parent=444 // loop_pre_header
        _
      $region447: #{tpu_custom_call.1} parent=444 // loop_header
        %s919 = sphi 0, %s923
        %p920 = scmp.ge.s32.totalorder %s919, 1
        %s924 = sphi %s905, %s905
        %s925 = sphi %s906, %s906
      $region448: #{tpu_custom_call.1} parent=444 // loop_header_branch
        %922 = sbr.rel (%p920) target = $region452
      $region449: #{tpu_custom_call.1} parent=444 // loop_body
        %v926 = vld [vmem:[%s924] sm:%s917]
        %927 = vst [vmem:[%s925] sm:%s917] %v926
      $region450: #{tpu_custom_call.1} parent=444 // loop_footer
        %s923 = sadd.s32 1, %s919
      $region451: #{tpu_custom_call.1} parent=444 // loop_footer_branch
        %918 = sbr.rel target = $region447
      $region452: #{tpu_custom_call.1} parent=444 // loop_exit
        _
    $region445: #{tpu_custom_call.1} parent=1 // pred_fallthru
      _
    // Predicated region
    $region464: #{tpu_custom_call.1} parent=1 // pred_check
      _
    $region465: #{tpu_custom_call.1} parent=1 // pred_check_branch
      %952 = sbr.rel (0) target = $region467
    $region466: #{tpu_custom_call.1} parent=1 // pred_region
      %953 = vsyncadd %s907, 16
    $region467: #{tpu_custom_call.1} parent=1 // pred_fallthru
      _
    %s954 = scalar_lea.vmem %s1, %s123
    %s955 = scalar_lea.vmem [#allocation2], 15
    %s956 = scalar_lea.sflag [#allocation3], 15
    %p958 = scmp.lt.u32.totalorder 1, 8
    %p959 = pneg %p958
    // Predicated region
    $region468: #{tpu_custom_call.1} parent=1 // pred_check
      _
    $region469: #{tpu_custom_call.1} parent=1 // pred_check_branch
      %961 = sbr.rel (%p958) target = $region471
    $region470: #{tpu_custom_call.1} parent=1 // pred_region
      %s977 = sand.u32 1, 7
      %p978 = scmp.eq.s32.totalorder %s977, 0
      %p979 = pneg %p978
      // Predicated region
      $region483: #{tpu_custom_call.1} parent=470 // pred_check
        _
      $region484: #{tpu_custom_call.1} parent=470 // pred_check_branch
        %981 = sbr.rel (%p978) target = $region486
      $region485: #{tpu_custom_call.1} parent=470 // pred_region
        %s982 = sand.u32 1, 7
        %s983 = ssub.s32 1, %s982
        %s984 = scalar_lea.vmem %s954, %s983
        %s985 = ssub.s32 1, %s982
        %s986 = scalar_lea.vmem %s955, %s985 [#allocation2]
        %s987 = sshll.u32 1, %s982
        %s988 = ssub.s32 %s987, 1
        loop: start=0, step=1, limit=1
        $region487: #{tpu_custom_call.1} parent=485 // loop_pre_header
          _
        $region488: #{tpu_custom_call.1} parent=485 // loop_header
          %s990 = sphi 0, %s994
          %p991 = scmp.ge.s32.totalorder %s990, 1
          %s995 = sphi %s984, %s984
          %s996 = sphi %s986, %s986
        $region489: #{tpu_custom_call.1} parent=485 // loop_header_branch
          %993 = sbr.rel (%p991) target = $region493
        $region490: #{tpu_custom_call.1} parent=485 // loop_body
          %v997 = vld [vmem:[%s995] sm:%s988]
          %998 = vst [vmem:[%s996] sm:%s988] %v997
        $region491: #{tpu_custom_call.1} parent=485 // loop_footer
          %s994 = sadd.s32 1, %s990
        $region492: #{tpu_custom_call.1} parent=485 // loop_footer_branch
          %989 = sbr.rel target = $region488
        $region493: #{tpu_custom_call.1} parent=485 // loop_exit
          _
      $region486: #{tpu_custom_call.1} parent=470 // pred_fallthru
        _
    $region471: #{tpu_custom_call.1} parent=1 // pred_fallthru
      _
    // Predicated region
    $region472: #{tpu_custom_call.1} parent=1 // pred_check
      %p962 = pneg %p958
    $region473: #{tpu_custom_call.1} parent=1 // pred_check_branch
      %964 = sbr.rel (%p962) target = $region475
    $region474: #{tpu_custom_call.1} parent=1 // pred_region
      %s965 = sshll.u32 1, 1
      %s966 = ssub.s32 %s965, 1
      loop: start=0, step=1, limit=1
      $region476: #{tpu_custom_call.1} parent=474 // loop_pre_header
        _
      $region477: #{tpu_custom_call.1} parent=474 // loop_header
        %s968 = sphi 0, %s972
        %p969 = scmp.ge.s32.totalorder %s968, 1
        %s973 = sphi %s954, %s954
        %s974 = sphi %s955, %s955
      $region478: #{tpu_custom_call.1} parent=474 // loop_header_branch
        %971 = sbr.rel (%p969) target = $region482
      $region479: #{tpu_custom_call.1} parent=474 // loop_body
        %v975 = vld [vmem:[%s973] sm:%s966]
        %976 = vst [vmem:[%s974] sm:%s966] %v975
      $region480: #{tpu_custom_call.1} parent=474 // loop_footer
        %s972 = sadd.s32 1, %s968
      $region481: #{tpu_custom_call.1} parent=474 // loop_footer_branch
        %967 = sbr.rel target = $region477
      $region482: #{tpu_custom_call.1} parent=474 // loop_exit
        _
    $region475: #{tpu_custom_call.1} parent=1 // pred_fallthru
      _
    // Predicated region
    $region494: #{tpu_custom_call.1} parent=1 // pred_check
      _
    $region495: #{tpu_custom_call.1} parent=1 // pred_check_branch
      %1001 = sbr.rel (0) target = $region497
    $region496: #{tpu_custom_call.1} parent=1 // pred_region
      %1002 = vsyncadd %s956, 16
    $region497: #{tpu_custom_call.1} parent=1 // pred_fallthru
      _
    %s1003 = scalar_lea.vmem %s1, %s130
    %s1004 = scalar_lea.vmem [#allocation2], 16
    %s1005 = scalar_lea.sflag [#allocation3], 16
    %p1007 = scmp.lt.u32.totalorder 1, 8
    %p1008 = pneg %p1007
    // Predicated region
    $region498: #{tpu_custom_call.1} parent=1 // pred_check
      _
    $region499: #{tpu_custom_call.1} parent=1 // pred_check_branch
      %1010 = sbr.rel (%p1007) target = $region501
    $region500: #{tpu_custom_call.1} parent=1 // pred_region
      %s1026 = sand.u32 1, 7
      %p1027 = scmp.eq.s32.totalorder %s1026, 0
      %p1028 = pneg %p1027
      // Predicated region
      $region513: #{tpu_custom_call.1} parent=500 // pred_check
        _
      $region514: #{tpu_custom_call.1} parent=500 // pred_check_branch
        %1030 = sbr.rel (%p1027) target = $region516
      $region515: #{tpu_custom_call.1} parent=500 // pred_region
        %s1031 = sand.u32 1, 7
        %s1032 = ssub.s32 1, %s1031
        %s1033 = scalar_lea.vmem %s1003, %s1032
        %s1034 = ssub.s32 1, %s1031
        %s1035 = scalar_lea.vmem %s1004, %s1034 [#allocation2]
        %s1036 = sshll.u32 1, %s1031
        %s1037 = ssub.s32 %s1036, 1
        loop: start=0, step=1, limit=1
        $region517: #{tpu_custom_call.1} parent=515 // loop_pre_header
          _
        $region518: #{tpu_custom_call.1} parent=515 // loop_header
          %s1039 = sphi 0, %s1043
          %p1040 = scmp.ge.s32.totalorder %s1039, 1
          %s1044 = sphi %s1033, %s1033
          %s1045 = sphi %s1035, %s1035
        $region519: #{tpu_custom_call.1} parent=515 // loop_header_branch
          %1042 = sbr.rel (%p1040) target = $region523
        $region520: #{tpu_custom_call.1} parent=515 // loop_body
          %v1046 = vld [vmem:[%s1044] sm:%s1037]
          %1047 = vst [vmem:[%s1045] sm:%s1037] %v1046
        $region521: #{tpu_custom_call.1} parent=515 // loop_footer
          %s1043 = sadd.s32 1, %s1039
        $region522: #{tpu_custom_call.1} parent=515 // loop_footer_branch
          %1038 = sbr.rel target = $region518
        $region523: #{tpu_custom_call.1} parent=515 // loop_exit
          _
      $region516: #{tpu_custom_call.1} parent=500 // pred_fallthru
        _
    $region501: #{tpu_custom_call.1} parent=1 // pred_fallthru
      _
    // Predicated region
    $region502: #{tpu_custom_call.1} parent=1 // pred_check
      %p1011 = pneg %p1007
    $region503: #{tpu_custom_call.1} parent=1 // pred_check_branch
      %1013 = sbr.rel (%p1011) target = $region505
    $region504: #{tpu_custom_call.1} parent=1 // pred_region
      %s1014 = sshll.u32 1, 1
      %s1015 = ssub.s32 %s1014, 1
      loop: start=0, step=1, limit=1
      $region506: #{tpu_custom_call.1} parent=504 // loop_pre_header
        _
      $region507: #{tpu_custom_call.1} parent=504 // loop_header
        %s1017 = sphi 0, %s1021
        %p1018 = scmp.ge.s32.totalorder %s1017, 1
        %s1022 = sphi %s1003, %s1003
        %s1023 = sphi %s1004, %s1004
      $region508: #{tpu_custom_call.1} parent=504 // loop_header_branch
        %1020 = sbr.rel (%p1018) target = $region512
      $region509: #{tpu_custom_call.1} parent=504 // loop_body
        %v1024 = vld [vmem:[%s1022] sm:%s1015]
        %1025 = vst [vmem:[%s1023] sm:%s1015] %v1024
      $region510: #{tpu_custom_call.1} parent=504 // loop_footer
        %s1021 = sadd.s32 1, %s1017
      $region511: #{tpu_custom_call.1} parent=504 // loop_footer_branch
        %1016 = sbr.rel target = $region507
      $region512: #{tpu_custom_call.1} parent=504 // loop_exit
        _
    $region505: #{tpu_custom_call.1} parent=1 // pred_fallthru
      _
    // Predicated region
    $region524: #{tpu_custom_call.1} parent=1 // pred_check
      _
    $region525: #{tpu_custom_call.1} parent=1 // pred_check_branch
      %1050 = sbr.rel (0) target = $region527
    $region526: #{tpu_custom_call.1} parent=1 // pred_region
      %1051 = vsyncadd %s1005, 16
    $region527: #{tpu_custom_call.1} parent=1 // pred_fallthru
      _
    %s1052 = scalar_lea.vmem %s1, %s136
    %s1053 = scalar_lea.vmem [#allocation2], 17
    %s1054 = scalar_lea.sflag [#allocation3], 17
    %p1056 = scmp.lt.u32.totalorder 1, 8
    %p1057 = pneg %p1056
    // Predicated region
    $region528: #{tpu_custom_call.1} parent=1 // pred_check
      _
    $region529: #{tpu_custom_call.1} parent=1 // pred_check_branch
      %1059 = sbr.rel (%p1056) target = $region531
    $region530: #{tpu_custom_call.1} parent=1 // pred_region
      %s1075 = sand.u32 1, 7
      %p1076 = scmp.eq.s32.totalorder %s1075, 0
      %p1077 = pneg %p1076
      // Predicated region
      $region543: #{tpu_custom_call.1} parent=530 // pred_check
        _
      $region544: #{tpu_custom_call.1} parent=530 // pred_check_branch
        %1079 = sbr.rel (%p1076) target = $region546
      $region545: #{tpu_custom_call.1} parent=530 // pred_region
        %s1080 = sand.u32 1, 7
        %s1081 = ssub.s32 1, %s1080
        %s1082 = scalar_lea.vmem %s1052, %s1081
        %s1083 = ssub.s32 1, %s1080
        %s1084 = scalar_lea.vmem %s1053, %s1083 [#allocation2]
        %s1085 = sshll.u32 1, %s1080
        %s1086 = ssub.s32 %s1085, 1
        loop: start=0, step=1, limit=1
        $region547: #{tpu_custom_call.1} parent=545 // loop_pre_header
          _
        $region548: #{tpu_custom_call.1} parent=545 // loop_header
          %s1088 = sphi 0, %s1092
          %p1089 = scmp.ge.s32.totalorder %s1088, 1
          %s1093 = sphi %s1082, %s1082
          %s1094 = sphi %s1084, %s1084
        $region549: #{tpu_custom_call.1} parent=545 // loop_header_branch
          %1091 = sbr.rel (%p1089) target = $region553
        $region550: #{tpu_custom_call.1} parent=545 // loop_body
          %v1095 = vld [vmem:[%s1093] sm:%s1086]
          %1096 = vst [vmem:[%s1094] sm:%s1086] %v1095
        $region551: #{tpu_custom_call.1} parent=545 // loop_footer
          %s1092 = sadd.s32 1, %s1088
        $region552: #{tpu_custom_call.1} parent=545 // loop_footer_branch
          %1087 = sbr.rel target = $region548
        $region553: #{tpu_custom_call.1} parent=545 // loop_exit
          _
      $region546: #{tpu_custom_call.1} parent=530 // pred_fallthru
        _
    $region531: #{tpu_custom_call.1} parent=1 // pred_fallthru
      _
    // Predicated region
    $region532: #{tpu_custom_call.1} parent=1 // pred_check
      %p1060 = pneg %p1056
    $region533: #{tpu_custom_call.1} parent=1 // pred_check_branch
      %1062 = sbr.rel (%p1060) target = $region535
    $region534: #{tpu_custom_call.1} parent=1 // pred_region
      %s1063 = sshll.u32 1, 1
      %s1064 = ssub.s32 %s1063, 1
      loop: start=0, step=1, limit=1
      $region536: #{tpu_custom_call.1} parent=534 // loop_pre_header
        _
      $region537: #{tpu_custom_call.1} parent=534 // loop_header
        %s1066 = sphi 0, %s1070
        %p1067 = scmp.ge.s32.totalorder %s1066, 1
        %s1071 = sphi %s1052, %s1052
        %s1072 = sphi %s1053, %s1053
      $region538: #{tpu_custom_call.1} parent=534 // loop_header_branch
        %1069 = sbr.rel (%p1067) target = $region542
      $region539: #{tpu_custom_call.1} parent=534 // loop_body
        %v1073 = vld [vmem:[%s1071] sm:%s1064]
        %1074 = vst [vmem:[%s1072] sm:%s1064] %v1073
      $region540: #{tpu_custom_call.1} parent=534 // loop_footer
        %s1070 = sadd.s32 1, %s1066
      $region541: #{tpu_custom_call.1} parent=534 // loop_footer_branch
        %1065 = sbr.rel target = $region537
      $region542: #{tpu_custom_call.1} parent=534 // loop_exit
        _
    $region535: #{tpu_custom_call.1} parent=1 // pred_fallthru
      _
    // Predicated region
    $region554: #{tpu_custom_call.1} parent=1 // pred_check
      _
    $region555: #{tpu_custom_call.1} parent=1 // pred_check_branch
      %1099 = sbr.rel (0) target = $region557
    $region556: #{tpu_custom_call.1} parent=1 // pred_region
      %1100 = vsyncadd %s1054, 16
    $region557: #{tpu_custom_call.1} parent=1 // pred_fallthru
      _
    %s1101 = scalar_lea.vmem %s1, %s142
    %s1102 = scalar_lea.vmem [#allocation2], 18
    %s1103 = scalar_lea.sflag [#allocation3], 18
    %p1105 = scmp.lt.u32.totalorder 1, 8
    %p1106 = pneg %p1105
    // Predicated region
    $region558: #{tpu_custom_call.1} parent=1 // pred_check
      _
    $region559: #{tpu_custom_call.1} parent=1 // pred_check_branch
      %1108 = sbr.rel (%p1105) target = $region561
    $region560: #{tpu_custom_call.1} parent=1 // pred_region
      %s1124 = sand.u32 1, 7
      %p1125 = scmp.eq.s32.totalorder %s1124, 0
      %p1126 = pneg %p1125
      // Predicated region
      $region573: #{tpu_custom_call.1} parent=560 // pred_check
        _
      $region574: #{tpu_custom_call.1} parent=560 // pred_check_branch
        %1128 = sbr.rel (%p1125) target = $region576
      $region575: #{tpu_custom_call.1} parent=560 // pred_region
        %s1129 = sand.u32 1, 7
        %s1130 = ssub.s32 1, %s1129
        %s1131 = scalar_lea.vmem %s1101, %s1130
        %s1132 = ssub.s32 1, %s1129
        %s1133 = scalar_lea.vmem %s1102, %s1132 [#allocation2]
        %s1134 = sshll.u32 1, %s1129
        %s1135 = ssub.s32 %s1134, 1
        loop: start=0, step=1, limit=1
        $region577: #{tpu_custom_call.1} parent=575 // loop_pre_header
          _
        $region578: #{tpu_custom_call.1} parent=575 // loop_header
          %s1137 = sphi 0, %s1141
          %p1138 = scmp.ge.s32.totalorder %s1137, 1
          %s1142 = sphi %s1131, %s1131
          %s1143 = sphi %s1133, %s1133
        $region579: #{tpu_custom_call.1} parent=575 // loop_header_branch
          %1140 = sbr.rel (%p1138) target = $region583
        $region580: #{tpu_custom_call.1} parent=575 // loop_body
          %v1144 = vld [vmem:[%s1142] sm:%s1135]
          %1145 = vst [vmem:[%s1143] sm:%s1135] %v1144
        $region581: #{tpu_custom_call.1} parent=575 // loop_footer
          %s1141 = sadd.s32 1, %s1137
        $region582: #{tpu_custom_call.1} parent=575 // loop_footer_branch
          %1136 = sbr.rel target = $region578
        $region583: #{tpu_custom_call.1} parent=575 // loop_exit
          _
      $region576: #{tpu_custom_call.1} parent=560 // pred_fallthru
        _
    $region561: #{tpu_custom_call.1} parent=1 // pred_fallthru
      _
    // Predicated region
    $region562: #{tpu_custom_call.1} parent=1 // pred_check
      %p1109 = pneg %p1105
    $region563: #{tpu_custom_call.1} parent=1 // pred_check_branch
      %1111 = sbr.rel (%p1109) target = $region565
    $region564: #{tpu_custom_call.1} parent=1 // pred_region
      %s1112 = sshll.u32 1, 1
      %s1113 = ssub.s32 %s1112, 1
      loop: start=0, step=1, limit=1
      $region566: #{tpu_custom_call.1} parent=564 // loop_pre_header
        _
      $region567: #{tpu_custom_call.1} parent=564 // loop_header
        %s1115 = sphi 0, %s1119
        %p1116 = scmp.ge.s32.totalorder %s1115, 1
        %s1120 = sphi %s1101, %s1101
        %s1121 = sphi %s1102, %s1102
      $region568: #{tpu_custom_call.1} parent=564 // loop_header_branch
        %1118 = sbr.rel (%p1116) target = $region572
      $region569: #{tpu_custom_call.1} parent=564 // loop_body
        %v1122 = vld [vmem:[%s1120] sm:%s1113]
        %1123 = vst [vmem:[%s1121] sm:%s1113] %v1122
      $region570: #{tpu_custom_call.1} parent=564 // loop_footer
        %s1119 = sadd.s32 1, %s1115
      $region571: #{tpu_custom_call.1} parent=564 // loop_footer_branch
        %1114 = sbr.rel target = $region567
      $region572: #{tpu_custom_call.1} parent=564 // loop_exit
        _
    $region565: #{tpu_custom_call.1} parent=1 // pred_fallthru
      _
    // Predicated region
    $region584: #{tpu_custom_call.1} parent=1 // pred_check
      _
    $region585: #{tpu_custom_call.1} parent=1 // pred_check_branch
      %1148 = sbr.rel (0) target = $region587
    $region586: #{tpu_custom_call.1} parent=1 // pred_region
      %1149 = vsyncadd %s1103, 16
    $region587: #{tpu_custom_call.1} parent=1 // pred_fallthru
      _
    %s1150 = scalar_lea.vmem %s1, %s148
    %s1151 = scalar_lea.vmem [#allocation2], 19
    %s1152 = scalar_lea.sflag [#allocation3], 19
    %p1154 = scmp.lt.u32.totalorder 1, 8
    %p1155 = pneg %p1154
    // Predicated region
    $region588: #{tpu_custom_call.1} parent=1 // pred_check
      _
    $region589: #{tpu_custom_call.1} parent=1 // pred_check_branch
      %1157 = sbr.rel (%p1154) target = $region591
    $region590: #{tpu_custom_call.1} parent=1 // pred_region
      %s1173 = sand.u32 1, 7
      %p1174 = scmp.eq.s32.totalorder %s1173, 0
      %p1175 = pneg %p1174
      // Predicated region
      $region603: #{tpu_custom_call.1} parent=590 // pred_check
        _
      $region604: #{tpu_custom_call.1} parent=590 // pred_check_branch
        %1177 = sbr.rel (%p1174) target = $region606
      $region605: #{tpu_custom_call.1} parent=590 // pred_region
        %s1178 = sand.u32 1, 7
        %s1179 = ssub.s32 1, %s1178
        %s1180 = scalar_lea.vmem %s1150, %s1179
        %s1181 = ssub.s32 1, %s1178
        %s1182 = scalar_lea.vmem %s1151, %s1181 [#allocation2]
        %s1183 = sshll.u32 1, %s1178
        %s1184 = ssub.s32 %s1183, 1
        loop: start=0, step=1, limit=1
        $region607: #{tpu_custom_call.1} parent=605 // loop_pre_header
          _
        $region608: #{tpu_custom_call.1} parent=605 // loop_header
          %s1186 = sphi 0, %s1190
          %p1187 = scmp.ge.s32.totalorder %s1186, 1
          %s1191 = sphi %s1180, %s1180
          %s1192 = sphi %s1182, %s1182
        $region609: #{tpu_custom_call.1} parent=605 // loop_header_branch
          %1189 = sbr.rel (%p1187) target = $region613
        $region610: #{tpu_custom_call.1} parent=605 // loop_body
          %v1193 = vld [vmem:[%s1191] sm:%s1184]
          %1194 = vst [vmem:[%s1192] sm:%s1184] %v1193
        $region611: #{tpu_custom_call.1} parent=605 // loop_footer
          %s1190 = sadd.s32 1, %s1186
        $region612: #{tpu_custom_call.1} parent=605 // loop_footer_branch
          %1185 = sbr.rel target = $region608
        $region613: #{tpu_custom_call.1} parent=605 // loop_exit
          _
      $region606: #{tpu_custom_call.1} parent=590 // pred_fallthru
        _
    $region591: #{tpu_custom_call.1} parent=1 // pred_fallthru
      _
    // Predicated region
    $region592: #{tpu_custom_call.1} parent=1 // pred_check
      %p1158 = pneg %p1154
    $region593: #{tpu_custom_call.1} parent=1 // pred_check_branch
      %1160 = sbr.rel (%p1158) target = $region595
    $region594: #{tpu_custom_call.1} parent=1 // pred_region
      %s1161 = sshll.u32 1, 1
      %s1162 = ssub.s32 %s1161, 1
      loop: start=0, step=1, limit=1
      $region596: #{tpu_custom_call.1} parent=594 // loop_pre_header
        _
      $region597: #{tpu_custom_call.1} parent=594 // loop_header
        %s1164 = sphi 0, %s1168
        %p1165 = scmp.ge.s32.totalorder %s1164, 1
        %s1169 = sphi %s1150, %s1150
        %s1170 = sphi %s1151, %s1151
      $region598: #{tpu_custom_call.1} parent=594 // loop_header_branch
        %1167 = sbr.rel (%p1165) target = $region602
      $region599: #{tpu_custom_call.1} parent=594 // loop_body
        %v1171 = vld [vmem:[%s1169] sm:%s1162]
        %1172 = vst [vmem:[%s1170] sm:%s1162] %v1171
      $region600: #{tpu_custom_call.1} parent=594 // loop_footer
        %s1168 = sadd.s32 1, %s1164
      $region601: #{tpu_custom_call.1} parent=594 // loop_footer_branch
        %1163 = sbr.rel target = $region597
      $region602: #{tpu_custom_call.1} parent=594 // loop_exit
        _
    $region595: #{tpu_custom_call.1} parent=1 // pred_fallthru
      _
    // Predicated region
    $region614: #{tpu_custom_call.1} parent=1 // pred_check
      _
    $region615: #{tpu_custom_call.1} parent=1 // pred_check_branch
      %1197 = sbr.rel (0) target = $region617
    $region616: #{tpu_custom_call.1} parent=1 // pred_region
      %1198 = vsyncadd %s1152, 16
    $region617: #{tpu_custom_call.1} parent=1 // pred_fallthru
      _
    %s1199 = scalar_lea.vmem %s1, %s154
    %s1200 = scalar_lea.vmem [#allocation2], 20
    %s1201 = scalar_lea.sflag [#allocation3], 20
    %p1203 = scmp.lt.u32.totalorder 1, 8
    %p1204 = pneg %p1203
    // Predicated region
    $region618: #{tpu_custom_call.1} parent=1 // pred_check
      _
    $region619: #{tpu_custom_call.1} parent=1 // pred_check_branch
      %1206 = sbr.rel (%p1203) target = $region621
    $region620: #{tpu_custom_call.1} parent=1 // pred_region
      %s1222 = sand.u32 1, 7
      %p1223 = scmp.eq.s32.totalorder %s1222, 0
      %p1224 = pneg %p1223
      // Predicated region
      $region633: #{tpu_custom_call.1} parent=620 // pred_check
        _
      $region634: #{tpu_custom_call.1} parent=620 // pred_check_branch
        %1226 = sbr.rel (%p1223) target = $region636
      $region635: #{tpu_custom_call.1} parent=620 // pred_region
        %s1227 = sand.u32 1, 7
        %s1228 = ssub.s32 1, %s1227
        %s1229 = scalar_lea.vmem %s1199, %s1228
        %s1230 = ssub.s32 1, %s1227
        %s1231 = scalar_lea.vmem %s1200, %s1230 [#allocation2]
        %s1232 = sshll.u32 1, %s1227
        %s1233 = ssub.s32 %s1232, 1
        loop: start=0, step=1, limit=1
        $region637: #{tpu_custom_call.1} parent=635 // loop_pre_header
          _
        $region638: #{tpu_custom_call.1} parent=635 // loop_header
          %s1235 = sphi 0, %s1239
          %p1236 = scmp.ge.s32.totalorder %s1235, 1
          %s1240 = sphi %s1229, %s1229
          %s1241 = sphi %s1231, %s1231
        $region639: #{tpu_custom_call.1} parent=635 // loop_header_branch
          %1238 = sbr.rel (%p1236) target = $region643
        $region640: #{tpu_custom_call.1} parent=635 // loop_body
          %v1242 = vld [vmem:[%s1240] sm:%s1233]
          %1243 = vst [vmem:[%s1241] sm:%s1233] %v1242
        $region641: #{tpu_custom_call.1} parent=635 // loop_footer
          %s1239 = sadd.s32 1, %s1235
        $region642: #{tpu_custom_call.1} parent=635 // loop_footer_branch
          %1234 = sbr.rel target = $region638
        $region643: #{tpu_custom_call.1} parent=635 // loop_exit
          _
      $region636: #{tpu_custom_call.1} parent=620 // pred_fallthru
        _
    $region621: #{tpu_custom_call.1} parent=1 // pred_fallthru
      _
    // Predicated region
    $region622: #{tpu_custom_call.1} parent=1 // pred_check
      %p1207 = pneg %p1203
    $region623: #{tpu_custom_call.1} parent=1 // pred_check_branch
      %1209 = sbr.rel (%p1207) target = $region625
    $region624: #{tpu_custom_call.1} parent=1 // pred_region
      %s1210 = sshll.u32 1, 1
      %s1211 = ssub.s32 %s1210, 1
      loop: start=0, step=1, limit=1
      $region626: #{tpu_custom_call.1} parent=624 // loop_pre_header
        _
      $region627: #{tpu_custom_call.1} parent=624 // loop_header
        %s1213 = sphi 0, %s1217
        %p1214 = scmp.ge.s32.totalorder %s1213, 1
        %s1218 = sphi %s1199, %s1199
        %s1219 = sphi %s1200, %s1200
      $region628: #{tpu_custom_call.1} parent=624 // loop_header_branch
        %1216 = sbr.rel (%p1214) target = $region632
      $region629: #{tpu_custom_call.1} parent=624 // loop_body
        %v1220 = vld [vmem:[%s1218] sm:%s1211]
        %1221 = vst [vmem:[%s1219] sm:%s1211] %v1220
      $region630: #{tpu_custom_call.1} parent=624 // loop_footer
        %s1217 = sadd.s32 1, %s1213
      $region631: #{tpu_custom_call.1} parent=624 // loop_footer_branch
        %1212 = sbr.rel target = $region627
      $region632: #{tpu_custom_call.1} parent=624 // loop_exit
        _
    $region625: #{tpu_custom_call.1} parent=1 // pred_fallthru
      _
    // Predicated region
    $region644: #{tpu_custom_call.1} parent=1 // pred_check
      _
    $region645: #{tpu_custom_call.1} parent=1 // pred_check_branch
      %1246 = sbr.rel (0) target = $region647
    $region646: #{tpu_custom_call.1} parent=1 // pred_region
      %1247 = vsyncadd %s1201, 16
    $region647: #{tpu_custom_call.1} parent=1 // pred_fallthru
      _
    %s1248 = scalar_lea.vmem %s1, %s160
    %s1249 = scalar_lea.vmem [#allocation2], 21
    %s1250 = scalar_lea.sflag [#allocation3], 21
    %p1252 = scmp.lt.u32.totalorder 1, 8
    %p1253 = pneg %p1252
    // Predicated region
    $region648: #{tpu_custom_call.1} parent=1 // pred_check
      _
    $region649: #{tpu_custom_call.1} parent=1 // pred_check_branch
      %1255 = sbr.rel (%p1252) target = $region651
    $region650: #{tpu_custom_call.1} parent=1 // pred_region
      %s1271 = sand.u32 1, 7
      %p1272 = scmp.eq.s32.totalorder %s1271, 0
      %p1273 = pneg %p1272
      // Predicated region
      $region663: #{tpu_custom_call.1} parent=650 // pred_check
        _
      $region664: #{tpu_custom_call.1} parent=650 // pred_check_branch
        %1275 = sbr.rel (%p1272) target = $region666
      $region665: #{tpu_custom_call.1} parent=650 // pred_region
        %s1276 = sand.u32 1, 7
        %s1277 = ssub.s32 1, %s1276
        %s1278 = scalar_lea.vmem %s1248, %s1277
        %s1279 = ssub.s32 1, %s1276
        %s1280 = scalar_lea.vmem %s1249, %s1279 [#allocation2]
        %s1281 = sshll.u32 1, %s1276
        %s1282 = ssub.s32 %s1281, 1
        loop: start=0, step=1, limit=1
        $region667: #{tpu_custom_call.1} parent=665 // loop_pre_header
          _
        $region668: #{tpu_custom_call.1} parent=665 // loop_header
          %s1284 = sphi 0, %s1288
          %p1285 = scmp.ge.s32.totalorder %s1284, 1
          %s1289 = sphi %s1278, %s1278
          %s1290 = sphi %s1280, %s1280
        $region669: #{tpu_custom_call.1} parent=665 // loop_header_branch
          %1287 = sbr.rel (%p1285) target = $region673
        $region670: #{tpu_custom_call.1} parent=665 // loop_body
          %v1291 = vld [vmem:[%s1289] sm:%s1282]
          %1292 = vst [vmem:[%s1290] sm:%s1282] %v1291
        $region671: #{tpu_custom_call.1} parent=665 // loop_footer
          %s1288 = sadd.s32 1, %s1284
        $region672: #{tpu_custom_call.1} parent=665 // loop_footer_branch
          %1283 = sbr.rel target = $region668
        $region673: #{tpu_custom_call.1} parent=665 // loop_exit
          _
      $region666: #{tpu_custom_call.1} parent=650 // pred_fallthru
        _
    $region651: #{tpu_custom_call.1} parent=1 // pred_fallthru
      _
    // Predicated region
    $region652: #{tpu_custom_call.1} parent=1 // pred_check
      %p1256 = pneg %p1252
    $region653: #{tpu_custom_call.1} parent=1 // pred_check_branch
      %1258 = sbr.rel (%p1256) target = $region655
    $region654: #{tpu_custom_call.1} parent=1 // pred_region
      %s1259 = sshll.u32 1, 1
      %s1260 = ssub.s32 %s1259, 1
      loop: start=0, step=1, limit=1
      $region656: #{tpu_custom_call.1} parent=654 // loop_pre_header
        _
      $region657: #{tpu_custom_call.1} parent=654 // loop_header
        %s1262 = sphi 0, %s1266
        %p1263 = scmp.ge.s32.totalorder %s1262, 1
        %s1267 = sphi %s1248, %s1248
        %s1268 = sphi %s1249, %s1249
      $region658: #{tpu_custom_call.1} parent=654 // loop_header_branch
        %1265 = sbr.rel (%p1263) target = $region662
      $region659: #{tpu_custom_call.1} parent=654 // loop_body
        %v1269 = vld [vmem:[%s1267] sm:%s1260]
        %1270 = vst [vmem:[%s1268] sm:%s1260] %v1269
      $region660: #{tpu_custom_call.1} parent=654 // loop_footer
        %s1266 = sadd.s32 1, %s1262
      $region661: #{tpu_custom_call.1} parent=654 // loop_footer_branch
        %1261 = sbr.rel target = $region657
      $region662: #{tpu_custom_call.1} parent=654 // loop_exit
        _
    $region655: #{tpu_custom_call.1} parent=1 // pred_fallthru
      _
    // Predicated region
    $region674: #{tpu_custom_call.1} parent=1 // pred_check
      _
    $region675: #{tpu_custom_call.1} parent=1 // pred_check_branch
      %1295 = sbr.rel (0) target = $region677
    $region676: #{tpu_custom_call.1} parent=1 // pred_region
      %1296 = vsyncadd %s1250, 16
    $region677: #{tpu_custom_call.1} parent=1 // pred_fallthru
      _
    %s1297 = scalar_lea.vmem %s1, %s166
    %s1298 = scalar_lea.vmem [#allocation2], 22
    %s1299 = scalar_lea.sflag [#allocation3], 22
    %p1301 = scmp.lt.u32.totalorder 1, 8
    %p1302 = pneg %p1301
    // Predicated region
    $region678: #{tpu_custom_call.1} parent=1 // pred_check
      _
    $region679: #{tpu_custom_call.1} parent=1 // pred_check_branch
      %1304 = sbr.rel (%p1301) target = $region681
    $region680: #{tpu_custom_call.1} parent=1 // pred_region
      %s1320 = sand.u32 1, 7
      %p1321 = scmp.eq.s32.totalorder %s1320, 0
      %p1322 = pneg %p1321
      // Predicated region
      $region693: #{tpu_custom_call.1} parent=680 // pred_check
        _
      $region694: #{tpu_custom_call.1} parent=680 // pred_check_branch
        %1324 = sbr.rel (%p1321) target = $region696
      $region695: #{tpu_custom_call.1} parent=680 // pred_region
        %s1325 = sand.u32 1, 7
        %s1326 = ssub.s32 1, %s1325
        %s1327 = scalar_lea.vmem %s1297, %s1326
        %s1328 = ssub.s32 1, %s1325
        %s1329 = scalar_lea.vmem %s1298, %s1328 [#allocation2]
        %s1330 = sshll.u32 1, %s1325
        %s1331 = ssub.s32 %s1330, 1
        loop: start=0, step=1, limit=1
        $region697: #{tpu_custom_call.1} parent=695 // loop_pre_header
          _
        $region698: #{tpu_custom_call.1} parent=695 // loop_header
          %s1333 = sphi 0, %s1337
          %p1334 = scmp.ge.s32.totalorder %s1333, 1
          %s1338 = sphi %s1327, %s1327
          %s1339 = sphi %s1329, %s1329
        $region699: #{tpu_custom_call.1} parent=695 // loop_header_branch
          %1336 = sbr.rel (%p1334) target = $region703
        $region700: #{tpu_custom_call.1} parent=695 // loop_body
          %v1340 = vld [vmem:[%s1338] sm:%s1331]
          %1341 = vst [vmem:[%s1339] sm:%s1331] %v1340
        $region701: #{tpu_custom_call.1} parent=695 // loop_footer
          %s1337 = sadd.s32 1, %s1333
        $region702: #{tpu_custom_call.1} parent=695 // loop_footer_branch
          %1332 = sbr.rel target = $region698
        $region703: #{tpu_custom_call.1} parent=695 // loop_exit
          _
      $region696: #{tpu_custom_call.1} parent=680 // pred_fallthru
        _
    $region681: #{tpu_custom_call.1} parent=1 // pred_fallthru
      _
    // Predicated region
    $region682: #{tpu_custom_call.1} parent=1 // pred_check
      %p1305 = pneg %p1301
    $region683: #{tpu_custom_call.1} parent=1 // pred_check_branch
      %1307 = sbr.rel (%p1305) target = $region685
    $region684: #{tpu_custom_call.1} parent=1 // pred_region
      %s1308 = sshll.u32 1, 1
      %s1309 = ssub.s32 %s1308, 1
      loop: start=0, step=1, limit=1
      $region686: #{tpu_custom_call.1} parent=684 // loop_pre_header
        _
      $region687: #{tpu_custom_call.1} parent=684 // loop_header
        %s1311 = sphi 0, %s1315
        %p1312 = scmp.ge.s32.totalorder %s1311, 1
        %s1316 = sphi %s1297, %s1297
        %s1317 = sphi %s1298, %s1298
      $region688: #{tpu_custom_call.1} parent=684 // loop_header_branch
        %1314 = sbr.rel (%p1312) target = $region692
      $region689: #{tpu_custom_call.1} parent=684 // loop_body
        %v1318 = vld [vmem:[%s1316] sm:%s1309]
        %1319 = vst [vmem:[%s1317] sm:%s1309] %v1318
      $region690: #{tpu_custom_call.1} parent=684 // loop_footer
        %s1315 = sadd.s32 1, %s1311
      $region691: #{tpu_custom_call.1} parent=684 // loop_footer_branch
        %1310 = sbr.rel target = $region687
      $region692: #{tpu_custom_call.1} parent=684 // loop_exit
        _
    $region685: #{tpu_custom_call.1} parent=1 // pred_fallthru
      _
    // Predicated region
    $region704: #{tpu_custom_call.1} parent=1 // pred_check
      _
    $region705: #{tpu_custom_call.1} parent=1 // pred_check_branch
      %1344 = sbr.rel (0) target = $region707
    $region706: #{tpu_custom_call.1} parent=1 // pred_region
      %1345 = vsyncadd %s1299, 16
    $region707: #{tpu_custom_call.1} parent=1 // pred_fallthru
      _
    %s1346 = scalar_lea.vmem %s1, %s172
    %s1347 = scalar_lea.vmem [#allocation2], 23
    %s1348 = scalar_lea.sflag [#allocation3], 23
    %p1350 = scmp.lt.u32.totalorder 1, 8
    %p1351 = pneg %p1350
    // Predicated region
    $region708: #{tpu_custom_call.1} parent=1 // pred_check
      _
    $region709: #{tpu_custom_call.1} parent=1 // pred_check_branch
      %1353 = sbr.rel (%p1350) target = $region711
    $region710: #{tpu_custom_call.1} parent=1 // pred_region
      %s1369 = sand.u32 1, 7
      %p1370 = scmp.eq.s32.totalorder %s1369, 0
      %p1371 = pneg %p1370
      // Predicated region
      $region723: #{tpu_custom_call.1} parent=710 // pred_check
        _
      $region724: #{tpu_custom_call.1} parent=710 // pred_check_branch
        %1373 = sbr.rel (%p1370) target = $region726
      $region725: #{tpu_custom_call.1} parent=710 // pred_region
        %s1374 = sand.u32 1, 7
        %s1375 = ssub.s32 1, %s1374
        %s1376 = scalar_lea.vmem %s1346, %s1375
        %s1377 = ssub.s32 1, %s1374
        %s1378 = scalar_lea.vmem %s1347, %s1377 [#allocation2]
        %s1379 = sshll.u32 1, %s1374
        %s1380 = ssub.s32 %s1379, 1
        loop: start=0, step=1, limit=1
        $region727: #{tpu_custom_call.1} parent=725 // loop_pre_header
          _
        $region728: #{tpu_custom_call.1} parent=725 // loop_header
          %s1382 = sphi 0, %s1386
          %p1383 = scmp.ge.s32.totalorder %s1382, 1
          %s1387 = sphi %s1376, %s1376
          %s1388 = sphi %s1378, %s1378
        $region729: #{tpu_custom_call.1} parent=725 // loop_header_branch
          %1385 = sbr.rel (%p1383) target = $region733
        $region730: #{tpu_custom_call.1} parent=725 // loop_body
          %v1389 = vld [vmem:[%s1387] sm:%s1380]
          %1390 = vst [vmem:[%s1388] sm:%s1380] %v1389
        $region731: #{tpu_custom_call.1} parent=725 // loop_footer
          %s1386 = sadd.s32 1, %s1382
        $region732: #{tpu_custom_call.1} parent=725 // loop_footer_branch
          %1381 = sbr.rel target = $region728
        $region733: #{tpu_custom_call.1} parent=725 // loop_exit
          _
      $region726: #{tpu_custom_call.1} parent=710 // pred_fallthru
        _
    $region711: #{tpu_custom_call.1} parent=1 // pred_fallthru
      _
    // Predicated region
    $region712: #{tpu_custom_call.1} parent=1 // pred_check
      %p1354 = pneg %p1350
    $region713: #{tpu_custom_call.1} parent=1 // pred_check_branch
      %1356 = sbr.rel (%p1354) target = $region715
    $region714: #{tpu_custom_call.1} parent=1 // pred_region
      %s1357 = sshll.u32 1, 1
      %s1358 = ssub.s32 %s1357, 1
      loop: start=0, step=1, limit=1
      $region716: #{tpu_custom_call.1} parent=714 // loop_pre_header
        _
      $region717: #{tpu_custom_call.1} parent=714 // loop_header
        %s1360 = sphi 0, %s1364
        %p1361 = scmp.ge.s32.totalorder %s1360, 1
        %s1365 = sphi %s1346, %s1346
        %s1366 = sphi %s1347, %s1347
      $region718: #{tpu_custom_call.1} parent=714 // loop_header_branch
        %1363 = sbr.rel (%p1361) target = $region722
      $region719: #{tpu_custom_call.1} parent=714 // loop_body
        %v1367 = vld [vmem:[%s1365] sm:%s1358]
        %1368 = vst [vmem:[%s1366] sm:%s1358] %v1367
      $region720: #{tpu_custom_call.1} parent=714 // loop_footer
        %s1364 = sadd.s32 1, %s1360
      $region721: #{tpu_custom_call.1} parent=714 // loop_footer_branch
        %1359 = sbr.rel target = $region717
      $region722: #{tpu_custom_call.1} parent=714 // loop_exit
        _
    $region715: #{tpu_custom_call.1} parent=1 // pred_fallthru
      _
    // Predicated region
    $region734: #{tpu_custom_call.1} parent=1 // pred_check
      _
    $region735: #{tpu_custom_call.1} parent=1 // pred_check_branch
      %1393 = sbr.rel (0) target = $region737
    $region736: #{tpu_custom_call.1} parent=1 // pred_region
      %1394 = vsyncadd %s1348, 16
    $region737: #{tpu_custom_call.1} parent=1 // pred_fallthru
      _
    %s1395 = scalar_lea.vmem %s1, %s178
    %s1396 = scalar_lea.vmem [#allocation2], 24
    %s1397 = scalar_lea.sflag [#allocation3], 24
    %p1399 = scmp.lt.u32.totalorder 1, 8
    %p1400 = pneg %p1399
    // Predicated region
    $region738: #{tpu_custom_call.1} parent=1 // pred_check
      _
    $region739: #{tpu_custom_call.1} parent=1 // pred_check_branch
      %1402 = sbr.rel (%p1399) target = $region741
    $region740: #{tpu_custom_call.1} parent=1 // pred_region
      %s1418 = sand.u32 1, 7
      %p1419 = scmp.eq.s32.totalorder %s1418, 0
      %p1420 = pneg %p1419
      // Predicated region
      $region753: #{tpu_custom_call.1} parent=740 // pred_check
        _
      $region754: #{tpu_custom_call.1} parent=740 // pred_check_branch
        %1422 = sbr.rel (%p1419) target = $region756
      $region755: #{tpu_custom_call.1} parent=740 // pred_region
        %s1423 = sand.u32 1, 7
        %s1424 = ssub.s32 1, %s1423
        %s1425 = scalar_lea.vmem %s1395, %s1424
        %s1426 = ssub.s32 1, %s1423
        %s1427 = scalar_lea.vmem %s1396, %s1426 [#allocation2]
        %s1428 = sshll.u32 1, %s1423
        %s1429 = ssub.s32 %s1428, 1
        loop: start=0, step=1, limit=1
        $region757: #{tpu_custom_call.1} parent=755 // loop_pre_header
          _
        $region758: #{tpu_custom_call.1} parent=755 // loop_header
          %s1431 = sphi 0, %s1435
          %p1432 = scmp.ge.s32.totalorder %s1431, 1
          %s1436 = sphi %s1425, %s1425
          %s1437 = sphi %s1427, %s1427
        $region759: #{tpu_custom_call.1} parent=755 // loop_header_branch
          %1434 = sbr.rel (%p1432) target = $region763
        $region760: #{tpu_custom_call.1} parent=755 // loop_body
          %v1438 = vld [vmem:[%s1436] sm:%s1429]
          %1439 = vst [vmem:[%s1437] sm:%s1429] %v1438
        $region761: #{tpu_custom_call.1} parent=755 // loop_footer
          %s1435 = sadd.s32 1, %s1431
        $region762: #{tpu_custom_call.1} parent=755 // loop_footer_branch
          %1430 = sbr.rel target = $region758
        $region763: #{tpu_custom_call.1} parent=755 // loop_exit
          _
      $region756: #{tpu_custom_call.1} parent=740 // pred_fallthru
        _
    $region741: #{tpu_custom_call.1} parent=1 // pred_fallthru
      _
    // Predicated region
    $region742: #{tpu_custom_call.1} parent=1 // pred_check
      %p1403 = pneg %p1399
    $region743: #{tpu_custom_call.1} parent=1 // pred_check_branch
      %1405 = sbr.rel (%p1403) target = $region745
    $region744: #{tpu_custom_call.1} parent=1 // pred_region
      %s1406 = sshll.u32 1, 1
      %s1407 = ssub.s32 %s1406, 1
      loop: start=0, step=1, limit=1
      $region746: #{tpu_custom_call.1} parent=744 // loop_pre_header
        _
      $region747: #{tpu_custom_call.1} parent=744 // loop_header
        %s1409 = sphi 0, %s1413
        %p1410 = scmp.ge.s32.totalorder %s1409, 1
        %s1414 = sphi %s1395, %s1395
        %s1415 = sphi %s1396, %s1396
      $region748: #{tpu_custom_call.1} parent=744 // loop_header_branch
        %1412 = sbr.rel (%p1410) target = $region752
      $region749: #{tpu_custom_call.1} parent=744 // loop_body
        %v1416 = vld [vmem:[%s1414] sm:%s1407]
        %1417 = vst [vmem:[%s1415] sm:%s1407] %v1416
      $region750: #{tpu_custom_call.1} parent=744 // loop_footer
        %s1413 = sadd.s32 1, %s1409
      $region751: #{tpu_custom_call.1} parent=744 // loop_footer_branch
        %1408 = sbr.rel target = $region747
      $region752: #{tpu_custom_call.1} parent=744 // loop_exit
        _
    $region745: #{tpu_custom_call.1} parent=1 // pred_fallthru
      _
    // Predicated region
    $region764: #{tpu_custom_call.1} parent=1 // pred_check
      _
    $region765: #{tpu_custom_call.1} parent=1 // pred_check_branch
      %1442 = sbr.rel (0) target = $region767
    $region766: #{tpu_custom_call.1} parent=1 // pred_region
      %1443 = vsyncadd %s1397, 16
    $region767: #{tpu_custom_call.1} parent=1 // pred_fallthru
      _
    %s1444 = scalar_lea.vmem %s1, %s184
    %s1445 = scalar_lea.vmem [#allocation2], 25
    %s1446 = scalar_lea.sflag [#allocation3], 25
    %p1448 = scmp.lt.u32.totalorder 1, 8
    %p1449 = pneg %p1448
    // Predicated region
    $region768: #{tpu_custom_call.1} parent=1 // pred_check
      _
    $region769: #{tpu_custom_call.1} parent=1 // pred_check_branch
      %1451 = sbr.rel (%p1448) target = $region771
    $region770: #{tpu_custom_call.1} parent=1 // pred_region
      %s1467 = sand.u32 1, 7
      %p1468 = scmp.eq.s32.totalorder %s1467, 0
      %p1469 = pneg %p1468
      // Predicated region
      $region783: #{tpu_custom_call.1} parent=770 // pred_check
        _
      $region784: #{tpu_custom_call.1} parent=770 // pred_check_branch
        %1471 = sbr.rel (%p1468) target = $region786
      $region785: #{tpu_custom_call.1} parent=770 // pred_region
        %s1472 = sand.u32 1, 7
        %s1473 = ssub.s32 1, %s1472
        %s1474 = scalar_lea.vmem %s1444, %s1473
        %s1475 = ssub.s32 1, %s1472
        %s1476 = scalar_lea.vmem %s1445, %s1475 [#allocation2]
        %s1477 = sshll.u32 1, %s1472
        %s1478 = ssub.s32 %s1477, 1
        loop: start=0, step=1, limit=1
        $region787: #{tpu_custom_call.1} parent=785 // loop_pre_header
          _
        $region788: #{tpu_custom_call.1} parent=785 // loop_header
          %s1480 = sphi 0, %s1484
          %p1481 = scmp.ge.s32.totalorder %s1480, 1
          %s1485 = sphi %s1474, %s1474
          %s1486 = sphi %s1476, %s1476
        $region789: #{tpu_custom_call.1} parent=785 // loop_header_branch
          %1483 = sbr.rel (%p1481) target = $region793
        $region790: #{tpu_custom_call.1} parent=785 // loop_body
          %v1487 = vld [vmem:[%s1485] sm:%s1478]
          %1488 = vst [vmem:[%s1486] sm:%s1478] %v1487
        $region791: #{tpu_custom_call.1} parent=785 // loop_footer
          %s1484 = sadd.s32 1, %s1480
        $region792: #{tpu_custom_call.1} parent=785 // loop_footer_branch
          %1479 = sbr.rel target = $region788
        $region793: #{tpu_custom_call.1} parent=785 // loop_exit
          _
      $region786: #{tpu_custom_call.1} parent=770 // pred_fallthru
        _
    $region771: #{tpu_custom_call.1} parent=1 // pred_fallthru
      _
    // Predicated region
    $region772: #{tpu_custom_call.1} parent=1 // pred_check
      %p1452 = pneg %p1448
    $region773: #{tpu_custom_call.1} parent=1 // pred_check_branch
      %1454 = sbr.rel (%p1452) target = $region775
    $region774: #{tpu_custom_call.1} parent=1 // pred_region
      %s1455 = sshll.u32 1, 1
      %s1456 = ssub.s32 %s1455, 1
      loop: start=0, step=1, limit=1
      $region776: #{tpu_custom_call.1} parent=774 // loop_pre_header
        _
      $region777: #{tpu_custom_call.1} parent=774 // loop_header
        %s1458 = sphi 0, %s1462
        %p1459 = scmp.ge.s32.totalorder %s1458, 1
        %s1463 = sphi %s1444, %s1444
        %s1464 = sphi %s1445, %s1445
      $region778: #{tpu_custom_call.1} parent=774 // loop_header_branch
        %1461 = sbr.rel (%p1459) target = $region782
      $region779: #{tpu_custom_call.1} parent=774 // loop_body
        %v1465 = vld [vmem:[%s1463] sm:%s1456]
        %1466 = vst [vmem:[%s1464] sm:%s1456] %v1465
      $region780: #{tpu_custom_call.1} parent=774 // loop_footer
        %s1462 = sadd.s32 1, %s1458
      $region781: #{tpu_custom_call.1} parent=774 // loop_footer_branch
        %1457 = sbr.rel target = $region777
      $region782: #{tpu_custom_call.1} parent=774 // loop_exit
        _
    $region775: #{tpu_custom_call.1} parent=1 // pred_fallthru
      _
    // Predicated region
    $region794: #{tpu_custom_call.1} parent=1 // pred_check
      _
    $region795: #{tpu_custom_call.1} parent=1 // pred_check_branch
      %1491 = sbr.rel (0) target = $region797
    $region796: #{tpu_custom_call.1} parent=1 // pred_region
      %1492 = vsyncadd %s1446, 16
    $region797: #{tpu_custom_call.1} parent=1 // pred_fallthru
      _
    %s1493 = scalar_lea.vmem %s1, %s190
    %s1494 = scalar_lea.vmem [#allocation2], 26
    %s1495 = scalar_lea.sflag [#allocation3], 26
    %p1497 = scmp.lt.u32.totalorder 1, 8
    %p1498 = pneg %p1497
    // Predicated region
    $region798: #{tpu_custom_call.1} parent=1 // pred_check
      _
    $region799: #{tpu_custom_call.1} parent=1 // pred_check_branch
      %1500 = sbr.rel (%p1497) target = $region801
    $region800: #{tpu_custom_call.1} parent=1 // pred_region
      %s1516 = sand.u32 1, 7
      %p1517 = scmp.eq.s32.totalorder %s1516, 0
      %p1518 = pneg %p1517
      // Predicated region
      $region813: #{tpu_custom_call.1} parent=800 // pred_check
        _
      $region814: #{tpu_custom_call.1} parent=800 // pred_check_branch
        %1520 = sbr.rel (%p1517) target = $region816
      $region815: #{tpu_custom_call.1} parent=800 // pred_region
        %s1521 = sand.u32 1, 7
        %s1522 = ssub.s32 1, %s1521
        %s1523 = scalar_lea.vmem %s1493, %s1522
        %s1524 = ssub.s32 1, %s1521
        %s1525 = scalar_lea.vmem %s1494, %s1524 [#allocation2]
        %s1526 = sshll.u32 1, %s1521
        %s1527 = ssub.s32 %s1526, 1
        loop: start=0, step=1, limit=1
        $region817: #{tpu_custom_call.1} parent=815 // loop_pre_header
          _
        $region818: #{tpu_custom_call.1} parent=815 // loop_header
          %s1529 = sphi 0, %s1533
          %p1530 = scmp.ge.s32.totalorder %s1529, 1
          %s1534 = sphi %s1523, %s1523
          %s1535 = sphi %s1525, %s1525
        $region819: #{tpu_custom_call.1} parent=815 // loop_header_branch
          %1532 = sbr.rel (%p1530) target = $region823
        $region820: #{tpu_custom_call.1} parent=815 // loop_body
          %v1536 = vld [vmem:[%s1534] sm:%s1527]
          %1537 = vst [vmem:[%s1535] sm:%s1527] %v1536
        $region821: #{tpu_custom_call.1} parent=815 // loop_footer
          %s1533 = sadd.s32 1, %s1529
        $region822: #{tpu_custom_call.1} parent=815 // loop_footer_branch
          %1528 = sbr.rel target = $region818
        $region823: #{tpu_custom_call.1} parent=815 // loop_exit
          _
      $region816: #{tpu_custom_call.1} parent=800 // pred_fallthru
        _
    $region801: #{tpu_custom_call.1} parent=1 // pred_fallthru
      _
    // Predicated region
    $region802: #{tpu_custom_call.1} parent=1 // pred_check
      %p1501 = pneg %p1497
    $region803: #{tpu_custom_call.1} parent=1 // pred_check_branch
      %1503 = sbr.rel (%p1501) target = $region805
    $region804: #{tpu_custom_call.1} parent=1 // pred_region
      %s1504 = sshll.u32 1, 1
      %s1505 = ssub.s32 %s1504, 1
      loop: start=0, step=1, limit=1
      $region806: #{tpu_custom_call.1} parent=804 // loop_pre_header
        _
      $region807: #{tpu_custom_call.1} parent=804 // loop_header
        %s1507 = sphi 0, %s1511
        %p1508 = scmp.ge.s32.totalorder %s1507, 1
        %s1512 = sphi %s1493, %s1493
        %s1513 = sphi %s1494, %s1494
      $region808: #{tpu_custom_call.1} parent=804 // loop_header_branch
        %1510 = sbr.rel (%p1508) target = $region812
      $region809: #{tpu_custom_call.1} parent=804 // loop_body
        %v1514 = vld [vmem:[%s1512] sm:%s1505]
        %1515 = vst [vmem:[%s1513] sm:%s1505] %v1514
      $region810: #{tpu_custom_call.1} parent=804 // loop_footer
        %s1511 = sadd.s32 1, %s1507
      $region811: #{tpu_custom_call.1} parent=804 // loop_footer_branch
        %1506 = sbr.rel target = $region807
      $region812: #{tpu_custom_call.1} parent=804 // loop_exit
        _
    $region805: #{tpu_custom_call.1} parent=1 // pred_fallthru
      _
    // Predicated region
    $region824: #{tpu_custom_call.1} parent=1 // pred_check
      _
    $region825: #{tpu_custom_call.1} parent=1 // pred_check_branch
      %1540 = sbr.rel (0) target = $region827
    $region826: #{tpu_custom_call.1} parent=1 // pred_region
      %1541 = vsyncadd %s1495, 16
    $region827: #{tpu_custom_call.1} parent=1 // pred_fallthru
      _
    %s1542 = scalar_lea.vmem %s1, %s196
    %s1543 = scalar_lea.vmem [#allocation2], 27
    %s1544 = scalar_lea.sflag [#allocation3], 27
    %p1546 = scmp.lt.u32.totalorder 1, 8
    %p1547 = pneg %p1546
    // Predicated region
    $region828: #{tpu_custom_call.1} parent=1 // pred_check
      _
    $region829: #{tpu_custom_call.1} parent=1 // pred_check_branch
      %1549 = sbr.rel (%p1546) target = $region831
    $region830: #{tpu_custom_call.1} parent=1 // pred_region
      %s1565 = sand.u32 1, 7
      %p1566 = scmp.eq.s32.totalorder %s1565, 0
      %p1567 = pneg %p1566
      // Predicated region
      $region843: #{tpu_custom_call.1} parent=830 // pred_check
        _
      $region844: #{tpu_custom_call.1} parent=830 // pred_check_branch
        %1569 = sbr.rel (%p1566) target = $region846
      $region845: #{tpu_custom_call.1} parent=830 // pred_region
        %s1570 = sand.u32 1, 7
        %s1571 = ssub.s32 1, %s1570
        %s1572 = scalar_lea.vmem %s1542, %s1571
        %s1573 = ssub.s32 1, %s1570
        %s1574 = scalar_lea.vmem %s1543, %s1573 [#allocation2]
        %s1575 = sshll.u32 1, %s1570
        %s1576 = ssub.s32 %s1575, 1
        loop: start=0, step=1, limit=1
        $region847: #{tpu_custom_call.1} parent=845 // loop_pre_header
          _
        $region848: #{tpu_custom_call.1} parent=845 // loop_header
          %s1578 = sphi 0, %s1582
          %p1579 = scmp.ge.s32.totalorder %s1578, 1
          %s1583 = sphi %s1572, %s1572
          %s1584 = sphi %s1574, %s1574
        $region849: #{tpu_custom_call.1} parent=845 // loop_header_branch
          %1581 = sbr.rel (%p1579) target = $region853
        $region850: #{tpu_custom_call.1} parent=845 // loop_body
          %v1585 = vld [vmem:[%s1583] sm:%s1576]
          %1586 = vst [vmem:[%s1584] sm:%s1576] %v1585
        $region851: #{tpu_custom_call.1} parent=845 // loop_footer
          %s1582 = sadd.s32 1, %s1578
        $region852: #{tpu_custom_call.1} parent=845 // loop_footer_branch
          %1577 = sbr.rel target = $region848
        $region853: #{tpu_custom_call.1} parent=845 // loop_exit
          _
      $region846: #{tpu_custom_call.1} parent=830 // pred_fallthru
        _
    $region831: #{tpu_custom_call.1} parent=1 // pred_fallthru
      _
    // Predicated region
    $region832: #{tpu_custom_call.1} parent=1 // pred_check
      %p1550 = pneg %p1546
    $region833: #{tpu_custom_call.1} parent=1 // pred_check_branch
      %1552 = sbr.rel (%p1550) target = $region835
    $region834: #{tpu_custom_call.1} parent=1 // pred_region
      %s1553 = sshll.u32 1, 1
      %s1554 = ssub.s32 %s1553, 1
      loop: start=0, step=1, limit=1
      $region836: #{tpu_custom_call.1} parent=834 // loop_pre_header
        _
      $region837: #{tpu_custom_call.1} parent=834 // loop_header
        %s1556 = sphi 0, %s1560
        %p1557 = scmp.ge.s32.totalorder %s1556, 1
        %s1561 = sphi %s1542, %s1542
        %s1562 = sphi %s1543, %s1543
      $region838: #{tpu_custom_call.1} parent=834 // loop_header_branch
        %1559 = sbr.rel (%p1557) target = $region842
      $region839: #{tpu_custom_call.1} parent=834 // loop_body
        %v1563 = vld [vmem:[%s1561] sm:%s1554]
        %1564 = vst [vmem:[%s1562] sm:%s1554] %v1563
      $region840: #{tpu_custom_call.1} parent=834 // loop_footer
        %s1560 = sadd.s32 1, %s1556
      $region841: #{tpu_custom_call.1} parent=834 // loop_footer_branch
        %1555 = sbr.rel target = $region837
      $region842: #{tpu_custom_call.1} parent=834 // loop_exit
        _
    $region835: #{tpu_custom_call.1} parent=1 // pred_fallthru
      _
    // Predicated region
    $region854: #{tpu_custom_call.1} parent=1 // pred_check
      _
    $region855: #{tpu_custom_call.1} parent=1 // pred_check_branch
      %1589 = sbr.rel (0) target = $region857
    $region856: #{tpu_custom_call.1} parent=1 // pred_region
      %1590 = vsyncadd %s1544, 16
    $region857: #{tpu_custom_call.1} parent=1 // pred_fallthru
      _
    %s1591 = scalar_lea.vmem %s1, %s202
    %s1592 = scalar_lea.vmem [#allocation2], 28
    %s1593 = scalar_lea.sflag [#allocation3], 28
    %p1595 = scmp.lt.u32.totalorder 1, 8
    %p1596 = pneg %p1595
    // Predicated region
    $region858: #{tpu_custom_call.1} parent=1 // pred_check
      _
    $region859: #{tpu_custom_call.1} parent=1 // pred_check_branch
      %1598 = sbr.rel (%p1595) target = $region861
    $region860: #{tpu_custom_call.1} parent=1 // pred_region
      %s1614 = sand.u32 1, 7
      %p1615 = scmp.eq.s32.totalorder %s1614, 0
      %p1616 = pneg %p1615
      // Predicated region
      $region873: #{tpu_custom_call.1} parent=860 // pred_check
        _
      $region874: #{tpu_custom_call.1} parent=860 // pred_check_branch
        %1618 = sbr.rel (%p1615) target = $region876
      $region875: #{tpu_custom_call.1} parent=860 // pred_region
        %s1619 = sand.u32 1, 7
        %s1620 = ssub.s32 1, %s1619
        %s1621 = scalar_lea.vmem %s1591, %s1620
        %s1622 = ssub.s32 1, %s1619
        %s1623 = scalar_lea.vmem %s1592, %s1622 [#allocation2]
        %s1624 = sshll.u32 1, %s1619
        %s1625 = ssub.s32 %s1624, 1
        loop: start=0, step=1, limit=1
        $region877: #{tpu_custom_call.1} parent=875 // loop_pre_header
          _
        $region878: #{tpu_custom_call.1} parent=875 // loop_header
          %s1627 = sphi 0, %s1631
          %p1628 = scmp.ge.s32.totalorder %s1627, 1
          %s1632 = sphi %s1621, %s1621
          %s1633 = sphi %s1623, %s1623
        $region879: #{tpu_custom_call.1} parent=875 // loop_header_branch
          %1630 = sbr.rel (%p1628) target = $region883
        $region880: #{tpu_custom_call.1} parent=875 // loop_body
          %v1634 = vld [vmem:[%s1632] sm:%s1625]
          %1635 = vst [vmem:[%s1633] sm:%s1625] %v1634
        $region881: #{tpu_custom_call.1} parent=875 // loop_footer
          %s1631 = sadd.s32 1, %s1627
        $region882: #{tpu_custom_call.1} parent=875 // loop_footer_branch
          %1626 = sbr.rel target = $region878
        $region883: #{tpu_custom_call.1} parent=875 // loop_exit
          _
      $region876: #{tpu_custom_call.1} parent=860 // pred_fallthru
        _
    $region861: #{tpu_custom_call.1} parent=1 // pred_fallthru
      _
    // Predicated region
    $region862: #{tpu_custom_call.1} parent=1 // pred_check
      %p1599 = pneg %p1595
    $region863: #{tpu_custom_call.1} parent=1 // pred_check_branch
      %1601 = sbr.rel (%p1599) target = $region865
    $region864: #{tpu_custom_call.1} parent=1 // pred_region
      %s1602 = sshll.u32 1, 1
      %s1603 = ssub.s32 %s1602, 1
      loop: start=0, step=1, limit=1
      $region866: #{tpu_custom_call.1} parent=864 // loop_pre_header
        _
      $region867: #{tpu_custom_call.1} parent=864 // loop_header
        %s1605 = sphi 0, %s1609
        %p1606 = scmp.ge.s32.totalorder %s1605, 1
        %s1610 = sphi %s1591, %s1591
        %s1611 = sphi %s1592, %s1592
      $region868: #{tpu_custom_call.1} parent=864 // loop_header_branch
        %1608 = sbr.rel (%p1606) target = $region872
      $region869: #{tpu_custom_call.1} parent=864 // loop_body
        %v1612 = vld [vmem:[%s1610] sm:%s1603]
        %1613 = vst [vmem:[%s1611] sm:%s1603] %v1612
      $region870: #{tpu_custom_call.1} parent=864 // loop_footer
        %s1609 = sadd.s32 1, %s1605
      $region871: #{tpu_custom_call.1} parent=864 // loop_footer_branch
        %1604 = sbr.rel target = $region867
      $region872: #{tpu_custom_call.1} parent=864 // loop_exit
        _
    $region865: #{tpu_custom_call.1} parent=1 // pred_fallthru
      _
    // Predicated region
    $region884: #{tpu_custom_call.1} parent=1 // pred_check
      _
    $region885: #{tpu_custom_call.1} parent=1 // pred_check_branch
      %1638 = sbr.rel (0) target = $region887
    $region886: #{tpu_custom_call.1} parent=1 // pred_region
      %1639 = vsyncadd %s1593, 16
    $region887: #{tpu_custom_call.1} parent=1 // pred_fallthru
      _
    %s1640 = scalar_lea.vmem %s1, %s208
    %s1641 = scalar_lea.vmem [#allocation2], 29
    %s1642 = scalar_lea.sflag [#allocation3], 29
    %p1644 = scmp.lt.u32.totalorder 1, 8
    %p1645 = pneg %p1644
    // Predicated region
    $region888: #{tpu_custom_call.1} parent=1 // pred_check
      _
    $region889: #{tpu_custom_call.1} parent=1 // pred_check_branch
      %1647 = sbr.rel (%p1644) target = $region891
    $region890: #{tpu_custom_call.1} parent=1 // pred_region
      %s1663 = sand.u32 1, 7
      %p1664 = scmp.eq.s32.totalorder %s1663, 0
      %p1665 = pneg %p1664
      // Predicated region
      $region903: #{tpu_custom_call.1} parent=890 // pred_check
        _
      $region904: #{tpu_custom_call.1} parent=890 // pred_check_branch
        %1667 = sbr.rel (%p1664) target = $region906
      $region905: #{tpu_custom_call.1} parent=890 // pred_region
        %s1668 = sand.u32 1, 7
        %s1669 = ssub.s32 1, %s1668
        %s1670 = scalar_lea.vmem %s1640, %s1669
        %s1671 = ssub.s32 1, %s1668
        %s1672 = scalar_lea.vmem %s1641, %s1671 [#allocation2]
        %s1673 = sshll.u32 1, %s1668
        %s1674 = ssub.s32 %s1673, 1
        loop: start=0, step=1, limit=1
        $region907: #{tpu_custom_call.1} parent=905 // loop_pre_header
          _
        $region908: #{tpu_custom_call.1} parent=905 // loop_header
          %s1676 = sphi 0, %s1680
          %p1677 = scmp.ge.s32.totalorder %s1676, 1
          %s1681 = sphi %s1670, %s1670
          %s1682 = sphi %s1672, %s1672
        $region909: #{tpu_custom_call.1} parent=905 // loop_header_branch
          %1679 = sbr.rel (%p1677) target = $region913
        $region910: #{tpu_custom_call.1} parent=905 // loop_body
          %v1683 = vld [vmem:[%s1681] sm:%s1674]
          %1684 = vst [vmem:[%s1682] sm:%s1674] %v1683
        $region911: #{tpu_custom_call.1} parent=905 // loop_footer
          %s1680 = sadd.s32 1, %s1676
        $region912: #{tpu_custom_call.1} parent=905 // loop_footer_branch
          %1675 = sbr.rel target = $region908
        $region913: #{tpu_custom_call.1} parent=905 // loop_exit
          _
      $region906: #{tpu_custom_call.1} parent=890 // pred_fallthru
        _
    $region891: #{tpu_custom_call.1} parent=1 // pred_fallthru
      _
    // Predicated region
    $region892: #{tpu_custom_call.1} parent=1 // pred_check
      %p1648 = pneg %p1644
    $region893: #{tpu_custom_call.1} parent=1 // pred_check_branch
      %1650 = sbr.rel (%p1648) target = $region895
    $region894: #{tpu_custom_call.1} parent=1 // pred_region
      %s1651 = sshll.u32 1, 1
      %s1652 = ssub.s32 %s1651, 1
      loop: start=0, step=1, limit=1
      $region896: #{tpu_custom_call.1} parent=894 // loop_pre_header
        _
      $region897: #{tpu_custom_call.1} parent=894 // loop_header
        %s1654 = sphi 0, %s1658
        %p1655 = scmp.ge.s32.totalorder %s1654, 1
        %s1659 = sphi %s1640, %s1640
        %s1660 = sphi %s1641, %s1641
      $region898: #{tpu_custom_call.1} parent=894 // loop_header_branch
        %1657 = sbr.rel (%p1655) target = $region902
      $region899: #{tpu_custom_call.1} parent=894 // loop_body
        %v1661 = vld [vmem:[%s1659] sm:%s1652]
        %1662 = vst [vmem:[%s1660] sm:%s1652] %v1661
      $region900: #{tpu_custom_call.1} parent=894 // loop_footer
        %s1658 = sadd.s32 1, %s1654
      $region901: #{tpu_custom_call.1} parent=894 // loop_footer_branch
        %1653 = sbr.rel target = $region897
      $region902: #{tpu_custom_call.1} parent=894 // loop_exit
        _
    $region895: #{tpu_custom_call.1} parent=1 // pred_fallthru
      _
    // Predicated region
    $region914: #{tpu_custom_call.1} parent=1 // pred_check
      _
    $region915: #{tpu_custom_call.1} parent=1 // pred_check_branch
      %1687 = sbr.rel (0) target = $region917
    $region916: #{tpu_custom_call.1} parent=1 // pred_region
      %1688 = vsyncadd %s1642, 16
    $region917: #{tpu_custom_call.1} parent=1 // pred_fallthru
      _
    %s1689 = scalar_lea.vmem %s1, %s214
    %s1690 = scalar_lea.vmem [#allocation2], 30
    %s1691 = scalar_lea.sflag [#allocation3], 30
    %p1693 = scmp.lt.u32.totalorder 1, 8
    %p1694 = pneg %p1693
    // Predicated region
    $region918: #{tpu_custom_call.1} parent=1 // pred_check
      _
    $region919: #{tpu_custom_call.1} parent=1 // pred_check_branch
      %1696 = sbr.rel (%p1693) target = $region921
    $region920: #{tpu_custom_call.1} parent=1 // pred_region
      %s1712 = sand.u32 1, 7
      %p1713 = scmp.eq.s32.totalorder %s1712, 0
      %p1714 = pneg %p1713
      // Predicated region
      $region933: #{tpu_custom_call.1} parent=920 // pred_check
        _
      $region934: #{tpu_custom_call.1} parent=920 // pred_check_branch
        %1716 = sbr.rel (%p1713) target = $region936
      $region935: #{tpu_custom_call.1} parent=920 // pred_region
        %s1717 = sand.u32 1, 7
        %s1718 = ssub.s32 1, %s1717
        %s1719 = scalar_lea.vmem %s1689, %s1718
        %s1720 = ssub.s32 1, %s1717
        %s1721 = scalar_lea.vmem %s1690, %s1720 [#allocation2]
        %s1722 = sshll.u32 1, %s1717
        %s1723 = ssub.s32 %s1722, 1
        loop: start=0, step=1, limit=1
        $region937: #{tpu_custom_call.1} parent=935 // loop_pre_header
          _
        $region938: #{tpu_custom_call.1} parent=935 // loop_header
          %s1725 = sphi 0, %s1729
          %p1726 = scmp.ge.s32.totalorder %s1725, 1
          %s1730 = sphi %s1719, %s1719
          %s1731 = sphi %s1721, %s1721
        $region939: #{tpu_custom_call.1} parent=935 // loop_header_branch
          %1728 = sbr.rel (%p1726) target = $region943
        $region940: #{tpu_custom_call.1} parent=935 // loop_body
          %v1732 = vld [vmem:[%s1730] sm:%s1723]
          %1733 = vst [vmem:[%s1731] sm:%s1723] %v1732
        $region941: #{tpu_custom_call.1} parent=935 // loop_footer
          %s1729 = sadd.s32 1, %s1725
        $region942: #{tpu_custom_call.1} parent=935 // loop_footer_branch
          %1724 = sbr.rel target = $region938
        $region943: #{tpu_custom_call.1} parent=935 // loop_exit
          _
      $region936: #{tpu_custom_call.1} parent=920 // pred_fallthru
        _
    $region921: #{tpu_custom_call.1} parent=1 // pred_fallthru
      _
    // Predicated region
    $region922: #{tpu_custom_call.1} parent=1 // pred_check
      %p1697 = pneg %p1693
    $region923: #{tpu_custom_call.1} parent=1 // pred_check_branch
      %1699 = sbr.rel (%p1697) target = $region925
    $region924: #{tpu_custom_call.1} parent=1 // pred_region
      %s1700 = sshll.u32 1, 1
      %s1701 = ssub.s32 %s1700, 1
      loop: start=0, step=1, limit=1
      $region926: #{tpu_custom_call.1} parent=924 // loop_pre_header
        _
      $region927: #{tpu_custom_call.1} parent=924 // loop_header
        %s1703 = sphi 0, %s1707
        %p1704 = scmp.ge.s32.totalorder %s1703, 1
        %s1708 = sphi %s1689, %s1689
        %s1709 = sphi %s1690, %s1690
      $region928: #{tpu_custom_call.1} parent=924 // loop_header_branch
        %1706 = sbr.rel (%p1704) target = $region932
      $region929: #{tpu_custom_call.1} parent=924 // loop_body
        %v1710 = vld [vmem:[%s1708] sm:%s1701]
        %1711 = vst [vmem:[%s1709] sm:%s1701] %v1710
      $region930: #{tpu_custom_call.1} parent=924 // loop_footer
        %s1707 = sadd.s32 1, %s1703
      $region931: #{tpu_custom_call.1} parent=924 // loop_footer_branch
        %1702 = sbr.rel target = $region927
      $region932: #{tpu_custom_call.1} parent=924 // loop_exit
        _
    $region925: #{tpu_custom_call.1} parent=1 // pred_fallthru
      _
    // Predicated region
    $region944: #{tpu_custom_call.1} parent=1 // pred_check
      _
    $region945: #{tpu_custom_call.1} parent=1 // pred_check_branch
      %1736 = sbr.rel (0) target = $region947
    $region946: #{tpu_custom_call.1} parent=1 // pred_region
      %1737 = vsyncadd %s1691, 16
    $region947: #{tpu_custom_call.1} parent=1 // pred_fallthru
      _
    %s1738 = scalar_lea.vmem %s1, %s220
    %s1739 = scalar_lea.vmem [#allocation2], 31
    %s1740 = scalar_lea.sflag [#allocation3], 31
    %p1742 = scmp.lt.u32.totalorder 1, 8
    %p1743 = pneg %p1742
    // Predicated region
    $region948: #{tpu_custom_call.1} parent=1 // pred_check
      _
    $region949: #{tpu_custom_call.1} parent=1 // pred_check_branch
      %1745 = sbr.rel (%p1742) target = $region951
    $region950: #{tpu_custom_call.1} parent=1 // pred_region
      %s1761 = sand.u32 1, 7
      %p1762 = scmp.eq.s32.totalorder %s1761, 0
      %p1763 = pneg %p1762
      // Predicated region
      $region963: #{tpu_custom_call.1} parent=950 // pred_check
        _
      $region964: #{tpu_custom_call.1} parent=950 // pred_check_branch
        %1765 = sbr.rel (%p1762) target = $region966
      $region965: #{tpu_custom_call.1} parent=950 // pred_region
        %s1766 = sand.u32 1, 7
        %s1767 = ssub.s32 1, %s1766
        %s1768 = scalar_lea.vmem %s1738, %s1767
        %s1769 = ssub.s32 1, %s1766
        %s1770 = scalar_lea.vmem %s1739, %s1769 [#allocation2]
        %s1771 = sshll.u32 1, %s1766
        %s1772 = ssub.s32 %s1771, 1
        loop: start=0, step=1, limit=1
        $region967: #{tpu_custom_call.1} parent=965 // loop_pre_header
          _
        $region968: #{tpu_custom_call.1} parent=965 // loop_header
          %s1774 = sphi 0, %s1778
          %p1775 = scmp.ge.s32.totalorder %s1774, 1
          %s1779 = sphi %s1768, %s1768
          %s1780 = sphi %s1770, %s1770
        $region969: #{tpu_custom_call.1} parent=965 // loop_header_branch
          %1777 = sbr.rel (%p1775) target = $region973
        $region970: #{tpu_custom_call.1} parent=965 // loop_body
          %v1781 = vld [vmem:[%s1779] sm:%s1772]
          %1782 = vst [vmem:[%s1780] sm:%s1772] %v1781
        $region971: #{tpu_custom_call.1} parent=965 // loop_footer
          %s1778 = sadd.s32 1, %s1774
        $region972: #{tpu_custom_call.1} parent=965 // loop_footer_branch
          %1773 = sbr.rel target = $region968
        $region973: #{tpu_custom_call.1} parent=965 // loop_exit
          _
      $region966: #{tpu_custom_call.1} parent=950 // pred_fallthru
        _
    $region951: #{tpu_custom_call.1} parent=1 // pred_fallthru
      _
    // Predicated region
    $region952: #{tpu_custom_call.1} parent=1 // pred_check
      %p1746 = pneg %p1742
    $region953: #{tpu_custom_call.1} parent=1 // pred_check_branch
      %1748 = sbr.rel (%p1746) target = $region955
    $region954: #{tpu_custom_call.1} parent=1 // pred_region
      %s1749 = sshll.u32 1, 1
      %s1750 = ssub.s32 %s1749, 1
      loop: start=0, step=1, limit=1
      $region956: #{tpu_custom_call.1} parent=954 // loop_pre_header
        _
      $region957: #{tpu_custom_call.1} parent=954 // loop_header
        %s1752 = sphi 0, %s1756
        %p1753 = scmp.ge.s32.totalorder %s1752, 1
        %s1757 = sphi %s1738, %s1738
        %s1758 = sphi %s1739, %s1739
      $region958: #{tpu_custom_call.1} parent=954 // loop_header_branch
        %1755 = sbr.rel (%p1753) target = $region962
      $region959: #{tpu_custom_call.1} parent=954 // loop_body
        %v1759 = vld [vmem:[%s1757] sm:%s1750]
        %1760 = vst [vmem:[%s1758] sm:%s1750] %v1759
      $region960: #{tpu_custom_call.1} parent=954 // loop_footer
        %s1756 = sadd.s32 1, %s1752
      $region961: #{tpu_custom_call.1} parent=954 // loop_footer_branch
        %1751 = sbr.rel target = $region957
      $region962: #{tpu_custom_call.1} parent=954 // loop_exit
        _
    $region955: #{tpu_custom_call.1} parent=1 // pred_fallthru
      _
    // Predicated region
    $region974: #{tpu_custom_call.1} parent=1 // pred_check
      _
    $region975: #{tpu_custom_call.1} parent=1 // pred_check_branch
      %1785 = sbr.rel (0) target = $region977
    $region976: #{tpu_custom_call.1} parent=1 // pred_region
      %1786 = vsyncadd %s1740, 16
    $region977: #{tpu_custom_call.1} parent=1 // pred_fallthru
      _
    %s1787 = smul.u32 1, 1
    %s1788 = sshll.u32 %s1787, 4
    %1789 = dma.done [#allocation3], %s1788
    %s1790 = sshll.u32 %s1787, 4
    %1791 = dma.done %s270, %s1790
    %s1792 = sshll.u32 %s1787, 4
    %1793 = dma.done %s319, %s1792
    %s1794 = sshll.u32 %s1787, 4
    %1795 = dma.done %s368, %s1794
    %s1796 = sshll.u32 %s1787, 4
    %1797 = dma.done %s417, %s1796
    %s1798 = sshll.u32 %s1787, 4
    %1799 = dma.done %s466, %s1798
    %s1800 = sshll.u32 %s1787, 4
    %1801 = dma.done %s515, %s1800
    %s1802 = sshll.u32 %s1787, 4
    %1803 = dma.done %s564, %s1802
    %s1804 = sshll.u32 %s1787, 4
    %1805 = dma.done %s613, %s1804
    %s1806 = sshll.u32 %s1787, 4
    %1807 = dma.done %s662, %s1806
    %s1808 = sshll.u32 %s1787, 4
    %1809 = dma.done %s711, %s1808
    %s1810 = sshll.u32 %s1787, 4
    %1811 = dma.done %s760, %s1810
    %s1812 = sshll.u32 %s1787, 4
    %1813 = dma.done %s809, %s1812
    %s1814 = sshll.u32 %s1787, 4
    %1815 = dma.done %s858, %s1814
    %s1816 = sshll.u32 %s1787, 4
    %1817 = dma.done %s907, %s1816
    %s1818 = sshll.u32 %s1787, 4
    %1819 = dma.done %s956, %s1818
    %s1820 = sshll.u32 %s1787, 4
    %1821 = dma.done %s1005, %s1820
    %s1822 = sshll.u32 %s1787, 4
    %1823 = dma.done %s1054, %s1822
    %s1824 = sshll.u32 %s1787, 4
    %1825 = dma.done %s1103, %s1824
    %s1826 = sshll.u32 %s1787, 4
    %1827 = dma.done %s1152, %s1826
    %s1828 = sshll.u32 %s1787, 4
    %1829 = dma.done %s1201, %s1828
    %s1830 = sshll.u32 %s1787, 4
    %1831 = dma.done %s1250, %s1830
    %s1832 = sshll.u32 %s1787, 4
    %1833 = dma.done %s1299, %s1832
    %s1834 = sshll.u32 %s1787, 4
    %1835 = dma.done %s1348, %s1834
    %s1836 = sshll.u32 %s1787, 4
    %1837 = dma.done %s1397, %s1836
    %s1838 = sshll.u32 %s1787, 4
    %1839 = dma.done %s1446, %s1838
    %s1840 = sshll.u32 %s1787, 4
    %1841 = dma.done %s1495, %s1840
    %s1842 = sshll.u32 %s1787, 4
    %1843 = dma.done %s1544, %s1842
    %s1844 = sshll.u32 %s1787, 4
    %1845 = dma.done %s1593, %s1844
    %s1846 = sshll.u32 %s1787, 4
    %1847 = dma.done %s1642, %s1846
    %s1848 = sshll.u32 %s1787, 4
    %1849 = dma.done %s1691, %s1848
    %s1850 = sshll.u32 %s1787, 4
    %1851 = dma.done %s1740, %s1850
    %v1852 = vld [vmem:[#allocation2] sm:$0xff]
    %v1853 = vld [vmem:[#allocation2 + $0x8] sm:$0xff]
    %v1854 = vld [vmem:[#allocation2 + $0x10] sm:$0xff]
    %v1855 = vld [vmem:[#allocation2 + $0x18] sm:$0xff]
    %v1856 = vpack.c.bf16 %v1853, %v1852
    %v1857 = vpack.c.bf16 %v1855, %v1854
    %v1858 = vld [vmem:[%s2] sm:$0xf]
    %v1859 = vld [vmem:[%s2 + $0x4] sm:$0xf]
    %v1860 = vld [vmem:[%s2 + $0x8] sm:$0xf]
    %v1861 = vld [vmem:[%s2 + $0xc] sm:$0xf]
    %v1862 = vld [vmem:[%s2 + $0x10] sm:$0xf]
    %v1863 = vld [vmem:[%s2 + $0x14] sm:$0xf]
    %v1864 = vld [vmem:[%s2 + $0x18] sm:$0xf]
    %v1865 = vld [vmem:[%s2 + $0x1c] sm:$0xf]
    %v1874 = vunpack.c.l.b16 %v1858
    %v1875 = vunpack.c.l.b16 %v1859
    %v1876 = vunpack.c.l.b16 %v1860
    %v1877 = vunpack.c.l.b16 %v1861
    %v1878 = vunpack.c.l.b16 %v1862
    %v1879 = vunpack.c.l.b16 %v1863
    %v1880 = vunpack.c.l.b16 %v1864
    %v1881 = vunpack.c.l.b16 %v1865
    %v1882 = vpack.c.b16 %v1875, %v1874
    %v1883 = vpack.c.b16 %v1877, %v1876
    %v1884 = vpack.c.b16 %v1879, %v1878
    %v1885 = vpack.c.b16 %v1881, %v1880
    %vm1890 = vcmask 523264
    %v1892 = vsel %vm1890, %v1856, 0
    %v1895 = vsel %vm1890, %v1857, 0
    %1897 = vmatprep.subr.bf16.mxu0 0
    %1898 = vmatpush1.bf16.msra.mxu0 0
    %1899 = vmatprep.subr.bf16.mxu0 0
    %1900 = vmatpush1.bf16.msra.mxu0 0
    %1901 = vmatprep.subr.bf16.mxu0 0
    %1902 = vmatpush1.bf16.msra.mxu0 0
    %1903 = vmatprep.subr.bf16.mxu0 0
    %1904 = vmatpush1.bf16.msra.mxu0 0
    %1905 = vmatprep.subr.bf16.mxu0 0
    %1906 = vmatpush1.bf16.msra.mxu0 %v1885
    %1907 = vmatprep.subr.bf16.mxu0 0
    %1908 = vmatpush1.bf16.msra.mxu0 %v1884
    %1909 = vmatprep.subr.bf16.mxu0 0
    %1910 = vmatpush1.bf16.msra.mxu0 %v1883
    %1911 = vmatprep.subr.bf16.mxu0 0
    %1912 = vmatpush1.bf16.msra.mxu0 %v1882
    %1913 = vmatprep.subr.bf16.mxu0 0
    %1914 = vmatpush2.bf16.msra.mxu0 0
    %1915 = vmatprep.subr.bf16.mxu0 0
    %1916 = vmatpush2.bf16.msra.mxu0 0
    %1917 = vmatprep.subr.bf16.mxu0 0
    %1918 = vmatpush2.bf16.msra.mxu0 0
    %1919 = vmatprep.subr.bf16.mxu0 0
    %1920 = vmatpush2.bf16.msra.mxu0 0
    %1921 = vmatprep.subr.bf16.mxu0 0
    %1922 = vmatpush2.bf16.msra.mxu0 0
    %1923 = vmatprep.subr.bf16.mxu0 0
    %1924 = vmatpush2.bf16.msra.mxu0 0
    %1925 = vmatprep.subr.bf16.mxu0 0
    %1926 = vmatpush2.bf16.msra.mxu0 0
    %1927 = vmatprep.subr.bf16.mxu0 0
    %1928 = vmatpush2.bf16.msra.mxu0 0
    %1929 = vmatprep.mubr.bf16.mxu0 0
    %1930 = vmatmul.mubr.bf16.gmra.mxu0 %v1892
    %v1931 = vpop.f32.mrf.mxu0
    %v1932 = vadd.f32 0.0, %v1931
    %v1933 = vpop.f32.mrf.mxu0
    %v1934 = vpop.f32.mrf.mxu0
    %v1935 = vadd.f32 0.0, %v1934
    %v1936 = vpop.f32.mrf.mxu0
    %1937 = vmatprep.mubr.bf16.mxu0 0
    %1938 = vmatmul.mubr.bf16.gmra.mxu0 %v1895
    %v1939 = vpop.f32.mrf.mxu0
    %v1940 = vadd.f32 0.0, %v1939
    %v1941 = vpop.f32.mrf.mxu0
    %v1942 = vpop.f32.mrf.mxu0
    %v1943 = vadd.f32 0.0, %v1942
    %v1944 = vpop.f32.mrf.mxu0
    %1945 = vdwg.mxu0
    %s1946 = scalar_lea.vmem %s2, 32
    %v1947 = vld [vmem:[%s1946] sm:$0xf]
    %v1948 = vld [vmem:[%s1946 + $0x4] sm:$0xf]
    %v1949 = vld [vmem:[%s1946 + $0x8] sm:$0xf]
    %v1950 = vld [vmem:[%s1946 + $0xc] sm:$0xf]
    %v1951 = vld [vmem:[%s1946 + $0x10] sm:$0xf]
    %v1952 = vld [vmem:[%s1946 + $0x14] sm:$0xf]
    %v1953 = vld [vmem:[%s1946 + $0x18] sm:$0xf]
    %v1954 = vld [vmem:[%s1946 + $0x1c] sm:$0xf]
    %v1963 = vunpack.c.l.b16 %v1947
    %v1964 = vunpack.c.l.b16 %v1948
    %v1965 = vunpack.c.l.b16 %v1949
    %v1966 = vunpack.c.l.b16 %v1950
    %v1967 = vunpack.c.l.b16 %v1951
    %v1968 = vunpack.c.l.b16 %v1952
    %v1969 = vunpack.c.l.b16 %v1953
    %v1970 = vunpack.c.l.b16 %v1954
    %v1971 = vpack.c.b16 %v1964, %v1963
    %v1972 = vpack.c.b16 %v1966, %v1965
    %v1973 = vpack.c.b16 %v1968, %v1967
    %v1974 = vpack.c.b16 %v1970, %v1969
    %1979 = vmatprep.subr.bf16.mxu0 0
    %1980 = vmatpush1.bf16.msra.mxu0 0
    %1981 = vmatprep.subr.bf16.mxu0 0
    %1982 = vmatpush1.bf16.msra.mxu0 0
    %1983 = vmatprep.subr.bf16.mxu0 0
    %1984 = vmatpush1.bf16.msra.mxu0 0
    %1985 = vmatprep.subr.bf16.mxu0 0
    %1986 = vmatpush1.bf16.msra.mxu0 0
    %1987 = vmatprep.subr.bf16.mxu0 0
    %1988 = vmatpush1.bf16.msra.mxu0 %v1974
    %1989 = vmatprep.subr.bf16.mxu0 0
    %1990 = vmatpush1.bf16.msra.mxu0 %v1973
    %1991 = vmatprep.subr.bf16.mxu0 0
    %1992 = vmatpush1.bf16.msra.mxu0 %v1972
    %1993 = vmatprep.subr.bf16.mxu0 0
    %1994 = vmatpush1.bf16.msra.mxu0 %v1971
    %1995 = vmatprep.subr.bf16.mxu0 0
    %1996 = vmatpush2.bf16.msra.mxu0 0
    %1997 = vmatprep.subr.bf16.mxu0 0
    %1998 = vmatpush2.bf16.msra.mxu0 0
    %1999 = vmatprep.subr.bf16.mxu0 0
    %2000 = vmatpush2.bf16.msra.mxu0 0
    %2001 = vmatprep.subr.bf16.mxu0 0
    %2002 = vmatpush2.bf16.msra.mxu0 0
    %2003 = vmatprep.subr.bf16.mxu0 0
    %2004 = vmatpush2.bf16.msra.mxu0 0
    %2005 = vmatprep.subr.bf16.mxu0 0
    %2006 = vmatpush2.bf16.msra.mxu0 0
    %2007 = vmatprep.subr.bf16.mxu0 0
    %2008 = vmatpush2.bf16.msra.mxu0 0
    %2009 = vmatprep.subr.bf16.mxu0 0
    %2010 = vmatpush2.bf16.msra.mxu0 0
    %2011 = vmatprep.mubr.bf16.mxu0 0
    %2012 = vmatmul.mubr.bf16.gmra.mxu0 %v1892
    %v2013 = vpop.f32.mrf.mxu0
    %v2014 = vadd.f32 0.0, %v2013
    %v2015 = vpop.f32.mrf.mxu0
    %v2016 = vpop.f32.mrf.mxu0
    %v2017 = vadd.f32 0.0, %v2016
    %v2018 = vpop.f32.mrf.mxu0
    %2019 = vmatprep.mubr.bf16.mxu0 0
    %2020 = vmatmul.mubr.bf16.gmra.mxu0 %v1895
    %v2021 = vpop.f32.mrf.mxu0
    %v2022 = vadd.f32 0.0, %v2021
    %v2023 = vpop.f32.mrf.mxu0
    %v2024 = vpop.f32.mrf.mxu0
    %v2025 = vadd.f32 0.0, %v2024
    %v2026 = vpop.f32.mrf.mxu0
    %2027 = vdwg.mxu0
    %vm2032 = vcmask 1046528
    %v2033 = vrot.slane %v2014, 1
    %v2034 = vrot.slane %v2017, 1
    %v2035 = vsel %vm2032, %v2033, %v2034
    %v2036 = vrot.slane %v2022, 1
    %v2037 = vrot.slane %v2025, 1
    %v2038 = vsel %vm2032, %v2036, %v2037
    %v2043 = vadd.f32 %v1932, %v2035
    %v2044 = vadd.f32 %v1935, %v2034
    %v2045 = vadd.f32 %v1940, %v2038
    %v2046 = vadd.f32 %v1943, %v2037
    %s2047 = scalar_lea.vmem %s2, 64
    %v2048 = vld [vmem:[%s2047] sm:$0xf]
    %v2049 = vld [vmem:[%s2047 + $0x4] sm:$0xf]
    %v2050 = vld [vmem:[%s2047 + $0x8] sm:$0xf]
    %v2051 = vld [vmem:[%s2047 + $0xc] sm:$0xf]
    %v2052 = vld [vmem:[%s2047 + $0x10] sm:$0xf]
    %v2053 = vld [vmem:[%s2047 + $0x14] sm:$0xf]
    %v2054 = vld [vmem:[%s2047 + $0x18] sm:$0xf]
    %v2055 = vld [vmem:[%s2047 + $0x1c] sm:$0xf]
    %v2064 = vunpack.c.l.b16 %v2048
    %v2065 = vunpack.c.l.b16 %v2049
    %v2066 = vunpack.c.l.b16 %v2050
    %v2067 = vunpack.c.l.b16 %v2051
    %v2068 = vunpack.c.l.b16 %v2052
    %v2069 = vunpack.c.l.b16 %v2053
    %v2070 = vunpack.c.l.b16 %v2054
    %v2071 = vunpack.c.l.b16 %v2055
    %v2072 = vpack.c.b16 %v2065, %v2064
    %v2073 = vpack.c.b16 %v2067, %v2066
    %v2074 = vpack.c.b16 %v2069, %v2068
    %v2075 = vpack.c.b16 %v2071, %v2070
    %2080 = vmatprep.subr.bf16.mxu0 0
    %2081 = vmatpush1.bf16.msra.mxu0 0
    %2082 = vmatprep.subr.bf16.mxu0 0
    %2083 = vmatpush1.bf16.msra.mxu0 0
    %2084 = vmatprep.subr.bf16.mxu0 0
    %2085 = vmatpush1.bf16.msra.mxu0 0
    %2086 = vmatprep.subr.bf16.mxu0 0
    %2087 = vmatpush1.bf16.msra.mxu0 0
    %2088 = vmatprep.subr.bf16.mxu0 0
    %2089 = vmatpush1.bf16.msra.mxu0 %v2075
    %2090 = vmatprep.subr.bf16.mxu0 0
    %2091 = vmatpush1.bf16.msra.mxu0 %v2074
    %2092 = vmatprep.subr.bf16.mxu0 0
    %2093 = vmatpush1.bf16.msra.mxu0 %v2073
    %2094 = vmatprep.subr.bf16.mxu0 0
    %2095 = vmatpush1.bf16.msra.mxu0 %v2072
    %2096 = vmatprep.subr.bf16.mxu0 0
    %2097 = vmatpush2.bf16.msra.mxu0 0
    %2098 = vmatprep.subr.bf16.mxu0 0
    %2099 = vmatpush2.bf16.msra.mxu0 0
    %2100 = vmatprep.subr.bf16.mxu0 0
    %2101 = vmatpush2.bf16.msra.mxu0 0
    %2102 = vmatprep.subr.bf16.mxu0 0
    %2103 = vmatpush2.bf16.msra.mxu0 0
    %2104 = vmatprep.subr.bf16.mxu0 0
    %2105 = vmatpush2.bf16.msra.mxu0 0
    %2106 = vmatprep.subr.bf16.mxu0 0
    %2107 = vmatpush2.bf16.msra.mxu0 0
    %2108 = vmatprep.subr.bf16.mxu0 0
    %2109 = vmatpush2.bf16.msra.mxu0 0
    %2110 = vmatprep.subr.bf16.mxu0 0
    %2111 = vmatpush2.bf16.msra.mxu0 0
    %2112 = vmatprep.mubr.bf16.mxu0 0
    %2113 = vmatmul.mubr.bf16.gmra.mxu0 %v1892
    %v2114 = vpop.f32.mrf.mxu0
    %v2115 = vadd.f32 0.0, %v2114
    %v2116 = vpop.f32.mrf.mxu0
    %v2117 = vpop.f32.mrf.mxu0
    %v2118 = vadd.f32 0.0, %v2117
    %v2119 = vpop.f32.mrf.mxu0
    %2120 = vmatprep.mubr.bf16.mxu0 0
    %2121 = vmatmul.mubr.bf16.gmra.mxu0 %v1895
    %v2122 = vpop.f32.mrf.mxu0
    %v2123 = vadd.f32 0.0, %v2122
    %v2124 = vpop.f32.mrf.mxu0
    %v2125 = vpop.f32.mrf.mxu0
    %v2126 = vadd.f32 0.0, %v2125
    %v2127 = vpop.f32.mrf.mxu0
    %2128 = vdwg.mxu0
    %vm2133 = vcmask 1045504
    %v2134 = vrot.slane %v2115, 2
    %v2135 = vrot.slane %v2118, 2
    %v2136 = vsel %vm2133, %v2134, %v2135
    %v2137 = vrot.slane %v2123, 2
    %v2138 = vrot.slane %v2126, 2
    %v2139 = vsel %vm2133, %v2137, %v2138
    %v2144 = vadd.f32 %v2043, %v2136
    %v2145 = vadd.f32 %v2044, %v2135
    %v2146 = vadd.f32 %v2045, %v2139
    %v2147 = vadd.f32 %v2046, %v2138
    %s2148 = scalar_lea.vmem %s2, 96
    %v2149 = vld [vmem:[%s2148] sm:$0xf]
    %v2150 = vld [vmem:[%s2148 + $0x4] sm:$0xf]
    %v2151 = vld [vmem:[%s2148 + $0x8] sm:$0xf]
    %v2152 = vld [vmem:[%s2148 + $0xc] sm:$0xf]
    %v2153 = vld [vmem:[%s2148 + $0x10] sm:$0xf]
    %v2154 = vld [vmem:[%s2148 + $0x14] sm:$0xf]
    %v2155 = vld [vmem:[%s2148 + $0x18] sm:$0xf]
    %v2156 = vld [vmem:[%s2148 + $0x1c] sm:$0xf]
    %v2165 = vunpack.c.l.b16 %v2149
    %v2166 = vunpack.c.l.b16 %v2150
    %v2167 = vunpack.c.l.b16 %v2151
    %v2168 = vunpack.c.l.b16 %v2152
    %v2169 = vunpack.c.l.b16 %v2153
    %v2170 = vunpack.c.l.b16 %v2154
    %v2171 = vunpack.c.l.b16 %v2155
    %v2172 = vunpack.c.l.b16 %v2156
    %v2173 = vpack.c.b16 %v2166, %v2165
    %v2174 = vpack.c.b16 %v2168, %v2167
    %v2175 = vpack.c.b16 %v2170, %v2169
    %v2176 = vpack.c.b16 %v2172, %v2171
    %2181 = vmatprep.subr.bf16.mxu0 0
    %2182 = vmatpush1.bf16.msra.mxu0 0
    %2183 = vmatprep.subr.bf16.mxu0 0
    %2184 = vmatpush1.bf16.msra.mxu0 0
    %2185 = vmatprep.subr.bf16.mxu0 0
    %2186 = vmatpush1.bf16.msra.mxu0 0
    %2187 = vmatprep.subr.bf16.mxu0 0
    %2188 = vmatpush1.bf16.msra.mxu0 0
    %2189 = vmatprep.subr.bf16.mxu0 0
    %2190 = vmatpush1.bf16.msra.mxu0 %v2176
    %2191 = vmatprep.subr.bf16.mxu0 0
    %2192 = vmatpush1.bf16.msra.mxu0 %v2175
    %2193 = vmatprep.subr.bf16.mxu0 0
    %2194 = vmatpush1.bf16.msra.mxu0 %v2174
    %2195 = vmatprep.subr.bf16.mxu0 0
    %2196 = vmatpush1.bf16.msra.mxu0 %v2173
    %2197 = vmatprep.subr.bf16.mxu0 0
    %2198 = vmatpush2.bf16.msra.mxu0 0
    %2199 = vmatprep.subr.bf16.mxu0 0
    %2200 = vmatpush2.bf16.msra.mxu0 0
    %2201 = vmatprep.subr.bf16.mxu0 0
    %2202 = vmatpush2.bf16.msra.mxu0 0
    %2203 = vmatprep.subr.bf16.mxu0 0
    %2204 = vmatpush2.bf16.msra.mxu0 0
    %2205 = vmatprep.subr.bf16.mxu0 0
    %2206 = vmatpush2.bf16.msra.mxu0 0
    %2207 = vmatprep.subr.bf16.mxu0 0
    %2208 = vmatpush2.bf16.msra.mxu0 0
    %2209 = vmatprep.subr.bf16.mxu0 0
    %2210 = vmatpush2.bf16.msra.mxu0 0
    %2211 = vmatprep.subr.bf16.mxu0 0
    %2212 = vmatpush2.bf16.msra.mxu0 0
    %2213 = vmatprep.mubr.bf16.mxu0 0
    %2214 = vmatmul.mubr.bf16.gmra.mxu0 %v1892
    %v2215 = vpop.f32.mrf.mxu0
    %v2216 = vadd.f32 0.0, %v2215
    %v2217 = vpop.f32.mrf.mxu0
    %v2218 = vpop.f32.mrf.mxu0
    %v2219 = vadd.f32 0.0, %v2218
    %v2220 = vpop.f32.mrf.mxu0
    %2221 = vmatprep.mubr.bf16.mxu0 0
    %2222 = vmatmul.mubr.bf16.gmra.mxu0 %v1895
    %v2223 = vpop.f32.mrf.mxu0
    %v2224 = vadd.f32 0.0, %v2223
    %v2225 = vpop.f32.mrf.mxu0
    %v2226 = vpop.f32.mrf.mxu0
    %v2227 = vadd.f32 0.0, %v2226
    %v2228 = vpop.f32.mrf.mxu0
    %2229 = vdwg.mxu0
    %vm2234 = vcmask 1044480
    %v2235 = vrot.slane %v2216, 3
    %v2236 = vrot.slane %v2219, 3
    %v2237 = vsel %vm2234, %v2235, %v2236
    %v2238 = vrot.slane %v2224, 3
    %v2239 = vrot.slane %v2227, 3
    %v2240 = vsel %vm2234, %v2238, %v2239
    %v2245 = vadd.f32 %v2144, %v2237
    %v2246 = vadd.f32 %v2145, %v2236
    %v2247 = vadd.f32 %v2146, %v2240
    %v2248 = vadd.f32 %v2147, %v2239
    %s2249 = scalar_lea.vmem %s2, 128
    %v2250 = vld [vmem:[%s2249] sm:$0xf]
    %v2251 = vld [vmem:[%s2249 + $0x4] sm:$0xf]
    %v2252 = vld [vmem:[%s2249 + $0x8] sm:$0xf]
    %v2253 = vld [vmem:[%s2249 + $0xc] sm:$0xf]
    %v2254 = vld [vmem:[%s2249 + $0x10] sm:$0xf]
    %v2255 = vld [vmem:[%s2249 + $0x14] sm:$0xf]
    %v2256 = vld [vmem:[%s2249 + $0x18] sm:$0xf]
    %v2257 = vld [vmem:[%s2249 + $0x1c] sm:$0xf]
    %v2266 = vunpack.c.l.b16 %v2250
    %v2267 = vunpack.c.l.b16 %v2251
    %v2268 = vunpack.c.l.b16 %v2252
    %v2269 = vunpack.c.l.b16 %v2253
    %v2270 = vunpack.c.l.b16 %v2254
    %v2271 = vunpack.c.l.b16 %v2255
    %v2272 = vunpack.c.l.b16 %v2256
    %v2273 = vunpack.c.l.b16 %v2257
    %v2274 = vpack.c.b16 %v2267, %v2266
    %v2275 = vpack.c.b16 %v2269, %v2268
    %v2276 = vpack.c.b16 %v2271, %v2270
    %v2277 = vpack.c.b16 %v2273, %v2272
    %2282 = vmatprep.subr.bf16.mxu0 0
    %2283 = vmatpush1.bf16.msra.mxu0 0
    %2284 = vmatprep.subr.bf16.mxu0 0
    %2285 = vmatpush1.bf16.msra.mxu0 0
    %2286 = vmatprep.subr.bf16.mxu0 0
    %2287 = vmatpush1.bf16.msra.mxu0 0
    %2288 = vmatprep.subr.bf16.mxu0 0
    %2289 = vmatpush1.bf16.msra.mxu0 0
    %2290 = vmatprep.subr.bf16.mxu0 0
    %2291 = vmatpush1.bf16.msra.mxu0 %v2277
    %2292 = vmatprep.subr.bf16.mxu0 0
    %2293 = vmatpush1.bf16.msra.mxu0 %v2276
    %2294 = vmatprep.subr.bf16.mxu0 0
    %2295 = vmatpush1.bf16.msra.mxu0 %v2275
    %2296 = vmatprep.subr.bf16.mxu0 0
    %2297 = vmatpush1.bf16.msra.mxu0 %v2274
    %2298 = vmatprep.subr.bf16.mxu0 0
    %2299 = vmatpush2.bf16.msra.mxu0 0
    %2300 = vmatprep.subr.bf16.mxu0 0
    %2301 = vmatpush2.bf16.msra.mxu0 0
    %2302 = vmatprep.subr.bf16.mxu0 0
    %2303 = vmatpush2.bf16.msra.mxu0 0
    %2304 = vmatprep.subr.bf16.mxu0 0
    %2305 = vmatpush2.bf16.msra.mxu0 0
    %2306 = vmatprep.subr.bf16.mxu0 0
    %2307 = vmatpush2.bf16.msra.mxu0 0
    %2308 = vmatprep.subr.bf16.mxu0 0
    %2309 = vmatpush2.bf16.msra.mxu0 0
    %2310 = vmatprep.subr.bf16.mxu0 0
    %2311 = vmatpush2.bf16.msra.mxu0 0
    %2312 = vmatprep.subr.bf16.mxu0 0
    %2313 = vmatpush2.bf16.msra.mxu0 0
    %2314 = vmatprep.mubr.bf16.mxu0 0
    %2315 = vmatmul.mubr.bf16.gmra.mxu0 %v1892
    %v2316 = vpop.f32.mrf.mxu0
    %v2317 = vadd.f32 0.0, %v2316
    %v2318 = vpop.f32.mrf.mxu0
    %v2319 = vpop.f32.mrf.mxu0
    %v2320 = vadd.f32 0.0, %v2319
    %v2321 = vpop.f32.mrf.mxu0
    %2322 = vmatprep.mubr.bf16.mxu0 0
    %2323 = vmatmul.mubr.bf16.gmra.mxu0 %v1895
    %v2324 = vpop.f32.mrf.mxu0
    %v2325 = vadd.f32 0.0, %v2324
    %v2326 = vpop.f32.mrf.mxu0
    %v2327 = vpop.f32.mrf.mxu0
    %v2328 = vadd.f32 0.0, %v2327
    %v2329 = vpop.f32.mrf.mxu0
    %2330 = vdwg.mxu0
    %vm2335 = vcmask 1043456
    %v2336 = vrot.slane %v2317, 4
    %v2337 = vrot.slane %v2320, 4
    %v2338 = vsel %vm2335, %v2336, %v2337
    %v2339 = vrot.slane %v2325, 4
    %v2340 = vrot.slane %v2328, 4
    %v2341 = vsel %vm2335, %v2339, %v2340
    %v2346 = vadd.f32 %v2245, %v2338
    %v2347 = vadd.f32 %v2246, %v2337
    %v2348 = vadd.f32 %v2247, %v2341
    %v2349 = vadd.f32 %v2248, %v2340
    %v2350 = vld [vmem:[%s3] sm:$0x1]
    %v2352 = vlaneseq
    %v2353 = vshrl.u32 %v2352, 7
    %v2354 = vsub.s32 0, %v2353
    %v2355 = vrot.slane %v2350, %v2354
    %v2357 = vadd.f32 %v2346, %v2355
    %v2358 = vadd.f32 %v2347, %v2355
    %v2359 = vadd.f32 %v2348, %v2355
    %v2360 = vadd.f32 %v2349, %v2355
    %v2361 = vsel %vm1890, %v2357, -inf
    %vm2362 = vcmask 519168
    %v2363 = vsel %vm2362, %v2358, -inf
    %v2364 = vmax.f32 %v2361, %v2363
    %v2365 = vrot.slane %v2364, 4
    %v2366 = vmax.f32 %v2364, %v2365
    %v2367 = vrot.slane %v2366, 2
    %v2368 = vmax.f32 %v2366, %v2367
    %v2369 = vrot.slane %v2368, 1
    %v2370 = vmax.f32 %v2368, %v2369
    %v2371 = vsel %vm1890, %v2359, -inf
    %v2372 = vsel %vm2362, %v2360, -inf
    %v2373 = vmax.f32 %v2371, %v2372
    %v2374 = vrot.slane %v2373, 4
    %v2375 = vmax.f32 %v2373, %v2374
    %v2376 = vrot.slane %v2375, 2
    %v2377 = vmax.f32 %v2375, %v2376
    %v2378 = vrot.slane %v2377, 1
    %v2379 = vmax.f32 %v2377, %v2378
    %v2380 = vpack.c.bf16 %v2370, %v2370
    %v2381 = vpack.c.bf16 %v2379, %v2379
    %v2382 = vld [vmem:[%s4] sm:$0xf]
    %v2383 = vld [vmem:[%s4 + $0x4] sm:$0xf]
    %v2384 = vld [vmem:[%s4 + $0x8] sm:$0xf]
    %v2385 = vld [vmem:[%s4 + $0xc] sm:$0xf]
    %v2386 = vld [vmem:[%s4 + $0x10] sm:$0xf]
    %v2387 = vld [vmem:[%s4 + $0x14] sm:$0xf]
    %v2388 = vld [vmem:[%s4 + $0x18] sm:$0xf]
    %v2389 = vld [vmem:[%s4 + $0x1c] sm:$0xf]
    %v2390 = vld [vmem:[%s5] sm:$0x1]
    %v2392 = vlaneseq
    %v2393 = vshrl.u32 %v2392, 7
    %v2394 = vsub.s32 0, %v2393
    %v2395 = vrot.slane %v2390, %v2394
    %v2399 = vunpack.c.l.b16 %v2380
    %v2400 = vunpack.c.l.b16 %v2381
    %vm2401 = vcmask 1041409
    %v2402 = vsel %vm2401, %v2400, %v2399
    %v2403 = vpack.c.b16 %v2402, %v2402
    %v2412 = vunpack.c.l.b16 %v2382
    %v2413 = vunpack.c.l.b16 %v2383
    %v2414 = vunpack.c.l.b16 %v2384
    %v2415 = vunpack.c.l.b16 %v2385
    %v2416 = vunpack.c.l.b16 %v2386
    %v2417 = vunpack.c.l.b16 %v2387
    %v2418 = vunpack.c.l.b16 %v2388
    %v2419 = vunpack.c.l.b16 %v2389
    %v2420 = vpack.c.b16 %v2413, %v2412
    %v2421 = vpack.c.b16 %v2415, %v2414
    %v2422 = vpack.c.b16 %v2417, %v2416
    %v2423 = vpack.c.b16 %v2419, %v2418
    %v2429 = vsel %vm1890, %v2403, 0
    %2431 = vmatprep.subr.bf16.mxu0 0
    %2432 = vmatpush1.bf16.msra.mxu0 0
    %2433 = vmatprep.subr.bf16.mxu0 0
    %2434 = vmatpush1.bf16.msra.mxu0 0
    %2435 = vmatprep.subr.bf16.mxu0 0
    %2436 = vmatpush1.bf16.msra.mxu0 0
    %2437 = vmatprep.subr.bf16.mxu0 0
    %2438 = vmatpush1.bf16.msra.mxu0 0
    %2439 = vmatprep.subr.bf16.mxu0 0
    %2440 = vmatpush1.bf16.msra.mxu0 %v2423
    %2441 = vmatprep.subr.bf16.mxu0 0
    %2442 = vmatpush1.bf16.msra.mxu0 %v2422
    %2443 = vmatprep.subr.bf16.mxu0 0
    %2444 = vmatpush1.bf16.msra.mxu0 %v2421
    %2445 = vmatprep.subr.bf16.mxu0 0
    %2446 = vmatpush1.bf16.msra.mxu0 %v2420
    %2447 = vmatprep.subr.bf16.mxu0 0
    %2448 = vmatpush2.bf16.msra.mxu0 0
    %2449 = vmatprep.subr.bf16.mxu0 0
    %2450 = vmatpush2.bf16.msra.mxu0 0
    %2451 = vmatprep.subr.bf16.mxu0 0
    %2452 = vmatpush2.bf16.msra.mxu0 0
    %2453 = vmatprep.subr.bf16.mxu0 0
    %2454 = vmatpush2.bf16.msra.mxu0 0
    %2455 = vmatprep.subr.bf16.mxu0 0
    %2456 = vmatpush2.bf16.msra.mxu0 0
    %2457 = vmatprep.subr.bf16.mxu0 0
    %2458 = vmatpush2.bf16.msra.mxu0 0
    %2459 = vmatprep.subr.bf16.mxu0 0
    %2460 = vmatpush2.bf16.msra.mxu0 0
    %2461 = vmatprep.subr.bf16.mxu0 0
    %2462 = vmatpush2.bf16.msra.mxu0 0
    %2463 = vmatprep.mubr.bf16.mxu0 0
    %2464 = vmatmul.mubr.bf16.gmra.mxu0 %v2429
    %v2465 = vpop.f32.mrf.mxu0
    %v2466 = vadd.f32 %v2395, %v2465
    %v2467 = vpop.f32.mrf.mxu0
    %v2468 = vpop.f32.mrf.mxu0
    %v2469 = vpop.f32.mrf.mxu0
    %2470 = vdwg.mxu0
    %vm2471 = vcmask 58368
    %2472 = vst.msk [vmem:[#allocation6] sm:$0x3] %vm2471, %v2466
    // Predicated region
    $region978: #{tpu_custom_call.1} parent=1 // pred_check
      _
    $region979: #{tpu_custom_call.1} parent=1 // pred_check_branch
      %2474 = sbr.rel (0) target = $region981
    $region980: #{tpu_custom_call.1} parent=1 // pred_region
      %s2476 = ssub.s32 32, 32
      %2477 = vsyncadd [#allocation7], %s2476
      %s2479 = sshll.u32 [#allocation6], 4
      %s2480 = int_to_ptr.vmem [resolvable:$true] %s2479
      %2482 = dma.vmem_to_hbm [thread:$0]  %s2480, 32, %s6, [#allocation7]
    $region981: #{tpu_custom_call.1} parent=1 // pred_fallthru
      _
    // Predicated region
    $region982: #{tpu_custom_call.1} parent=1 // pred_check
      _
    $region983: #{tpu_custom_call.1} parent=1 // pred_check_branch
      %2484 = sbr.rel (0) target = $region985
    $region984: #{tpu_custom_call.1} parent=1 // pred_region
      %2485 = dma.done [#allocation7], 32
    $region985: #{tpu_custom_call.1} parent=1 // pred_fallthru
      _
    %2486 = vsyncpa [#allocation7], 1
  %2487 = vsyncmov [#allocation3]
  %s2488 = vpop.sfrf %2487
  %p2489 = scmp.eq.s32.totalorder %s2488, 0
  %p2490 = pneg %p2489
  %2492 = shalt.err (%p2490)
  %s2493 = scalar_lea.sflag [#allocation3], 1
  %2494 = vsyncmov %s2493
  %s2495 = vpop.sfrf %2494
  %p2496 = scmp.eq.s32.totalorder %s2495, 0
  %p2497 = pneg %p2496
  %2499 = shalt.err (%p2497)
  %s2500 = scalar_lea.sflag [#allocation3], 2
  %2501 = vsyncmov %s2500
  %s2502 = vpop.sfrf %2501
  %p2503 = scmp.eq.s32.totalorder %s2502, 0
  %p2504 = pneg %p2503
  %2506 = shalt.err (%p2504)
  %s2507 = scalar_lea.sflag [#allocation3], 3
  %2508 = vsyncmov %s2507
  %s2509 = vpop.sfrf %2508
  %p2510 = scmp.eq.s32.totalorder %s2509, 0
  %p2511 = pneg %p2510
  %2513 = shalt.err (%p2511)
  %s2514 = scalar_lea.sflag [#allocation3], 4
  %2515 = vsyncmov %s2514
  %s2516 = vpop.sfrf %2515
  %p2517 = scmp.eq.s32.totalorder %s2516, 0
  %p2518 = pneg %p2517
  %2520 = shalt.err (%p2518)
  %s2521 = scalar_lea.sflag [#allocation3], 5
  %2522 = vsyncmov %s2521
  %s2523 = vpop.sfrf %2522
  %p2524 = scmp.eq.s32.totalorder %s2523, 0
  %p2525 = pneg %p2524
  %2527 = shalt.err (%p2525)
  %s2528 = scalar_lea.sflag [#allocation3], 6
  %2529 = vsyncmov %s2528
  %s2530 = vpop.sfrf %2529
  %p2531 = scmp.eq.s32.totalorder %s2530, 0
  %p2532 = pneg %p2531
  %2534 = shalt.err (%p2532)
  %s2535 = scalar_lea.sflag [#allocation3], 7
  %2536 = vsyncmov %s2535
  %s2537 = vpop.sfrf %2536
  %p2538 = scmp.eq.s32.totalorder %s2537, 0
  %p2539 = pneg %p2538
  %2541 = shalt.err (%p2539)
  %s2542 = scalar_lea.sflag [#allocation3], 8
  %2543 = vsyncmov %s2542
  %s2544 = vpop.sfrf %2543
  %p2545 = scmp.eq.s32.totalorder %s2544, 0
  %p2546 = pneg %p2545
  %2548 = shalt.err (%p2546)
  %s2549 = scalar_lea.sflag [#allocation3], 9
  %2550 = vsyncmov %s2549
  %s2551 = vpop.sfrf %2550
  %p2552 = scmp.eq.s32.totalorder %s2551, 0
  %p2553 = pneg %p2552
  %2555 = shalt.err (%p2553)
  %s2556 = scalar_lea.sflag [#allocation3], 10
  %2557 = vsyncmov %s2556
  %s2558 = vpop.sfrf %2557
  %p2559 = scmp.eq.s32.totalorder %s2558, 0
  %p2560 = pneg %p2559
  %2562 = shalt.err (%p2560)
  %s2563 = scalar_lea.sflag [#allocation3], 11
  %2564 = vsyncmov %s2563
  %s2565 = vpop.sfrf %2564
  %p2566 = scmp.eq.s32.totalorder %s2565, 0
  %p2567 = pneg %p2566
  %2569 = shalt.err (%p2567)
  %s2570 = scalar_lea.sflag [#allocation3], 12
  %2571 = vsyncmov %s2570
  %s2572 = vpop.sfrf %2571
  %p2573 = scmp.eq.s32.totalorder %s2572, 0
  %p2574 = pneg %p2573
  %2576 = shalt.err (%p2574)
  %s2577 = scalar_lea.sflag [#allocation3], 13
  %2578 = vsyncmov %s2577
  %s2579 = vpop.sfrf %2578
  %p2580 = scmp.eq.s32.totalorder %s2579, 0
  %p2581 = pneg %p2580
  %2583 = shalt.err (%p2581)
  %s2584 = scalar_lea.sflag [#allocation3], 14
  %2585 = vsyncmov %s2584
  %s2586 = vpop.sfrf %2585
  %p2587 = scmp.eq.s32.totalorder %s2586, 0
  %p2588 = pneg %p2587
  %2590 = shalt.err (%p2588)
  %s2591 = scalar_lea.sflag [#allocation3], 15
  %2592 = vsyncmov %s2591
  %s2593 = vpop.sfrf %2592
  %p2594 = scmp.eq.s32.totalorder %s2593, 0
  %p2595 = pneg %p2594
  %2597 = shalt.err (%p2595)
  %s2598 = scalar_lea.sflag [#allocation3], 16
  %2599 = vsyncmov %s2598
  %s2600 = vpop.sfrf %2599
  %p2601 = scmp.eq.s32.totalorder %s2600, 0
  %p2602 = pneg %p2601
  %2604 = shalt.err (%p2602)
  %s2605 = scalar_lea.sflag [#allocation3], 17
  %2606 = vsyncmov %s2605
  %s2607 = vpop.sfrf %2606
  %p2608 = scmp.eq.s32.totalorder %s2607, 0
  %p2609 = pneg %p2608
  %2611 = shalt.err (%p2609)
  %s2612 = scalar_lea.sflag [#allocation3], 18
  %2613 = vsyncmov %s2612
  %s2614 = vpop.sfrf %2613
  %p2615 = scmp.eq.s32.totalorder %s2614, 0
  %p2616 = pneg %p2615
  %2618 = shalt.err (%p2616)
  %s2619 = scalar_lea.sflag [#allocation3], 19
  %2620 = vsyncmov %s2619
  %s2621 = vpop.sfrf %2620
  %p2622 = scmp.eq.s32.totalorder %s2621, 0
  %p2623 = pneg %p2622
  %2625 = shalt.err (%p2623)
  %s2626 = scalar_lea.sflag [#allocation3], 20
  %2627 = vsyncmov %s2626
  %s2628 = vpop.sfrf %2627
  %p2629 = scmp.eq.s32.totalorder %s2628, 0
  %p2630 = pneg %p2629
  %2632 = shalt.err (%p2630)
  %s2633 = scalar_lea.sflag [#allocation3], 21
  %2634 = vsyncmov %s2633
  %s2635 = vpop.sfrf %2634
  %p2636 = scmp.eq.s32.totalorder %s2635, 0
  %p2637 = pneg %p2636
  %2639 = shalt.err (%p2637)
  %s2640 = scalar_lea.sflag [#allocation3], 22
  %2641 = vsyncmov %s2640
  %s2642 = vpop.sfrf %2641
  %p2643 = scmp.eq.s32.totalorder %s2642, 0
  %p2644 = pneg %p2643
  %2646 = shalt.err (%p2644)
  %s2647 = scalar_lea.sflag [#allocation3], 23
  %2648 = vsyncmov %s2647
  %s2649 = vpop.sfrf %2648
  %p2650 = scmp.eq.s32.totalorder %s2649, 0
  %p2651 = pneg %p2650
  %2653 = shalt.err (%p2651)
  %s2654 = scalar_lea.sflag [#allocation3], 24
  %2655 = vsyncmov %s2654
  %s2656 = vpop.sfrf %2655
  %p2657 = scmp.eq.s32.totalorder %s2656, 0
  %p2658 = pneg %p2657
  %2660 = shalt.err (%p2658)
  %s2661 = scalar_lea.sflag [#allocation3], 25
  %2662 = vsyncmov %s2661
  %s2663 = vpop.sfrf %2662
  %p2664 = scmp.eq.s32.totalorder %s2663, 0
  %p2665 = pneg %p2664
  %2667 = shalt.err (%p2665)
  %s2668 = scalar_lea.sflag [#allocation3], 26
  %2669 = vsyncmov %s2668
  %s2670 = vpop.sfrf %2669
  %p2671 = scmp.eq.s32.totalorder %s2670, 0
  %p2672 = pneg %p2671
  %2674 = shalt.err (%p2672)
  %s2675 = scalar_lea.sflag [#allocation3], 27
  %2676 = vsyncmov %s2675
  %s2677 = vpop.sfrf %2676
  %p2678 = scmp.eq.s32.totalorder %s2677, 0
  %p2679 = pneg %p2678
  %2681 = shalt.err (%p2679)
  %s2682 = scalar_lea.sflag [#allocation3], 28
  %2683 = vsyncmov %s2682
  %s2684 = vpop.sfrf %2683
  %p2685 = scmp.eq.s32.totalorder %s2684, 0
  %p2686 = pneg %p2685
  %2688 = shalt.err (%p2686)
  %s2689 = scalar_lea.sflag [#allocation3], 29
  %2690 = vsyncmov %s2689
  %s2691 = vpop.sfrf %2690
  %p2692 = scmp.eq.s32.totalorder %s2691, 0
  %p2693 = pneg %p2692
  %2695 = shalt.err (%p2693)
  %s2696 = scalar_lea.sflag [#allocation3], 30
  %2697 = vsyncmov %s2696
  %s2698 = vpop.sfrf %2697
  %p2699 = scmp.eq.s32.totalorder %s2698, 0
  %p2700 = pneg %p2699
  %2702 = shalt.err (%p2700)
  %s2703 = scalar_lea.sflag [#allocation3], 31
  %2704 = vsyncmov %s2703
  %s2705 = vpop.sfrf %2704
  %p2706 = scmp.eq.s32.totalorder %s2705, 0
  %p2707 = pneg %p2706
  %2709 = shalt.err (%p2707)

</llo_original>
